<compile_context>
chip_gen: v5e
topology: v5e:2x2
jax: 0.10.0
libtpu: 0.0.40
codegen_flags: <defaults>
</compile_context>

<pallas_src>
import jax
import jax.numpy as jnp
from jax import lax
from jax.experimental import pallas as pl
from jax.experimental.pallas import tpu as pltpu  # noqa: F401  (TPU backend import)


# ----------------------------- Pallas kernel --------------------------------


def decoder_kernel(
    # inputs (all resident VMEM blocks, single invocation)
    feat_ref,              # (B, N, E)      encoder features
    emb_ref,               # (S, B, EMB)    embeddings of caption tokens 0..S-1
    uw_ref, ub_ref,        # attention U: (E, Ap), (1, Ap)
    ww_ref, wb_ref,        # attention W: (Dp, Ap), (1, Ap)
    aw_ref, ab_ref,        # attention A: (1, Ap), (1, 1)
    ihw_ref, ihb_ref,      # init_h:      (E, Dp), (1, Dp)
    icw_ref, icb_ref,      # init_c:      (E, Dp), (1, Dp)
    wie_ref, wic_ref,      # lstm W_ih^T split: (EMB, 4Dp), (E, 4Dp)
    whh_ref, bg_ref,       # lstm W_hh^T: (Dp, 4Dp), fused bias (1, 4Dp)
    fw_ref, fb_ref,        # fcn:         (Dp, Vp), (1, Vp)
    # output
    preds_ref,             # (S, B, Vp)
):
    feats = feat_ref[...]                                   # (B, N, E)
    B, N, E = feats.shape
    S = emb_ref.shape[0]
    Dp = ihw_ref.shape[1]
    Ap = uw_ref.shape[1]

    # ---- one-time setup (outside the recurrence) ----
    mean_f = jnp.mean(feats, axis=1)                        # (B, E)
    h0 = jnp.dot(mean_f, ihw_ref[...],
                 preferred_element_type=jnp.float32) + ihb_ref[...]      # (B, Dp)
    c0 = jnp.dot(mean_f, icw_ref[...],
                 preferred_element_type=jnp.float32) + icb_ref[...]      # (B, Dp)
    uhs = (jnp.dot(feats.reshape(B * N, E), uw_ref[...],
                   preferred_element_type=jnp.float32)
           .reshape(B, N, Ap) + ub_ref[...])                              # (B, N, Ap)

    # Hoist weight loads out of the loop.
    aw = aw_ref[...]
    ab = ab_ref[...]
    ww = ww_ref[...]
    wb = wb_ref[...]
    wie = wie_ref[...]
    wic = wic_ref[...]
    whh = whh_ref[...]
    bg = bg_ref[...]
    fw = fw_ref[...]
    fb = fb_ref[...]

    def step(s, carry):
        h, c = carry                                        # (B, Dp), (B, Dp)

        # ---- Bahdanau attention ----
        w_ah = jnp.dot(h, ww, preferred_element_type=jnp.float32) + wb   # (B, Ap)
        combined = jnp.tanh(uhs + w_ah[:, None, :])                      # (B, N, Ap)
        scores = jnp.sum(combined * aw, axis=-1) + ab                    # (B, N)
        scores = scores - jnp.max(scores, axis=1, keepdims=True)
        exp_s = jnp.exp(scores)
        alpha = exp_s * pl.reciprocal(jnp.sum(exp_s, axis=1, keepdims=True),
                                      approx=True)                       # (B, N)
        context = jnp.sum(feats * alpha[:, :, None], axis=1)             # (B, E)

        # ---- LSTM cell (PyTorch gate order i, f, g, o); split GEMM avoids lane concat ----
        emb = emb_ref[s]                                                 # (B, EMB)
        gates = (jnp.dot(emb, wie, preferred_element_type=jnp.float32)
                 + jnp.dot(context, wic, preferred_element_type=jnp.float32)
                 + jnp.dot(h, whh, preferred_element_type=jnp.float32)
                 + bg)                                                   # (B, 4Dp)
        i_g = jax.nn.sigmoid(gates[:, 0 * Dp:1 * Dp])
        f_g = jax.nn.sigmoid(gates[:, 1 * Dp:2 * Dp])
        g_g = jnp.tanh(gates[:, 2 * Dp:3 * Dp])
        o_g = jax.nn.sigmoid(gates[:, 3 * Dp:4 * Dp])
        c_new = f_g * c + i_g * g_g
        h_new = o_g * jnp.tanh(c_new)

        # ---- output projection (dropout is identity: eval mode) ----
        # TODO(synk): nn.Dropout(0.3) is treated as eval-mode identity (no RNG masking).
        preds_ref[s] = (jnp.dot(h_new, fw, preferred_element_type=jnp.float32) + fb)
        return (h_new, c_new)

    lax.fori_loop(0, S, step, (h0, c0), unroll=True)


# ----------------------------- wrapper ---------------------------------------


def _round_up(x, m):
    return (x + m - 1) // m * m


@jax.jit
def decoder_rnn_forward(features, captions, params):
    """features: (B, N, E) f32; captions: (B, T) int32 -> preds (B, T-1, V) f32."""
    (emb_table, uw, ub, ww, wb, aw, ab,
     ihw, ihb, icw, icb, wih, bih, whh, bhh, fw, fb) = params

    B, N, E = features.shape
    T = captions.shape[1]
    S = T - 1
    EMB = emb_table.shape[1]
    A = uw.shape[1]
    D = ihw.shape[1]
    V = fw.shape[1]

    Ap = _round_up(A, 128)
    Dp = _round_up(D, 128)
    Vp = _round_up(V, 128)

    # Embedding gather stays as plain-JAX glue; one resident (S, B, EMB) slab for the kernel.
    embeds_t = jnp.transpose(emb_table[captions[:, :S]], (1, 0, 2)).astype(jnp.float32)

    def pad2(x, rows, cols):
        return jnp.pad(x, ((0, rows - x.shape[0]), (0, cols - x.shape[1])))

    def pad_gates(w, rows_to):
        # (k, 4*D) -> (rows_to, 4*Dp): zero-pad each of the 4 gate blocks from D to Dp lanes.
        k = w.shape[0]
        w4 = w.reshape(k, 4, D)
        w4 = jnp.pad(w4, ((0, rows_to - k), (0, 0), (0, Dp - D)))
        return w4.reshape(rows_to, 4 * Dp)

    # Lane-dense, math-preserving zero padding of the parameters.
    uw_p = pad2(uw, E, Ap);    ub_p = pad2(ub, 1, Ap)
    ww_p = pad2(ww, Dp, Ap);   wb_p = pad2(wb, 1, Ap)
    aw_p = pad2(aw, 1, Ap)
    ihw_p = pad2(ihw, E, Dp);  ihb_p = pad2(ihb, 1, Dp)
    icw_p = pad2(icw, E, Dp);  icb_p = pad2(icb, 1, Dp)
    wie_p = pad_gates(wih[:EMB], EMB)      # embedding half of W_ih^T
    wic_p = pad_gates(wih[EMB:], E)        # context half of W_ih^T
    whh_p = pad_gates(whh, Dp)
    bg_p = pad_gates(bih + bhh, 1)         # fused gate bias
    fw_p = pad2(fw, Dp, Vp);   fb_p = pad2(fb, 1, Vp)

    preds_p = pl.pallas_call(
        decoder_kernel,
        out_shape=jax.ShapeDtypeStruct((S, B, Vp), jnp.float32),
    )(features, embeds_t,
      uw_p, ub_p, ww_p, wb_p, aw_p, ab,
      ihw_p, ihb_p, icw_p, icb_p,
      wie_p, wic_p, whh_p, bg_p, fw_p, fb_p)

    return jnp.transpose(preds_p[:, :, :V], (1, 0, 2))       # (B, S, V)


# ----------------------------- pure-JAX reference ----------------------------


def decoder_rnn_reference(features, captions, params):
    (emb_table, uw, ub, ww, wb, aw, ab,
     ihw, ihb, icw, icb, wih, bih, whh, bhh, fw, fb) = params
    embeds = emb_table[captions]
    mean_f = features.mean(axis=1)
    h = mean_f @ ihw + ihb
    c = mean_f @ icw + icb
    D = h.shape[-1]
    S = captions.shape[1] - 1
    preds = []
    for s in range(S):
        u_hs = jnp.einsum('bne,ea->bna', features, uw) + ub
        w_ah = h @ ww + wb
        comb = jnp.tanh(u_hs + w_ah[:, None, :])
        scores = jnp.sum(comb * aw, axis=-1) + ab
        alpha = jax.nn.softmax(scores, axis=1)
        ctx = jnp.sum(features * alpha[:, :, None], axis=1)
        x = jnp.concatenate([embeds[:, s], ctx], axis=1)
        gates = x @ wih + bih + h @ whh + bhh
        i_g = jax.nn.sigmoid(gates[:, :D])
        f_g = jax.nn.sigmoid(gates[:, D:2 * D])
        g_g = jnp.tanh(gates[:, 2 * D:3 * D])
        o_g = jax.nn.sigmoid(gates[:, 3 * D:4 * D])
        c = f_g * c + i_g * g_g
        h = o_g * jnp.tanh(c)
        preds.append(h @ fw + fb)
    return jnp.stack(preds, axis=1)


# ----------------------------------- main ------------------------------------


if __name__ == "__main__":
    # Small, module-consistent shapes.
    B = 2            # batch
    N = 16           # num_features (spatial locations from encoder)
    E = 32           # encoder_dim
    D = 32           # decoder_dim
    A = 32           # attention_dim
    EMB = 32         # embed_size
    V = 64           # vocab_size
    T = 8            # caption length (seq_length = T - 1 = 7)

    key = jax.random.PRNGKey(0)
    ks = jax.random.split(key, 20)

    def w(k, shape, scale=0.1):
        return (scale * jax.random.normal(k, shape)).astype(jnp.float32)

    params = (
        w(ks[0], (V, EMB)),                                   # embedding table
        w(ks[1], (E, A)), w(ks[2], (1, A)),                   # attention U (w^T, b)
        w(ks[3], (D, A)), w(ks[4], (1, A)),                   # attention W (w^T, b)
        w(ks[5], (1, A)), w(ks[6], (1, 1)),                   # attention A (w, b)
        w(ks[7], (E, D)), w(ks[8], (1, D)),                   # init_h
        w(ks[9], (E, D)), w(ks[10], (1, D)),                  # init_c
        w(ks[11], (EMB + E, 4 * D)), w(ks[12], (1, 4 * D)),   # lstm W_ih^T, b_ih
        w(ks[13], (D, 4 * D)), w(ks[14], (1, 4 * D)),         # lstm W_hh^T, b_hh
        w(ks[15], (D, V)), w(ks[16], (1, V)),                 # fcn
    )

    features = jax.random.normal(ks[17], (B, N, E), dtype=jnp.float32)
    captions = jax.random.randint(ks[18], (B, T), 0, V, dtype=jnp.int32)

    preds = decoder_rnn_forward(features, captions, params)
    preds = jax.block_until_ready(preds)

    ref = decoder_rnn_reference(features, captions, params)
    assert preds.shape == (B, T - 1, V), preds.shape
    assert jnp.allclose(preds, ref, rtol=1e-2, atol=1e-2), (
        float(jnp.max(jnp.abs(preds - ref))))

    print("KERNEL_OK")
</pallas_src>

<mosaic_0001>
module attributes {stable_mosaic.version = 11 : i64} {
  func.func @decoder_kernel(%arg0: memref<2x16x32xf32, #tpu.memory_space<vmem>>, %arg1: memref<7x2x32xf32, #tpu.memory_space<vmem>>, %arg2: memref<32x128xf32, #tpu.memory_space<vmem>>, %arg3: memref<1x128xf32, #tpu.memory_space<vmem>>, %arg4: memref<128x128xf32, #tpu.memory_space<vmem>>, %arg5: memref<1x128xf32, #tpu.memory_space<vmem>>, %arg6: memref<1x128xf32, #tpu.memory_space<vmem>>, %arg7: memref<1x1xf32, #tpu.memory_space<vmem>>, %arg8: memref<32x128xf32, #tpu.memory_space<vmem>>, %arg9: memref<1x128xf32, #tpu.memory_space<vmem>>, %arg10: memref<32x128xf32, #tpu.memory_space<vmem>>, %arg11: memref<1x128xf32, #tpu.memory_space<vmem>>, %arg12: memref<32x512xf32, #tpu.memory_space<vmem>>, %arg13: memref<32x512xf32, #tpu.memory_space<vmem>>, %arg14: memref<128x512xf32, #tpu.memory_space<vmem>>, %arg15: memref<1x512xf32, #tpu.memory_space<vmem>>, %arg16: memref<128x128xf32, #tpu.memory_space<vmem>>, %arg17: memref<1x128xf32, #tpu.memory_space<vmem>>, %arg18: memref<7x2x128xf32, #tpu.memory_space<vmem>>) attributes {dimension_semantics = [], scalar_prefetch = 0 : i64, scratch_operands = 0 : i64, tpu.core_type = #tpu.core_type<tc>} {
    %c0 = arith.constant 0 : index
    %c0_0 = arith.constant 0 : index
    %c0_1 = arith.constant 0 : index
    %0 = vector.load %arg0[%c0, %c0_0, %c0_1] : memref<2x16x32xf32, #tpu.memory_space<vmem>>, vector<2x16x32xf32>
    %cst = arith.constant dense<0.000000e+00> : vector<2x32xf32>
    %1 = vector.multi_reduction <add>, %0, %cst [1] : vector<2x16x32xf32> to vector<2x32xf32>
    %cst_2 = arith.constant 1.600000e+01 : f32
    %2 = vector.broadcast %cst_2 : f32 to vector<2x32xf32>
    %3 = arith.divf %1, %2 : vector<2x32xf32>
    %c0_3 = arith.constant 0 : index
    %c0_4 = arith.constant 0 : index
    %4 = vector.load %arg8[%c0_3, %c0_4] : memref<32x128xf32, #tpu.memory_space<vmem>>, vector<32x128xf32>
    %cst_5 = arith.constant dense<0.000000e+00> : vector<2x128xf32>
    %5 = tpu.matmul %3, %4, %cst_5 {dimension_numbers = #tpu.dot_dimension_numbers<[1], [0], [0], [1], [0, 0, 1, 1], [], []>} : vector<2x32xf32>, vector<32x128xf32>, vector<2x128xf32> -> vector<2x128xf32>
    %c0_6 = arith.constant 0 : index
    %c0_7 = arith.constant 0 : index
    %6 = vector.load %arg9[%c0_6, %c0_7] : memref<1x128xf32, #tpu.memory_space<vmem>>, vector<1x128xf32>
    %7 = vector.broadcast %6 : vector<1x128xf32> to vector<2x128xf32>
    %8 = arith.addf %5, %7 : vector<2x128xf32>
    %c0_8 = arith.constant 0 : index
    %c0_9 = arith.constant 0 : index
    %9 = vector.load %arg10[%c0_8, %c0_9] : memref<32x128xf32, #tpu.memory_space<vmem>>, vector<32x128xf32>
    %cst_10 = arith.constant dense<0.000000e+00> : vector<2x128xf32>
    %10 = tpu.matmul %3, %9, %cst_10 {dimension_numbers = #tpu.dot_dimension_numbers<[1], [0], [0], [1], [0, 0, 1, 1], [], []>} : vector<2x32xf32>, vector<32x128xf32>, vector<2x128xf32> -> vector<2x128xf32>
    %c0_11 = arith.constant 0 : index
    %c0_12 = arith.constant 0 : index
    %11 = vector.load %arg11[%c0_11, %c0_12] : memref<1x128xf32, #tpu.memory_space<vmem>>, vector<1x128xf32>
    %12 = vector.broadcast %11 : vector<1x128xf32> to vector<2x128xf32>
    %13 = arith.addf %10, %12 : vector<2x128xf32>
    %14 = vector.shape_cast %0 : vector<2x16x32xf32> to vector<32x32xf32>
    %c0_13 = arith.constant 0 : index
    %c0_14 = arith.constant 0 : index
    %15 = vector.load %arg2[%c0_13, %c0_14] : memref<32x128xf32, #tpu.memory_space<vmem>>, vector<32x128xf32>
    %cst_15 = arith.constant dense<0.000000e+00> : vector<32x128xf32>
    %16 = tpu.matmul %14, %15, %cst_15 {dimension_numbers = #tpu.dot_dimension_numbers<[1], [0], [0], [1], [0, 0, 1, 1], [], []>} : vector<32x32xf32>, vector<32x128xf32>, vector<32x128xf32> -> vector<32x128xf32>
    %17 = vector.shape_cast %16 : vector<32x128xf32> to vector<2x16x128xf32>
    %c0_16 = arith.constant 0 : index
    %c0_17 = arith.constant 0 : index
    %18 = vector.load %arg3[%c0_16, %c0_17] : memref<1x128xf32, #tpu.memory_space<vmem>>, vector<1x128xf32>
    %19 = vector.shape_cast %18 : vector<1x128xf32> to vector<1x1x128xf32>
    %20 = vector.broadcast %19 : vector<1x1x128xf32> to vector<2x16x128xf32>
    %21 = arith.addf %17, %20 : vector<2x16x128xf32>
    %c0_18 = arith.constant 0 : index
    %c0_19 = arith.constant 0 : index
    %22 = vector.load %arg6[%c0_18, %c0_19] : memref<1x128xf32, #tpu.memory_space<vmem>>, vector<1x128xf32>
    %c0_20 = arith.constant 0 : index
    %c0_21 = arith.constant 0 : index
    %23 = vector.load %arg7[%c0_20, %c0_21] : memref<1x1xf32, #tpu.memory_space<vmem>>, vector<1x1xf32>
    %c0_22 = arith.constant 0 : index
    %c0_23 = arith.constant 0 : index
    %24 = vector.load %arg4[%c0_22, %c0_23] : memref<128x128xf32, #tpu.memory_space<vmem>>, vector<128x128xf32>
    %c0_24 = arith.constant 0 : index
    %c0_25 = arith.constant 0 : index
    %25 = vector.load %arg5[%c0_24, %c0_25] : memref<1x128xf32, #tpu.memory_space<vmem>>, vector<1x128xf32>
    %c0_26 = arith.constant 0 : index
    %c0_27 = arith.constant 0 : index
    %26 = vector.load %arg12[%c0_26, %c0_27] : memref<32x512xf32, #tpu.memory_space<vmem>>, vector<32x512xf32>
    %c0_28 = arith.constant 0 : index
    %c0_29 = arith.constant 0 : index
    %27 = vector.load %arg13[%c0_28, %c0_29] : memref<32x512xf32, #tpu.memory_space<vmem>>, vector<32x512xf32>
    %c0_30 = arith.constant 0 : index
    %c0_31 = arith.constant 0 : index
    %28 = vector.load %arg14[%c0_30, %c0_31] : memref<128x512xf32, #tpu.memory_space<vmem>>, vector<128x512xf32>
    %c0_32 = arith.constant 0 : index
    %c0_33 = arith.constant 0 : index
    %29 = vector.load %arg15[%c0_32, %c0_33] : memref<1x512xf32, #tpu.memory_space<vmem>>, vector<1x512xf32>
    %c0_34 = arith.constant 0 : index
    %c0_35 = arith.constant 0 : index
    %30 = vector.load %arg16[%c0_34, %c0_35] : memref<128x128xf32, #tpu.memory_space<vmem>>, vector<128x128xf32>
    %c0_36 = arith.constant 0 : index
    %c0_37 = arith.constant 0 : index
    %31 = vector.load %arg17[%c0_36, %c0_37] : memref<1x128xf32, #tpu.memory_space<vmem>>, vector<1x128xf32>
    %c0_i32 = arith.constant 0 : i32
    %cst_38 = arith.constant dense<0.000000e+00> : vector<2x128xf32>
    %32 = tpu.matmul %8, %24, %cst_38 {dimension_numbers = #tpu.dot_dimension_numbers<[1], [0], [0], [1], [0, 0, 1, 1], [], []>} : vector<2x128xf32>, vector<128x128xf32>, vector<2x128xf32> -> vector<2x128xf32>
    %33 = vector.broadcast %25 : vector<1x128xf32> to vector<2x128xf32>
    %34 = arith.addf %32, %33 : vector<2x128xf32>
    %35 = vector.shape_cast %34 : vector<2x128xf32> to vector<2x1x128xf32>
    %36 = vector.broadcast %35 : vector<2x1x128xf32> to vector<2x16x128xf32>
    %37 = arith.addf %21, %36 : vector<2x16x128xf32>
    %38 = math.tanh %37 : vector<2x16x128xf32>
    %39 = vector.shape_cast %22 : vector<1x128xf32> to vector<1x1x128xf32>
    %40 = vector.broadcast %39 : vector<1x1x128xf32> to vector<2x16x128xf32>
    %41 = arith.mulf %38, %40 : vector<2x16x128xf32>
    %cst_39 = arith.constant dense<0.000000e+00> : vector<2x16xf32>
    %42 = vector.multi_reduction <add>, %41, %cst_39 [2] : vector<2x16x128xf32> to vector<2x16xf32>
    %43 = vector.broadcast %23 : vector<1x1xf32> to vector<2x16xf32>
    %44 = arith.addf %42, %43 : vector<2x16xf32>
    %cst_40 = arith.constant dense<0xFF800000> : vector<2xf32>
    %45 = vector.multi_reduction <maximumf>, %44, %cst_40 [1] : vector<2x16xf32> to vector<2xf32>
    %46 = vector.shape_cast %45 : vector<2xf32> to vector<2x1xf32>
    %47 = vector.broadcast %46 : vector<2x1xf32> to vector<2x16xf32>
    %48 = arith.subf %44, %47 : vector<2x16xf32>
    %49 = math.exp %48 : vector<2x16xf32>
    %cst_41 = arith.constant dense<0.000000e+00> : vector<2xf32>
    %50 = vector.multi_reduction <add>, %49, %cst_41 [1] : vector<2x16xf32> to vector<2xf32>
    %51 = vector.shape_cast %50 : vector<2xf32> to vector<2x1xf32>
    %52 = tpu.reciprocal %51 {approx = true} : vector<2x1xf32> -> vector<2x1xf32>
    %53 = vector.broadcast %52 : vector<2x1xf32> to vector<2x16xf32>
    %54 = arith.mulf %49, %53 : vector<2x16xf32>
    %55 = vector.shape_cast %54 : vector<2x16xf32> to vector<2x16x1xf32>
    %56 = vector.broadcast %55 : vector<2x16x1xf32> to vector<2x16x32xf32>
    %57 = arith.mulf %0, %56 : vector<2x16x32xf32>
    %cst_42 = arith.constant dense<0.000000e+00> : vector<2x32xf32>
    %58 = vector.multi_reduction <add>, %57, %cst_42 [1] : vector<2x16x32xf32> to vector<2x32xf32>
    %59 = arith.index_cast %c0_i32 : i32 to index
    %c0_43 = arith.constant 0 : index
    %c0_44 = arith.constant 0 : index
    %60 = vector.load %arg1[%59, %c0_43, %c0_44] : memref<7x2x32xf32, #tpu.memory_space<vmem>>, vector<1x2x32xf32>
    %61 = vector.shape_cast %60 : vector<1x2x32xf32> to vector<2x32xf32>
    %cst_45 = arith.constant dense<0.000000e+00> : vector<2x512xf32>
    %62 = tpu.matmul %61, %26, %cst_45 {dimension_numbers = #tpu.dot_dimension_numbers<[1], [0], [0], [1], [0, 0, 1, 1], [], []>} : vector<2x32xf32>, vector<32x512xf32>, vector<2x512xf32> -> vector<2x512xf32>
    %cst_46 = arith.constant dense<0.000000e+00> : vector<2x512xf32>
    %63 = tpu.matmul %58, %27, %cst_46 {dimension_numbers = #tpu.dot_dimension_numbers<[1], [0], [0], [1], [0, 0, 1, 1], [], []>} : vector<2x32xf32>, vector<32x512xf32>, vector<2x512xf32> -> vector<2x512xf32>
    %64 = arith.addf %62, %63 : vector<2x512xf32>
    %cst_47 = arith.constant dense<0.000000e+00> : vector<2x512xf32>
    %65 = tpu.matmul %8, %28, %cst_47 {dimension_numbers = #tpu.dot_dimension_numbers<[1], [0], [0], [1], [0, 0, 1, 1], [], []>} : vector<2x128xf32>, vector<128x512xf32>, vector<2x512xf32> -> vector<2x512xf32>
    %66 = arith.addf %64, %65 : vector<2x512xf32>
    %67 = vector.broadcast %29 : vector<1x512xf32> to vector<2x512xf32>
    %68 = arith.addf %66, %67 : vector<2x512xf32>
    %69 = vector.extract_strided_slice %68 {offsets = [0, 0], sizes = [2, 128], strides = [1, 1]} : vector<2x512xf32> to vector<2x128xf32>
    %70 = arith.negf %69 : vector<2x128xf32>
    %71 = math.exp %70 : vector<2x128xf32>
    %cst_48 = arith.constant 1.000000e+00 : f32
    %72 = vector.broadcast %cst_48 : f32 to vector<2x128xf32>
    %73 = arith.addf %72, %71 : vector<2x128xf32>
    %74 = arith.divf %72, %73 : vector<2x128xf32>
    %75 = vector.extract_strided_slice %68 {offsets = [0, 128], sizes = [2, 128], strides = [1, 1]} : vector<2x512xf32> to vector<2x128xf32>
    %76 = arith.negf %75 : vector<2x128xf32>
    %77 = math.exp %76 : vector<2x128xf32>
    %cst_49 = arith.constant 1.000000e+00 : f32
    %78 = vector.broadcast %cst_49 : f32 to vector<2x128xf32>
    %79 = arith.addf %78, %77 : vector<2x128xf32>
    %80 = arith.divf %78, %79 : vector<2x128xf32>
    %81 = vector.extract_strided_slice %68 {offsets = [0, 256], sizes = [2, 128], strides = [1, 1]} : vector<2x512xf32> to vector<2x128xf32>
    %82 = math.tanh %81 : vector<2x128xf32>
    %83 = vector.extract_strided_slice %68 {offsets = [0, 384], sizes = [2, 128], strides = [1, 1]} : vector<2x512xf32> to vector<2x128xf32>
    %84 = arith.negf %83 : vector<2x128xf32>
    %85 = math.exp %84 : vector<2x128xf32>
    %cst_50 = arith.constant 1.000000e+00 : f32
    %86 = vector.broadcast %cst_50 : f32 to vector<2x128xf32>
    %87 = arith.addf %86, %85 : vector<2x128xf32>
    %88 = arith.divf %86, %87 : vector<2x128xf32>
    %89 = arith.mulf %80, %13 : vector<2x128xf32>
    %90 = arith.mulf %74, %82 : vector<2x128xf32>
    %91 = arith.addf %89, %90 : vector<2x128xf32>
    %92 = math.tanh %91 : vector<2x128xf32>
    %93 = arith.mulf %88, %92 : vector<2x128xf32>
    %cst_51 = arith.constant dense<0.000000e+00> : vector<2x128xf32>
    %94 = tpu.matmul %93, %30, %cst_51 {dimension_numbers = #tpu.dot_dimension_numbers<[1], [0], [0], [1], [0, 0, 1, 1], [], []>} : vector<2x128xf32>, vector<128x128xf32>, vector<2x128xf32> -> vector<2x128xf32>
    %95 = vector.broadcast %31 : vector<1x128xf32> to vector<2x128xf32>
    %96 = arith.addf %94, %95 : vector<2x128xf32>
    %97 = arith.index_cast %c0_i32 : i32 to index
    %c0_52 = arith.constant 0 : index
    %c0_53 = arith.constant 0 : index
    %98 = vector.load %arg18[%97, %c0_52, %c0_53] : memref<7x2x128xf32, #tpu.memory_space<vmem>>, vector<1x2x128xf32>
    %99 = vector.shape_cast %98 : vector<1x2x128xf32> to vector<2x128xf32>
    %100 = vector.shape_cast %96 : vector<2x128xf32> to vector<1x2x128xf32>
    tpu.vector_store %arg18[%97, %c0_52, %c0_53], %100 {strides = array<i32>} : memref<7x2x128xf32, #tpu.memory_space<vmem>>, vector<1x2x128xf32>,
    %c1_i32 = arith.constant 1 : i32
    %cst_54 = arith.constant dense<0.000000e+00> : vector<2x128xf32>
    %101 = tpu.matmul %93, %24, %cst_54 {dimension_numbers = #tpu.dot_dimension_numbers<[1], [0], [0], [1], [0, 0, 1, 1], [], []>} : vector<2x128xf32>, vector<128x128xf32>, vector<2x128xf32> -> vector<2x128xf32>
    %102 = vector.broadcast %25 : vector<1x128xf32> to vector<2x128xf32>
    %103 = arith.addf %101, %102 : vector<2x128xf32>
    %104 = vector.shape_cast %103 : vector<2x128xf32> to vector<2x1x128xf32>
    %105 = vector.broadcast %104 : vector<2x1x128xf32> to vector<2x16x128xf32>
    %106 = arith.addf %21, %105 : vector<2x16x128xf32>
    %107 = math.tanh %106 : vector<2x16x128xf32>
    %108 = vector.shape_cast %22 : vector<1x128xf32> to vector<1x1x128xf32>
    %109 = vector.broadcast %108 : vector<1x1x128xf32> to vector<2x16x128xf32>
    %110 = arith.mulf %107, %109 : vector<2x16x128xf32>
    %cst_55 = arith.constant dense<0.000000e+00> : vector<2x16xf32>
    %111 = vector.multi_reduction <add>, %110, %cst_55 [2] : vector<2x16x128xf32> to vector<2x16xf32>
    %112 = vector.broadcast %23 : vector<1x1xf32> to vector<2x16xf32>
    %113 = arith.addf %111, %112 : vector<2x16xf32>
    %cst_56 = arith.constant dense<0xFF800000> : vector<2xf32>
    %114 = vector.multi_reduction <maximumf>, %113, %cst_56 [1] : vector<2x16xf32> to vector<2xf32>
    %115 = vector.shape_cast %114 : vector<2xf32> to vector<2x1xf32>
    %116 = vector.broadcast %115 : vector<2x1xf32> to vector<2x16xf32>
    %117 = arith.subf %113, %116 : vector<2x16xf32>
    %118 = math.exp %117 : vector<2x16xf32>
    %cst_57 = arith.constant dense<0.000000e+00> : vector<2xf32>
    %119 = vector.multi_reduction <add>, %118, %cst_57 [1] : vector<2x16xf32> to vector<2xf32>
    %120 = vector.shape_cast %119 : vector<2xf32> to vector<2x1xf32>
    %121 = tpu.reciprocal %120 {approx = true} : vector<2x1xf32> -> vector<2x1xf32>
    %122 = vector.broadcast %121 : vector<2x1xf32> to vector<2x16xf32>
    %123 = arith.mulf %118, %122 : vector<2x16xf32>
    %124 = vector.shape_cast %123 : vector<2x16xf32> to vector<2x16x1xf32>
    %125 = vector.broadcast %124 : vector<2x16x1xf32> to vector<2x16x32xf32>
    %126 = arith.mulf %0, %125 : vector<2x16x32xf32>
    %cst_58 = arith.constant dense<0.000000e+00> : vector<2x32xf32>
    %127 = vector.multi_reduction <add>, %126, %cst_58 [1] : vector<2x16x32xf32> to vector<2x32xf32>
    %128 = arith.index_cast %c1_i32 : i32 to index
    %c0_59 = arith.constant 0 : index
    %c0_60 = arith.constant 0 : index
    %129 = vector.load %arg1[%128, %c0_59, %c0_60] : memref<7x2x32xf32, #tpu.memory_space<vmem>>, vector<1x2x32xf32>
    %130 = vector.shape_cast %129 : vector<1x2x32xf32> to vector<2x32xf32>
    %cst_61 = arith.constant dense<0.000000e+00> : vector<2x512xf32>
    %131 = tpu.matmul %130, %26, %cst_61 {dimension_numbers = #tpu.dot_dimension_numbers<[1], [0], [0], [1], [0, 0, 1, 1], [], []>} : vector<2x32xf32>, vector<32x512xf32>, vector<2x512xf32> -> vector<2x512xf32>
    %cst_62 = arith.constant dense<0.000000e+00> : vector<2x512xf32>
    %132 = tpu.matmul %127, %27, %cst_62 {dimension_numbers = #tpu.dot_dimension_numbers<[1], [0], [0], [1], [0, 0, 1, 1], [], []>} : vector<2x32xf32>, vector<32x512xf32>, vector<2x512xf32> -> vector<2x512xf32>
    %133 = arith.addf %131, %132 : vector<2x512xf32>
    %cst_63 = arith.constant dense<0.000000e+00> : vector<2x512xf32>
    %134 = tpu.matmul %93, %28, %cst_63 {dimension_numbers = #tpu.dot_dimension_numbers<[1], [0], [0], [1], [0, 0, 1, 1], [], []>} : vector<2x128xf32>, vector<128x512xf32>, vector<2x512xf32> -> vector<2x512xf32>
    %135 = arith.addf %133, %134 : vector<2x512xf32>
    %136 = vector.broadcast %29 : vector<1x512xf32> to vector<2x512xf32>
    %137 = arith.addf %135, %136 : vector<2x512xf32>
    %138 = vector.extract_strided_slice %137 {offsets = [0, 0], sizes = [2, 128], strides = [1, 1]} : vector<2x512xf32> to vector<2x128xf32>
    %139 = arith.negf %138 : vector<2x128xf32>
    %140 = math.exp %139 : vector<2x128xf32>
    %cst_64 = arith.constant 1.000000e+00 : f32
    %141 = vector.broadcast %cst_64 : f32 to vector<2x128xf32>
    %142 = arith.addf %141, %140 : vector<2x128xf32>
    %143 = arith.divf %141, %142 : vector<2x128xf32>
    %144 = vector.extract_strided_slice %137 {offsets = [0, 128], sizes = [2, 128], strides = [1, 1]} : vector<2x512xf32> to vector<2x128xf32>
    %145 = arith.negf %144 : vector<2x128xf32>
    %146 = math.exp %145 : vector<2x128xf32>
    %cst_65 = arith.constant 1.000000e+00 : f32
    %147 = vector.broadcast %cst_65 : f32 to vector<2x128xf32>
    %148 = arith.addf %147, %146 : vector<2x128xf32>
    %149 = arith.divf %147, %148 : vector<2x128xf32>
    %150 = vector.extract_strided_slice %137 {offsets = [0, 256], sizes = [2, 128], strides = [1, 1]} : vector<2x512xf32> to vector<2x128xf32>
    %151 = math.tanh %150 : vector<2x128xf32>
    %152 = vector.extract_strided_slice %137 {offsets = [0, 384], sizes = [2, 128], strides = [1, 1]} : vector<2x512xf32> to vector<2x128xf32>
    %153 = arith.negf %152 : vector<2x128xf32>
    %154 = math.exp %153 : vector<2x128xf32>
    %cst_66 = arith.constant 1.000000e+00 : f32
    %155 = vector.broadcast %cst_66 : f32 to vector<2x128xf32>
    %156 = arith.addf %155, %154 : vector<2x128xf32>
    %157 = arith.divf %155, %156 : vector<2x128xf32>
    %158 = arith.mulf %149, %91 : vector<2x128xf32>
    %159 = arith.mulf %143, %151 : vector<2x128xf32>
    %160 = arith.addf %158, %159 : vector<2x128xf32>
    %161 = math.tanh %160 : vector<2x128xf32>
    %162 = arith.mulf %157, %161 : vector<2x128xf32>
    %cst_67 = arith.constant dense<0.000000e+00> : vector<2x128xf32>
    %163 = tpu.matmul %162, %30, %cst_67 {dimension_numbers = #tpu.dot_dimension_numbers<[1], [0], [0], [1], [0, 0, 1, 1], [], []>} : vector<2x128xf32>, vector<128x128xf32>, vector<2x128xf32> -> vector<2x128xf32>
    %164 = vector.broadcast %31 : vector<1x128xf32> to vector<2x128xf32>
    %165 = arith.addf %163, %164 : vector<2x128xf32>
    %166 = arith.index_cast %c1_i32 : i32 to index
    %c0_68 = arith.constant 0 : index
    %c0_69 = arith.constant 0 : index
    %167 = vector.load %arg18[%166, %c0_68, %c0_69] : memref<7x2x128xf32, #tpu.memory_space<vmem>>, vector<1x2x128xf32>
    %168 = vector.shape_cast %167 : vector<1x2x128xf32> to vector<2x128xf32>
    %169 = vector.shape_cast %165 : vector<2x128xf32> to vector<1x2x128xf32>
    tpu.vector_store %arg18[%166, %c0_68, %c0_69], %169 {strides = array<i32>} : memref<7x2x128xf32, #tpu.memory_space<vmem>>, vector<1x2x128xf32>,
    %c2_i32 = arith.constant 2 : i32
    %cst_70 = arith.constant dense<0.000000e+00> : vector<2x128xf32>
    %170 = tpu.matmul %162, %24, %cst_70 {dimension_numbers = #tpu.dot_dimension_numbers<[1], [0], [0], [1], [0, 0, 1, 1], [], []>} : vector<2x128xf32>, vector<128x128xf32>, vector<2x128xf32> -> vector<2x128xf32>
    %171 = vector.broadcast %25 : vector<1x128xf32> to vector<2x128xf32>
    %172 = arith.addf %170, %171 : vector<2x128xf32>
    %173 = vector.shape_cast %172 : vector<2x128xf32> to vector<2x1x128xf32>
    %174 = vector.broadcast %173 : vector<2x1x128xf32> to vector<2x16x128xf32>
    %175 = arith.addf %21, %174 : vector<2x16x128xf32>
    %176 = math.tanh %175 : vector<2x16x128xf32>
    %177 = vector.shape_cast %22 : vector<1x128xf32> to vector<1x1x128xf32>
    %178 = vector.broadcast %177 : vector<1x1x128xf32> to vector<2x16x128xf32>
    %179 = arith.mulf %176, %178 : vector<2x16x128xf32>
    %cst_71 = arith.constant dense<0.000000e+00> : vector<2x16xf32>
    %180 = vector.multi_reduction <add>, %179, %cst_71 [2] : vector<2x16x128xf32> to vector<2x16xf32>
    %181 = vector.broadcast %23 : vector<1x1xf32> to vector<2x16xf32>
    %182 = arith.addf %180, %181 : vector<2x16xf32>
    %cst_72 = arith.constant dense<0xFF800000> : vector<2xf32>
    %183 = vector.multi_reduction <maximumf>, %182, %cst_72 [1] : vector<2x16xf32> to vector<2xf32>
    %184 = vector.shape_cast %183 : vector<2xf32> to vector<2x1xf32>
    %185 = vector.broadcast %184 : vector<2x1xf32> to vector<2x16xf32>
    %186 = arith.subf %182, %185 : vector<2x16xf32>
    %187 = math.exp %186 : vector<2x16xf32>
    %cst_73 = arith.constant dense<0.000000e+00> : vector<2xf32>
    %188 = vector.multi_reduction <add>, %187, %cst_73 [1] : vector<2x16xf32> to vector<2xf32>
    %189 = vector.shape_cast %188 : vector<2xf32> to vector<2x1xf32>
    %190 = tpu.reciprocal %189 {approx = true} : vector<2x1xf32> -> vector<2x1xf32>
    %191 = vector.broadcast %190 : vector<2x1xf32> to vector<2x16xf32>
    %192 = arith.mulf %187, %191 : vector<2x16xf32>
    %193 = vector.shape_cast %192 : vector<2x16xf32> to vector<2x16x1xf32>
    %194 = vector.broadcast %193 : vector<2x16x1xf32> to vector<2x16x32xf32>
    %195 = arith.mulf %0, %194 : vector<2x16x32xf32>
    %cst_74 = arith.constant dense<0.000000e+00> : vector<2x32xf32>
    %196 = vector.multi_reduction <add>, %195, %cst_74 [1] : vector<2x16x32xf32> to vector<2x32xf32>
    %197 = arith.index_cast %c2_i32 : i32 to index
    %c0_75 = arith.constant 0 : index
    %c0_76 = arith.constant 0 : index
    %198 = vector.load %arg1[%197, %c0_75, %c0_76] : memref<7x2x32xf32, #tpu.memory_space<vmem>>, vector<1x2x32xf32>
    %199 = vector.shape_cast %198 : vector<1x2x32xf32> to vector<2x32xf32>
    %cst_77 = arith.constant dense<0.000000e+00> : vector<2x512xf32>
    %200 = tpu.matmul %199, %26, %cst_77 {dimension_numbers = #tpu.dot_dimension_numbers<[1], [0], [0], [1], [0, 0, 1, 1], [], []>} : vector<2x32xf32>, vector<32x512xf32>, vector<2x512xf32> -> vector<2x512xf32>
    %cst_78 = arith.constant dense<0.000000e+00> : vector<2x512xf32>
    %201 = tpu.matmul %196, %27, %cst_78 {dimension_numbers = #tpu.dot_dimension_numbers<[1], [0], [0], [1], [0, 0, 1, 1], [], []>} : vector<2x32xf32>, vector<32x512xf32>, vector<2x512xf32> -> vector<2x512xf32>
    %202 = arith.addf %200, %201 : vector<2x512xf32>
    %cst_79 = arith.constant dense<0.000000e+00> : vector<2x512xf32>
    %203 = tpu.matmul %162, %28, %cst_79 {dimension_numbers = #tpu.dot_dimension_numbers<[1], [0], [0], [1], [0, 0, 1, 1], [], []>} : vector<2x128xf32>, vector<128x512xf32>, vector<2x512xf32> -> vector<2x512xf32>
    %204 = arith.addf %202, %203 : vector<2x512xf32>
    %205 = vector.broadcast %29 : vector<1x512xf32> to vector<2x512xf32>
    %206 = arith.addf %204, %205 : vector<2x512xf32>
    %207 = vector.extract_strided_slice %206 {offsets = [0, 0], sizes = [2, 128], strides = [1, 1]} : vector<2x512xf32> to vector<2x128xf32>
    %208 = arith.negf %207 : vector<2x128xf32>
    %209 = math.exp %208 : vector<2x128xf32>
    %cst_80 = arith.constant 1.000000e+00 : f32
    %210 = vector.broadcast %cst_80 : f32 to vector<2x128xf32>
    %211 = arith.addf %210, %209 : vector<2x128xf32>
    %212 = arith.divf %210, %211 : vector<2x128xf32>
    %213 = vector.extract_strided_slice %206 {offsets = [0, 128], sizes = [2, 128], strides = [1, 1]} : vector<2x512xf32> to vector<2x128xf32>
    %214 = arith.negf %213 : vector<2x128xf32>
    %215 = math.exp %214 : vector<2x128xf32>
    %cst_81 = arith.constant 1.000000e+00 : f32
    %216 = vector.broadcast %cst_81 : f32 to vector<2x128xf32>
    %217 = arith.addf %216, %215 : vector<2x128xf32>
    %218 = arith.divf %216, %217 : vector<2x128xf32>
    %219 = vector.extract_strided_slice %206 {offsets = [0, 256], sizes = [2, 128], strides = [1, 1]} : vector<2x512xf32> to vector<2x128xf32>
    %220 = math.tanh %219 : vector<2x128xf32>
    %221 = vector.extract_strided_slice %206 {offsets = [0, 384], sizes = [2, 128], strides = [1, 1]} : vector<2x512xf32> to vector<2x128xf32>
    %222 = arith.negf %221 : vector<2x128xf32>
    %223 = math.exp %222 : vector<2x128xf32>
    %cst_82 = arith.constant 1.000000e+00 : f32
    %224 = vector.broadcast %cst_82 : f32 to vector<2x128xf32>
    %225 = arith.addf %224, %223 : vector<2x128xf32>
    %226 = arith.divf %224, %225 : vector<2x128xf32>
    %227 = arith.mulf %218, %160 : vector<2x128xf32>
    %228 = arith.mulf %212, %220 : vector<2x128xf32>
    %229 = arith.addf %227, %228 : vector<2x128xf32>
    %230 = math.tanh %229 : vector<2x128xf32>
    %231 = arith.mulf %226, %230 : vector<2x128xf32>
    %cst_83 = arith.constant dense<0.000000e+00> : vector<2x128xf32>
    %232 = tpu.matmul %231, %30, %cst_83 {dimension_numbers = #tpu.dot_dimension_numbers<[1], [0], [0], [1], [0, 0, 1, 1], [], []>} : vector<2x128xf32>, vector<128x128xf32>, vector<2x128xf32> -> vector<2x128xf32>
    %233 = vector.broadcast %31 : vector<1x128xf32> to vector<2x128xf32>
    %234 = arith.addf %232, %233 : vector<2x128xf32>
    %235 = arith.index_cast %c2_i32 : i32 to index
    %c0_84 = arith.constant 0 : index
    %c0_85 = arith.constant 0 : index
    %236 = vector.load %arg18[%235, %c0_84, %c0_85] : memref<7x2x128xf32, #tpu.memory_space<vmem>>, vector<1x2x128xf32>
    %237 = vector.shape_cast %236 : vector<1x2x128xf32> to vector<2x128xf32>
    %238 = vector.shape_cast %234 : vector<2x128xf32> to vector<1x2x128xf32>
    tpu.vector_store %arg18[%235, %c0_84, %c0_85], %238 {strides = array<i32>} : memref<7x2x128xf32, #tpu.memory_space<vmem>>, vector<1x2x128xf32>,
    %c3_i32 = arith.constant 3 : i32
    %cst_86 = arith.constant dense<0.000000e+00> : vector<2x128xf32>
    %239 = tpu.matmul %231, %24, %cst_86 {dimension_numbers = #tpu.dot_dimension_numbers<[1], [0], [0], [1], [0, 0, 1, 1], [], []>} : vector<2x128xf32>, vector<128x128xf32>, vector<2x128xf32> -> vector<2x128xf32>
    %240 = vector.broadcast %25 : vector<1x128xf32> to vector<2x128xf32>
    %241 = arith.addf %239, %240 : vector<2x128xf32>
    %242 = vector.shape_cast %241 : vector<2x128xf32> to vector<2x1x128xf32>
    %243 = vector.broadcast %242 : vector<2x1x128xf32> to vector<2x16x128xf32>
    %244 = arith.addf %21, %243 : vector<2x16x128xf32>
    %245 = math.tanh %244 : vector<2x16x128xf32>
    %246 = vector.shape_cast %22 : vector<1x128xf32> to vector<1x1x128xf32>
    %247 = vector.broadcast %246 : vector<1x1x128xf32> to vector<2x16x128xf32>
    %248 = arith.mulf %245, %247 : vector<2x16x128xf32>
    %cst_87 = arith.constant dense<0.000000e+00> : vector<2x16xf32>
    %249 = vector.multi_reduction <add>, %248, %cst_87 [2] : vector<2x16x128xf32> to vector<2x16xf32>
    %250 = vector.broadcast %23 : vector<1x1xf32> to vector<2x16xf32>
    %251 = arith.addf %249, %250 : vector<2x16xf32>
    %cst_88 = arith.constant dense<0xFF800000> : vector<2xf32>
    %252 = vector.multi_reduction <maximumf>, %251, %cst_88 [1] : vector<2x16xf32> to vector<2xf32>
    %253 = vector.shape_cast %252 : vector<2xf32> to vector<2x1xf32>
    %254 = vector.broadcast %253 : vector<2x1xf32> to vector<2x16xf32>
    %255 = arith.subf %251, %254 : vector<2x16xf32>
    %256 = math.exp %255 : vector<2x16xf32>
    %cst_89 = arith.constant dense<0.000000e+00> : vector<2xf32>
    %257 = vector.multi_reduction <add>, %256, %cst_89 [1] : vector<2x16xf32> to vector<2xf32>
    %258 = vector.shape_cast %257 : vector<2xf32> to vector<2x1xf32>
    %259 = tpu.reciprocal %258 {approx = true} : vector<2x1xf32> -> vector<2x1xf32>
    %260 = vector.broadcast %259 : vector<2x1xf32> to vector<2x16xf32>
    %261 = arith.mulf %256, %260 : vector<2x16xf32>
    %262 = vector.shape_cast %261 : vector<2x16xf32> to vector<2x16x1xf32>
    %263 = vector.broadcast %262 : vector<2x16x1xf32> to vector<2x16x32xf32>
    %264 = arith.mulf %0, %263 : vector<2x16x32xf32>
    %cst_90 = arith.constant dense<0.000000e+00> : vector<2x32xf32>
    %265 = vector.multi_reduction <add>, %264, %cst_90 [1] : vector<2x16x32xf32> to vector<2x32xf32>
    %266 = arith.index_cast %c3_i32 : i32 to index
    %c0_91 = arith.constant 0 : index
    %c0_92 = arith.constant 0 : index
    %267 = vector.load %arg1[%266, %c0_91, %c0_92] : memref<7x2x32xf32, #tpu.memory_space<vmem>>, vector<1x2x32xf32>
    %268 = vector.shape_cast %267 : vector<1x2x32xf32> to vector<2x32xf32>
    %cst_93 = arith.constant dense<0.000000e+00> : vector<2x512xf32>
    %269 = tpu.matmul %268, %26, %cst_93 {dimension_numbers = #tpu.dot_dimension_numbers<[1], [0], [0], [1], [0, 0, 1, 1], [], []>} : vector<2x32xf32>, vector<32x512xf32>, vector<2x512xf32> -> vector<2x512xf32>
    %cst_94 = arith.constant dense<0.000000e+00> : vector<2x512xf32>
    %270 = tpu.matmul %265, %27, %cst_94 {dimension_numbers = #tpu.dot_dimension_numbers<[1], [0], [0], [1], [0, 0, 1, 1], [], []>} : vector<2x32xf32>, vector<32x512xf32>, vector<2x512xf32> -> vector<2x512xf32>
    %271 = arith.addf %269, %270 : vector<2x512xf32>
    %cst_95 = arith.constant dense<0.000000e+00> : vector<2x512xf32>
    %272 = tpu.matmul %231, %28, %cst_95 {dimension_numbers = #tpu.dot_dimension_numbers<[1], [0], [0], [1], [0, 0, 1, 1], [], []>} : vector<2x128xf32>, vector<128x512xf32>, vector<2x512xf32> -> vector<2x512xf32>
    %273 = arith.addf %271, %272 : vector<2x512xf32>
    %274 = vector.broadcast %29 : vector<1x512xf32> to vector<2x512xf32>
    %275 = arith.addf %273, %274 : vector<2x512xf32>
    %276 = vector.extract_strided_slice %275 {offsets = [0, 0], sizes = [2, 128], strides = [1, 1]} : vector<2x512xf32> to vector<2x128xf32>
    %277 = arith.negf %276 : vector<2x128xf32>
    %278 = math.exp %277 : vector<2x128xf32>
    %cst_96 = arith.constant 1.000000e+00 : f32
    %279 = vector.broadcast %cst_96 : f32 to vector<2x128xf32>
    %280 = arith.addf %279, %278 : vector<2x128xf32>
    %281 = arith.divf %279, %280 : vector<2x128xf32>
    %282 = vector.extract_strided_slice %275 {offsets = [0, 128], sizes = [2, 128], strides = [1, 1]} : vector<2x512xf32> to vector<2x128xf32>
    %283 = arith.negf %282 : vector<2x128xf32>
    %284 = math.exp %283 : vector<2x128xf32>
    %cst_97 = arith.constant 1.000000e+00 : f32
    %285 = vector.broadcast %cst_97 : f32 to vector<2x128xf32>
    %286 = arith.addf %285, %284 : vector<2x128xf32>
    %287 = arith.divf %285, %286 : vector<2x128xf32>
    %288 = vector.extract_strided_slice %275 {offsets = [0, 256], sizes = [2, 128], strides = [1, 1]} : vector<2x512xf32> to vector<2x128xf32>
    %289 = math.tanh %288 : vector<2x128xf32>
    %290 = vector.extract_strided_slice %275 {offsets = [0, 384], sizes = [2, 128], strides = [1, 1]} : vector<2x512xf32> to vector<2x128xf32>
    %291 = arith.negf %290 : vector<2x128xf32>
    %292 = math.exp %291 : vector<2x128xf32>
    %cst_98 = arith.constant 1.000000e+00 : f32
    %293 = vector.broadcast %cst_98 : f32 to vector<2x128xf32>
    %294 = arith.addf %293, %292 : vector<2x128xf32>
    %295 = arith.divf %293, %294 : vector<2x128xf32>
    %296 = arith.mulf %287, %229 : vector<2x128xf32>
    %297 = arith.mulf %281, %289 : vector<2x128xf32>
    %298 = arith.addf %296, %297 : vector<2x128xf32>
    %299 = math.tanh %298 : vector<2x128xf32>
    %300 = arith.mulf %295, %299 : vector<2x128xf32>
    %cst_99 = arith.constant dense<0.000000e+00> : vector<2x128xf32>
    %301 = tpu.matmul %300, %30, %cst_99 {dimension_numbers = #tpu.dot_dimension_numbers<[1], [0], [0], [1], [0, 0, 1, 1], [], []>} : vector<2x128xf32>, vector<128x128xf32>, vector<2x128xf32> -> vector<2x128xf32>
    %302 = vector.broadcast %31 : vector<1x128xf32> to vector<2x128xf32>
    %303 = arith.addf %301, %302 : vector<2x128xf32>
    %304 = arith.index_cast %c3_i32 : i32 to index
    %c0_100 = arith.constant 0 : index
    %c0_101 = arith.constant 0 : index
    %305 = vector.load %arg18[%304, %c0_100, %c0_101] : memref<7x2x128xf32, #tpu.memory_space<vmem>>, vector<1x2x128xf32>
    %306 = vector.shape_cast %305 : vector<1x2x128xf32> to vector<2x128xf32>
    %307 = vector.shape_cast %303 : vector<2x128xf32> to vector<1x2x128xf32>
    tpu.vector_store %arg18[%304, %c0_100, %c0_101], %307 {strides = array<i32>} : memref<7x2x128xf32, #tpu.memory_space<vmem>>, vector<1x2x128xf32>,
    %c4_i32 = arith.constant 4 : i32
    %cst_102 = arith.constant dense<0.000000e+00> : vector<2x128xf32>
    %308 = tpu.matmul %300, %24, %cst_102 {dimension_numbers = #tpu.dot_dimension_numbers<[1], [0], [0], [1], [0, 0, 1, 1], [], []>} : vector<2x128xf32>, vector<128x128xf32>, vector<2x128xf32> -> vector<2x128xf32>
    %309 = vector.broadcast %25 : vector<1x128xf32> to vector<2x128xf32>
    %310 = arith.addf %308, %309 : vector<2x128xf32>
    %311 = vector.shape_cast %310 : vector<2x128xf32> to vector<2x1x128xf32>
    %312 = vector.broadcast %311 : vector<2x1x128xf32> to vector<2x16x128xf32>
    %313 = arith.addf %21, %312 : vector<2x16x128xf32>
    %314 = math.tanh %313 : vector<2x16x128xf32>
    %315 = vector.shape_cast %22 : vector<1x128xf32> to vector<1x1x128xf32>
    %316 = vector.broadcast %315 : vector<1x1x128xf32> to vector<2x16x128xf32>
    %317 = arith.mulf %314, %316 : vector<2x16x128xf32>
    %cst_103 = arith.constant dense<0.000000e+00> : vector<2x16xf32>
    %318 = vector.multi_reduction <add>, %317, %cst_103 [2] : vector<2x16x128xf32> to vector<2x16xf32>
    %319 = vector.broadcast %23 : vector<1x1xf32> to vector<2x16xf32>
    %320 = arith.addf %318, %319 : vector<2x16xf32>
    %cst_104 = arith.constant dense<0xFF800000> : vector<2xf32>
    %321 = vector.multi_reduction <maximumf>, %320, %cst_104 [1] : vector<2x16xf32> to vector<2xf32>
    %322 = vector.shape_cast %321 : vector<2xf32> to vector<2x1xf32>
    %323 = vector.broadcast %322 : vector<2x1xf32> to vector<2x16xf32>
    %324 = arith.subf %320, %323 : vector<2x16xf32>
    %325 = math.exp %324 : vector<2x16xf32>
    %cst_105 = arith.constant dense<0.000000e+00> : vector<2xf32>
    %326 = vector.multi_reduction <add>, %325, %cst_105 [1] : vector<2x16xf32> to vector<2xf32>
    %327 = vector.shape_cast %326 : vector<2xf32> to vector<2x1xf32>
    %328 = tpu.reciprocal %327 {approx = true} : vector<2x1xf32> -> vector<2x1xf32>
    %329 = vector.broadcast %328 : vector<2x1xf32> to vector<2x16xf32>
    %330 = arith.mulf %325, %329 : vector<2x16xf32>
    %331 = vector.shape_cast %330 : vector<2x16xf32> to vector<2x16x1xf32>
    %332 = vector.broadcast %331 : vector<2x16x1xf32> to vector<2x16x32xf32>
    %333 = arith.mulf %0, %332 : vector<2x16x32xf32>
    %cst_106 = arith.constant dense<0.000000e+00> : vector<2x32xf32>
    %334 = vector.multi_reduction <add>, %333, %cst_106 [1] : vector<2x16x32xf32> to vector<2x32xf32>
    %335 = arith.index_cast %c4_i32 : i32 to index
    %c0_107 = arith.constant 0 : index
    %c0_108 = arith.constant 0 : index
    %336 = vector.load %arg1[%335, %c0_107, %c0_108] : memref<7x2x32xf32, #tpu.memory_space<vmem>>, vector<1x2x32xf32>
    %337 = vector.shape_cast %336 : vector<1x2x32xf32> to vector<2x32xf32>
    %cst_109 = arith.constant dense<0.000000e+00> : vector<2x512xf32>
    %338 = tpu.matmul %337, %26, %cst_109 {dimension_numbers = #tpu.dot_dimension_numbers<[1], [0], [0], [1], [0, 0, 1, 1], [], []>} : vector<2x32xf32>, vector<32x512xf32>, vector<2x512xf32> -> vector<2x512xf32>
    %cst_110 = arith.constant dense<0.000000e+00> : vector<2x512xf32>
    %339 = tpu.matmul %334, %27, %cst_110 {dimension_numbers = #tpu.dot_dimension_numbers<[1], [0], [0], [1], [0, 0, 1, 1], [], []>} : vector<2x32xf32>, vector<32x512xf32>, vector<2x512xf32> -> vector<2x512xf32>
    %340 = arith.addf %338, %339 : vector<2x512xf32>
    %cst_111 = arith.constant dense<0.000000e+00> : vector<2x512xf32>
    %341 = tpu.matmul %300, %28, %cst_111 {dimension_numbers = #tpu.dot_dimension_numbers<[1], [0], [0], [1], [0, 0, 1, 1], [], []>} : vector<2x128xf32>, vector<128x512xf32>, vector<2x512xf32> -> vector<2x512xf32>
    %342 = arith.addf %340, %341 : vector<2x512xf32>
    %343 = vector.broadcast %29 : vector<1x512xf32> to vector<2x512xf32>
    %344 = arith.addf %342, %343 : vector<2x512xf32>
    %345 = vector.extract_strided_slice %344 {offsets = [0, 0], sizes = [2, 128], strides = [1, 1]} : vector<2x512xf32> to vector<2x128xf32>
    %346 = arith.negf %345 : vector<2x128xf32>
    %347 = math.exp %346 : vector<2x128xf32>
    %cst_112 = arith.constant 1.000000e+00 : f32
    %348 = vector.broadcast %cst_112 : f32 to vector<2x128xf32>
    %349 = arith.addf %348, %347 : vector<2x128xf32>
    %350 = arith.divf %348, %349 : vector<2x128xf32>
    %351 = vector.extract_strided_slice %344 {offsets = [0, 128], sizes = [2, 128], strides = [1, 1]} : vector<2x512xf32> to vector<2x128xf32>
    %352 = arith.negf %351 : vector<2x128xf32>
    %353 = math.exp %352 : vector<2x128xf32>
    %cst_113 = arith.constant 1.000000e+00 : f32
    %354 = vector.broadcast %cst_113 : f32 to vector<2x128xf32>
    %355 = arith.addf %354, %353 : vector<2x128xf32>
    %356 = arith.divf %354, %355 : vector<2x128xf32>
    %357 = vector.extract_strided_slice %344 {offsets = [0, 256], sizes = [2, 128], strides = [1, 1]} : vector<2x512xf32> to vector<2x128xf32>
    %358 = math.tanh %357 : vector<2x128xf32>
    %359 = vector.extract_strided_slice %344 {offsets = [0, 384], sizes = [2, 128], strides = [1, 1]} : vector<2x512xf32> to vector<2x128xf32>
    %360 = arith.negf %359 : vector<2x128xf32>
    %361 = math.exp %360 : vector<2x128xf32>
    %cst_114 = arith.constant 1.000000e+00 : f32
    %362 = vector.broadcast %cst_114 : f32 to vector<2x128xf32>
    %363 = arith.addf %362, %361 : vector<2x128xf32>
    %364 = arith.divf %362, %363 : vector<2x128xf32>
    %365 = arith.mulf %356, %298 : vector<2x128xf32>
    %366 = arith.mulf %350, %358 : vector<2x128xf32>
    %367 = arith.addf %365, %366 : vector<2x128xf32>
    %368 = math.tanh %367 : vector<2x128xf32>
    %369 = arith.mulf %364, %368 : vector<2x128xf32>
    %cst_115 = arith.constant dense<0.000000e+00> : vector<2x128xf32>
    %370 = tpu.matmul %369, %30, %cst_115 {dimension_numbers = #tpu.dot_dimension_numbers<[1], [0], [0], [1], [0, 0, 1, 1], [], []>} : vector<2x128xf32>, vector<128x128xf32>, vector<2x128xf32> -> vector<2x128xf32>
    %371 = vector.broadcast %31 : vector<1x128xf32> to vector<2x128xf32>
    %372 = arith.addf %370, %371 : vector<2x128xf32>
    %373 = arith.index_cast %c4_i32 : i32 to index
    %c0_116 = arith.constant 0 : index
    %c0_117 = arith.constant 0 : index
    %374 = vector.load %arg18[%373, %c0_116, %c0_117] : memref<7x2x128xf32, #tpu.memory_space<vmem>>, vector<1x2x128xf32>
    %375 = vector.shape_cast %374 : vector<1x2x128xf32> to vector<2x128xf32>
    %376 = vector.shape_cast %372 : vector<2x128xf32> to vector<1x2x128xf32>
    tpu.vector_store %arg18[%373, %c0_116, %c0_117], %376 {strides = array<i32>} : memref<7x2x128xf32, #tpu.memory_space<vmem>>, vector<1x2x128xf32>,
    %c5_i32 = arith.constant 5 : i32
    %cst_118 = arith.constant dense<0.000000e+00> : vector<2x128xf32>
    %377 = tpu.matmul %369, %24, %cst_118 {dimension_numbers = #tpu.dot_dimension_numbers<[1], [0], [0], [1], [0, 0, 1, 1], [], []>} : vector<2x128xf32>, vector<128x128xf32>, vector<2x128xf32> -> vector<2x128xf32>
    %378 = vector.broadcast %25 : vector<1x128xf32> to vector<2x128xf32>
    %379 = arith.addf %377, %378 : vector<2x128xf32>
    %380 = vector.shape_cast %379 : vector<2x128xf32> to vector<2x1x128xf32>
    %381 = vector.broadcast %380 : vector<2x1x128xf32> to vector<2x16x128xf32>
    %382 = arith.addf %21, %381 : vector<2x16x128xf32>
    %383 = math.tanh %382 : vector<2x16x128xf32>
    %384 = vector.shape_cast %22 : vector<1x128xf32> to vector<1x1x128xf32>
    %385 = vector.broadcast %384 : vector<1x1x128xf32> to vector<2x16x128xf32>
    %386 = arith.mulf %383, %385 : vector<2x16x128xf32>
    %cst_119 = arith.constant dense<0.000000e+00> : vector<2x16xf32>
    %387 = vector.multi_reduction <add>, %386, %cst_119 [2] : vector<2x16x128xf32> to vector<2x16xf32>
    %388 = vector.broadcast %23 : vector<1x1xf32> to vector<2x16xf32>
    %389 = arith.addf %387, %388 : vector<2x16xf32>
    %cst_120 = arith.constant dense<0xFF800000> : vector<2xf32>
    %390 = vector.multi_reduction <maximumf>, %389, %cst_120 [1] : vector<2x16xf32> to vector<2xf32>
    %391 = vector.shape_cast %390 : vector<2xf32> to vector<2x1xf32>
    %392 = vector.broadcast %391 : vector<2x1xf32> to vector<2x16xf32>
    %393 = arith.subf %389, %392 : vector<2x16xf32>
    %394 = math.exp %393 : vector<2x16xf32>
    %cst_121 = arith.constant dense<0.000000e+00> : vector<2xf32>
    %395 = vector.multi_reduction <add>, %394, %cst_121 [1] : vector<2x16xf32> to vector<2xf32>
    %396 = vector.shape_cast %395 : vector<2xf32> to vector<2x1xf32>
    %397 = tpu.reciprocal %396 {approx = true} : vector<2x1xf32> -> vector<2x1xf32>
    %398 = vector.broadcast %397 : vector<2x1xf32> to vector<2x16xf32>
    %399 = arith.mulf %394, %398 : vector<2x16xf32>
    %400 = vector.shape_cast %399 : vector<2x16xf32> to vector<2x16x1xf32>
    %401 = vector.broadcast %400 : vector<2x16x1xf32> to vector<2x16x32xf32>
    %402 = arith.mulf %0, %401 : vector<2x16x32xf32>
    %cst_122 = arith.constant dense<0.000000e+00> : vector<2x32xf32>
    %403 = vector.multi_reduction <add>, %402, %cst_122 [1] : vector<2x16x32xf32> to vector<2x32xf32>
    %404 = arith.index_cast %c5_i32 : i32 to index
    %c0_123 = arith.constant 0 : index
    %c0_124 = arith.constant 0 : index
    %405 = vector.load %arg1[%404, %c0_123, %c0_124] : memref<7x2x32xf32, #tpu.memory_space<vmem>>, vector<1x2x32xf32>
    %406 = vector.shape_cast %405 : vector<1x2x32xf32> to vector<2x32xf32>
    %cst_125 = arith.constant dense<0.000000e+00> : vector<2x512xf32>
    %407 = tpu.matmul %406, %26, %cst_125 {dimension_numbers = #tpu.dot_dimension_numbers<[1], [0], [0], [1], [0, 0, 1, 1], [], []>} : vector<2x32xf32>, vector<32x512xf32>, vector<2x512xf32> -> vector<2x512xf32>
    %cst_126 = arith.constant dense<0.000000e+00> : vector<2x512xf32>
    %408 = tpu.matmul %403, %27, %cst_126 {dimension_numbers = #tpu.dot_dimension_numbers<[1], [0], [0], [1], [0, 0, 1, 1], [], []>} : vector<2x32xf32>, vector<32x512xf32>, vector<2x512xf32> -> vector<2x512xf32>
    %409 = arith.addf %407, %408 : vector<2x512xf32>
    %cst_127 = arith.constant dense<0.000000e+00> : vector<2x512xf32>
    %410 = tpu.matmul %369, %28, %cst_127 {dimension_numbers = #tpu.dot_dimension_numbers<[1], [0], [0], [1], [0, 0, 1, 1], [], []>} : vector<2x128xf32>, vector<128x512xf32>, vector<2x512xf32> -> vector<2x512xf32>
    %411 = arith.addf %409, %410 : vector<2x512xf32>
    %412 = vector.broadcast %29 : vector<1x512xf32> to vector<2x512xf32>
    %413 = arith.addf %411, %412 : vector<2x512xf32>
    %414 = vector.extract_strided_slice %413 {offsets = [0, 0], sizes = [2, 128], strides = [1, 1]} : vector<2x512xf32> to vector<2x128xf32>
    %415 = arith.negf %414 : vector<2x128xf32>
    %416 = math.exp %415 : vector<2x128xf32>
    %cst_128 = arith.constant 1.000000e+00 : f32
    %417 = vector.broadcast %cst_128 : f32 to vector<2x128xf32>
    %418 = arith.addf %417, %416 : vector<2x128xf32>
    %419 = arith.divf %417, %418 : vector<2x128xf32>
    %420 = vector.extract_strided_slice %413 {offsets = [0, 128], sizes = [2, 128], strides = [1, 1]} : vector<2x512xf32> to vector<2x128xf32>
    %421 = arith.negf %420 : vector<2x128xf32>
    %422 = math.exp %421 : vector<2x128xf32>
    %cst_129 = arith.constant 1.000000e+00 : f32
    %423 = vector.broadcast %cst_129 : f32 to vector<2x128xf32>
    %424 = arith.addf %423, %422 : vector<2x128xf32>
    %425 = arith.divf %423, %424 : vector<2x128xf32>
    %426 = vector.extract_strided_slice %413 {offsets = [0, 256], sizes = [2, 128], strides = [1, 1]} : vector<2x512xf32> to vector<2x128xf32>
    %427 = math.tanh %426 : vector<2x128xf32>
    %428 = vector.extract_strided_slice %413 {offsets = [0, 384], sizes = [2, 128], strides = [1, 1]} : vector<2x512xf32> to vector<2x128xf32>
    %429 = arith.negf %428 : vector<2x128xf32>
    %430 = math.exp %429 : vector<2x128xf32>
    %cst_130 = arith.constant 1.000000e+00 : f32
    %431 = vector.broadcast %cst_130 : f32 to vector<2x128xf32>
    %432 = arith.addf %431, %430 : vector<2x128xf32>
    %433 = arith.divf %431, %432 : vector<2x128xf32>
    %434 = arith.mulf %425, %367 : vector<2x128xf32>
    %435 = arith.mulf %419, %427 : vector<2x128xf32>
    %436 = arith.addf %434, %435 : vector<2x128xf32>
    %437 = math.tanh %436 : vector<2x128xf32>
    %438 = arith.mulf %433, %437 : vector<2x128xf32>
    %cst_131 = arith.constant dense<0.000000e+00> : vector<2x128xf32>
    %439 = tpu.matmul %438, %30, %cst_131 {dimension_numbers = #tpu.dot_dimension_numbers<[1], [0], [0], [1], [0, 0, 1, 1], [], []>} : vector<2x128xf32>, vector<128x128xf32>, vector<2x128xf32> -> vector<2x128xf32>
    %440 = vector.broadcast %31 : vector<1x128xf32> to vector<2x128xf32>
    %441 = arith.addf %439, %440 : vector<2x128xf32>
    %442 = arith.index_cast %c5_i32 : i32 to index
    %c0_132 = arith.constant 0 : index
    %c0_133 = arith.constant 0 : index
    %443 = vector.load %arg18[%442, %c0_132, %c0_133] : memref<7x2x128xf32, #tpu.memory_space<vmem>>, vector<1x2x128xf32>
    %444 = vector.shape_cast %443 : vector<1x2x128xf32> to vector<2x128xf32>
    %445 = vector.shape_cast %441 : vector<2x128xf32> to vector<1x2x128xf32>
    tpu.vector_store %arg18[%442, %c0_132, %c0_133], %445 {strides = array<i32>} : memref<7x2x128xf32, #tpu.memory_space<vmem>>, vector<1x2x128xf32>,
    %c6_i32 = arith.constant 6 : i32
    %cst_134 = arith.constant dense<0.000000e+00> : vector<2x128xf32>
    %446 = tpu.matmul %438, %24, %cst_134 {dimension_numbers = #tpu.dot_dimension_numbers<[1], [0], [0], [1], [0, 0, 1, 1], [], []>} : vector<2x128xf32>, vector<128x128xf32>, vector<2x128xf32> -> vector<2x128xf32>
    %447 = vector.broadcast %25 : vector<1x128xf32> to vector<2x128xf32>
    %448 = arith.addf %446, %447 : vector<2x128xf32>
    %449 = vector.shape_cast %448 : vector<2x128xf32> to vector<2x1x128xf32>
    %450 = vector.broadcast %449 : vector<2x1x128xf32> to vector<2x16x128xf32>
    %451 = arith.addf %21, %450 : vector<2x16x128xf32>
    %452 = math.tanh %451 : vector<2x16x128xf32>
    %453 = vector.shape_cast %22 : vector<1x128xf32> to vector<1x1x128xf32>
    %454 = vector.broadcast %453 : vector<1x1x128xf32> to vector<2x16x128xf32>
    %455 = arith.mulf %452, %454 : vector<2x16x128xf32>
    %cst_135 = arith.constant dense<0.000000e+00> : vector<2x16xf32>
    %456 = vector.multi_reduction <add>, %455, %cst_135 [2] : vector<2x16x128xf32> to vector<2x16xf32>
    %457 = vector.broadcast %23 : vector<1x1xf32> to vector<2x16xf32>
    %458 = arith.addf %456, %457 : vector<2x16xf32>
    %cst_136 = arith.constant dense<0xFF800000> : vector<2xf32>
    %459 = vector.multi_reduction <maximumf>, %458, %cst_136 [1] : vector<2x16xf32> to vector<2xf32>
    %460 = vector.shape_cast %459 : vector<2xf32> to vector<2x1xf32>
    %461 = vector.broadcast %460 : vector<2x1xf32> to vector<2x16xf32>
    %462 = arith.subf %458, %461 : vector<2x16xf32>
    %463 = math.exp %462 : vector<2x16xf32>
    %cst_137 = arith.constant dense<0.000000e+00> : vector<2xf32>
    %464 = vector.multi_reduction <add>, %463, %cst_137 [1] : vector<2x16xf32> to vector<2xf32>
    %465 = vector.shape_cast %464 : vector<2xf32> to vector<2x1xf32>
    %466 = tpu.reciprocal %465 {approx = true} : vector<2x1xf32> -> vector<2x1xf32>
    %467 = vector.broadcast %466 : vector<2x1xf32> to vector<2x16xf32>
    %468 = arith.mulf %463, %467 : vector<2x16xf32>
    %469 = vector.shape_cast %468 : vector<2x16xf32> to vector<2x16x1xf32>
    %470 = vector.broadcast %469 : vector<2x16x1xf32> to vector<2x16x32xf32>
    %471 = arith.mulf %0, %470 : vector<2x16x32xf32>
    %cst_138 = arith.constant dense<0.000000e+00> : vector<2x32xf32>
    %472 = vector.multi_reduction <add>, %471, %cst_138 [1] : vector<2x16x32xf32> to vector<2x32xf32>
    %473 = arith.index_cast %c6_i32 : i32 to index
    %c0_139 = arith.constant 0 : index
    %c0_140 = arith.constant 0 : index
    %474 = vector.load %arg1[%473, %c0_139, %c0_140] : memref<7x2x32xf32, #tpu.memory_space<vmem>>, vector<1x2x32xf32>
    %475 = vector.shape_cast %474 : vector<1x2x32xf32> to vector<2x32xf32>
    %cst_141 = arith.constant dense<0.000000e+00> : vector<2x512xf32>
    %476 = tpu.matmul %475, %26, %cst_141 {dimension_numbers = #tpu.dot_dimension_numbers<[1], [0], [0], [1], [0, 0, 1, 1], [], []>} : vector<2x32xf32>, vector<32x512xf32>, vector<2x512xf32> -> vector<2x512xf32>
    %cst_142 = arith.constant dense<0.000000e+00> : vector<2x512xf32>
    %477 = tpu.matmul %472, %27, %cst_142 {dimension_numbers = #tpu.dot_dimension_numbers<[1], [0], [0], [1], [0, 0, 1, 1], [], []>} : vector<2x32xf32>, vector<32x512xf32>, vector<2x512xf32> -> vector<2x512xf32>
    %478 = arith.addf %476, %477 : vector<2x512xf32>
    %cst_143 = arith.constant dense<0.000000e+00> : vector<2x512xf32>
    %479 = tpu.matmul %438, %28, %cst_143 {dimension_numbers = #tpu.dot_dimension_numbers<[1], [0], [0], [1], [0, 0, 1, 1], [], []>} : vector<2x128xf32>, vector<128x512xf32>, vector<2x512xf32> -> vector<2x512xf32>
    %480 = arith.addf %478, %479 : vector<2x512xf32>
    %481 = vector.broadcast %29 : vector<1x512xf32> to vector<2x512xf32>
    %482 = arith.addf %480, %481 : vector<2x512xf32>
    %483 = vector.extract_strided_slice %482 {offsets = [0, 0], sizes = [2, 128], strides = [1, 1]} : vector<2x512xf32> to vector<2x128xf32>
    %484 = arith.negf %483 : vector<2x128xf32>
    %485 = math.exp %484 : vector<2x128xf32>
    %cst_144 = arith.constant 1.000000e+00 : f32
    %486 = vector.broadcast %cst_144 : f32 to vector<2x128xf32>
    %487 = arith.addf %486, %485 : vector<2x128xf32>
    %488 = arith.divf %486, %487 : vector<2x128xf32>
    %489 = vector.extract_strided_slice %482 {offsets = [0, 128], sizes = [2, 128], strides = [1, 1]} : vector<2x512xf32> to vector<2x128xf32>
    %490 = arith.negf %489 : vector<2x128xf32>
    %491 = math.exp %490 : vector<2x128xf32>
    %cst_145 = arith.constant 1.000000e+00 : f32
    %492 = vector.broadcast %cst_145 : f32 to vector<2x128xf32>
    %493 = arith.addf %492, %491 : vector<2x128xf32>
    %494 = arith.divf %492, %493 : vector<2x128xf32>
    %495 = vector.extract_strided_slice %482 {offsets = [0, 256], sizes = [2, 128], strides = [1, 1]} : vector<2x512xf32> to vector<2x128xf32>
    %496 = math.tanh %495 : vector<2x128xf32>
    %497 = vector.extract_strided_slice %482 {offsets = [0, 384], sizes = [2, 128], strides = [1, 1]} : vector<2x512xf32> to vector<2x128xf32>
    %498 = arith.negf %497 : vector<2x128xf32>
    %499 = math.exp %498 : vector<2x128xf32>
    %cst_146 = arith.constant 1.000000e+00 : f32
    %500 = vector.broadcast %cst_146 : f32 to vector<2x128xf32>
    %501 = arith.addf %500, %499 : vector<2x128xf32>
    %502 = arith.divf %500, %501 : vector<2x128xf32>
    %503 = arith.mulf %494, %436 : vector<2x128xf32>
    %504 = arith.mulf %488, %496 : vector<2x128xf32>
    %505 = arith.addf %503, %504 : vector<2x128xf32>
    %506 = math.tanh %505 : vector<2x128xf32>
    %507 = arith.mulf %502, %506 : vector<2x128xf32>
    %cst_147 = arith.constant dense<0.000000e+00> : vector<2x128xf32>
    %508 = tpu.matmul %507, %30, %cst_147 {dimension_numbers = #tpu.dot_dimension_numbers<[1], [0], [0], [1], [0, 0, 1, 1], [], []>} : vector<2x128xf32>, vector<128x128xf32>, vector<2x128xf32> -> vector<2x128xf32>
    %509 = vector.broadcast %31 : vector<1x128xf32> to vector<2x128xf32>
    %510 = arith.addf %508, %509 : vector<2x128xf32>
    %511 = arith.index_cast %c6_i32 : i32 to index
    %c0_148 = arith.constant 0 : index
    %c0_149 = arith.constant 0 : index
    %512 = vector.load %arg18[%511, %c0_148, %c0_149] : memref<7x2x128xf32, #tpu.memory_space<vmem>>, vector<1x2x128xf32>
    %513 = vector.shape_cast %512 : vector<1x2x128xf32> to vector<2x128xf32>
    %514 = vector.shape_cast %510 : vector<2x128xf32> to vector<1x2x128xf32>
    tpu.vector_store %arg18[%511, %c0_148, %c0_149], %514 {strides = array<i32>} : memref<7x2x128xf32, #tpu.memory_space<vmem>>, vector<1x2x128xf32>,
    %c7_i32 = arith.constant 7 : i32
    return
  }
}

</mosaic_0001>

<llo_original>
// kernel: decoder_rnn_forward.1
$region0: #{decoder_rnn_forward.1}
  #allocation0 [shape = 'u32[]', space=smem, size = 0x4, offset = 0x4, fixed_abs, tag = 'smem constant byte address 0x4 - core index']
  #allocation1 [shape = 'u32[72,128]{1,0:T(1,128)}', space=vmem, size = 0x9000, scoped, tag = 'internal scratch']
  #allocation2 [shape = 'f32[1,1]{1,0:T(1,128)S(1)}', space=vmem, size = 0x200, scoped, tag = 'scoped memory for decoder_rnn_forward.1']
  %s0 = inlined_call_operand.vmem [shape: f32[2,16,32], index: 0, kind: input, shape index: {}]
  %s1 = inlined_call_operand.vmem [shape: f32[7,2,32], index: 1, kind: input, shape index: {}]
  %s2 = inlined_call_operand.vmem [shape: f32[32,128], index: 2, kind: input, shape index: {}]
  %s3 = inlined_call_operand.vmem [shape: f32[1,128], index: 3, kind: input, shape index: {}]
  %s4 = inlined_call_operand.vmem [shape: f32[128,128], index: 4, kind: input, shape index: {}]
  %s5 = inlined_call_operand.vmem [shape: f32[1,128], index: 5, kind: input, shape index: {}]
  %s6 = inlined_call_operand.vmem [shape: f32[1,128], index: 6, kind: input, shape index: {}]
  %s7 = inlined_call_operand.<no memory space> [shape: f32[1,1], index: 7, kind: input, shape index: {}]
  %s8 = inlined_call_operand.vmem [shape: f32[32,128], index: 8, kind: input, shape index: {}]
  %s9 = inlined_call_operand.vmem [shape: f32[1,128], index: 9, kind: input, shape index: {}]
  %s10 = inlined_call_operand.vmem [shape: f32[32,128], index: 10, kind: input, shape index: {}]
  %s11 = inlined_call_operand.vmem [shape: f32[1,128], index: 11, kind: input, shape index: {}]
  %s12 = inlined_call_operand.vmem [shape: f32[32,512], index: 12, kind: input, shape index: {}]
  %s13 = inlined_call_operand.vmem [shape: f32[32,512], index: 13, kind: input, shape index: {}]
  %s14 = inlined_call_operand.vmem [shape: f32[128,512], index: 14, kind: input, shape index: {}]
  %s15 = inlined_call_operand.vmem [shape: f32[1,512], index: 15, kind: input, shape index: {}]
  %s16 = inlined_call_operand.vmem [shape: f32[128,128], index: 16, kind: input, shape index: {}]
  %s17 = inlined_call_operand.vmem [shape: f32[1,128], index: 17, kind: input, shape index: {}]
  %s18 = inlined_call_operand.vmem [shape: f32[7,2,128], index: 18, kind: output, shape index: {}]
  %s19 = sld [smem:[#allocation0]]
  $region82: #{decoder_rnn_forward.1} parent=0
    _
  %s21 = ssub.s32 1, %s19
  %s22 = scalar_select 0, %s21, %s19
  %v23 = vstv %s7
  %24 = vst [vmem:[#allocation2] sm:$0x1] %v23
  // Predicated region
  $region2: #{decoder_rnn_forward.1} parent=0 // pred_check
    _
  $region3: #{decoder_rnn_forward.1} parent=0 // pred_check_branch
    %26 = sbr.rel (0) target = $region5
  $region4: #{decoder_rnn_forward.1} parent=0 // pred_region
    _
  $region5: #{decoder_rnn_forward.1} parent=0 // pred_fallthru
    _
  // Predicated region
  $region6: #{decoder_rnn_forward.1} parent=0 // pred_check
    _
  $region7: #{decoder_rnn_forward.1} parent=0 // pred_check_branch
    %28 = sbr.rel (0) target = $region9
  $region8: #{decoder_rnn_forward.1} parent=0 // pred_region
    _
  $region9: #{decoder_rnn_forward.1} parent=0 // pred_fallthru
    _
  // Predicated region
  $region10: #{decoder_rnn_forward.1} parent=0 // pred_check
    _
  $region11: #{decoder_rnn_forward.1} parent=0 // pred_check_branch
    %30 = sbr.rel (0) target = $region13
  $region12: #{decoder_rnn_forward.1} parent=0 // pred_region
    _
  $region13: #{decoder_rnn_forward.1} parent=0 // pred_fallthru
    _
  // Predicated region
  $region14: #{decoder_rnn_forward.1} parent=0 // pred_check
    _
  $region15: #{decoder_rnn_forward.1} parent=0 // pred_check_branch
    %32 = sbr.rel (0) target = $region17
  $region16: #{decoder_rnn_forward.1} parent=0 // pred_region
    _
  $region17: #{decoder_rnn_forward.1} parent=0 // pred_fallthru
    _
  // Predicated region
  $region18: #{decoder_rnn_forward.1} parent=0 // pred_check
    _
  $region19: #{decoder_rnn_forward.1} parent=0 // pred_check_branch
    %34 = sbr.rel (0) target = $region21
  $region20: #{decoder_rnn_forward.1} parent=0 // pred_region
    _
  $region21: #{decoder_rnn_forward.1} parent=0 // pred_fallthru
    _
  // Predicated region
  $region22: #{decoder_rnn_forward.1} parent=0 // pred_check
    _
  $region23: #{decoder_rnn_forward.1} parent=0 // pred_check_branch
    %36 = sbr.rel (0) target = $region25
  $region24: #{decoder_rnn_forward.1} parent=0 // pred_region
    _
  $region25: #{decoder_rnn_forward.1} parent=0 // pred_fallthru
    _
  // Predicated region
  $region26: #{decoder_rnn_forward.1} parent=0 // pred_check
    _
  $region27: #{decoder_rnn_forward.1} parent=0 // pred_check_branch
    %38 = sbr.rel (0) target = $region29
  $region28: #{decoder_rnn_forward.1} parent=0 // pred_region
    _
  $region29: #{decoder_rnn_forward.1} parent=0 // pred_fallthru
    _
  // Predicated region
  $region30: #{decoder_rnn_forward.1} parent=0 // pred_check
    _
  $region31: #{decoder_rnn_forward.1} parent=0 // pred_check_branch
    %40 = sbr.rel (0) target = $region33
  $region32: #{decoder_rnn_forward.1} parent=0 // pred_region
    _
  $region33: #{decoder_rnn_forward.1} parent=0 // pred_fallthru
    _
  // Predicated region
  $region34: #{decoder_rnn_forward.1} parent=0 // pred_check
    _
  $region35: #{decoder_rnn_forward.1} parent=0 // pred_check_branch
    %42 = sbr.rel (0) target = $region37
  $region36: #{decoder_rnn_forward.1} parent=0 // pred_region
    _
  $region37: #{decoder_rnn_forward.1} parent=0 // pred_fallthru
    _
  // Predicated region
  $region38: #{decoder_rnn_forward.1} parent=0 // pred_check
    _
  $region39: #{decoder_rnn_forward.1} parent=0 // pred_check_branch
    %44 = sbr.rel (0) target = $region41
  $region40: #{decoder_rnn_forward.1} parent=0 // pred_region
    _
  $region41: #{decoder_rnn_forward.1} parent=0 // pred_fallthru
    _
  // Predicated region
  $region42: #{decoder_rnn_forward.1} parent=0 // pred_check
    _
  $region43: #{decoder_rnn_forward.1} parent=0 // pred_check_branch
    %46 = sbr.rel (0) target = $region45
  $region44: #{decoder_rnn_forward.1} parent=0 // pred_region
    _
  $region45: #{decoder_rnn_forward.1} parent=0 // pred_fallthru
    _
  // Predicated region
  $region46: #{decoder_rnn_forward.1} parent=0 // pred_check
    _
  $region47: #{decoder_rnn_forward.1} parent=0 // pred_check_branch
    %48 = sbr.rel (0) target = $region49
  $region48: #{decoder_rnn_forward.1} parent=0 // pred_region
    _
  $region49: #{decoder_rnn_forward.1} parent=0 // pred_fallthru
    _
  // Predicated region
  $region50: #{decoder_rnn_forward.1} parent=0 // pred_check
    _
  $region51: #{decoder_rnn_forward.1} parent=0 // pred_check_branch
    %50 = sbr.rel (0) target = $region53
  $region52: #{decoder_rnn_forward.1} parent=0 // pred_region
    _
  $region53: #{decoder_rnn_forward.1} parent=0 // pred_fallthru
    _
  // Predicated region
  $region54: #{decoder_rnn_forward.1} parent=0 // pred_check
    _
  $region55: #{decoder_rnn_forward.1} parent=0 // pred_check_branch
    %52 = sbr.rel (0) target = $region57
  $region56: #{decoder_rnn_forward.1} parent=0 // pred_region
    _
  $region57: #{decoder_rnn_forward.1} parent=0 // pred_fallthru
    _
  // Predicated region
  $region58: #{decoder_rnn_forward.1} parent=0 // pred_check
    _
  $region59: #{decoder_rnn_forward.1} parent=0 // pred_check_branch
    %54 = sbr.rel (0) target = $region61
  $region60: #{decoder_rnn_forward.1} parent=0 // pred_region
    _
  $region61: #{decoder_rnn_forward.1} parent=0 // pred_fallthru
    _
  // Predicated region
  $region62: #{decoder_rnn_forward.1} parent=0 // pred_check
    _
  $region63: #{decoder_rnn_forward.1} parent=0 // pred_check_branch
    %56 = sbr.rel (0) target = $region65
  $region64: #{decoder_rnn_forward.1} parent=0 // pred_region
    _
  $region65: #{decoder_rnn_forward.1} parent=0 // pred_fallthru
    _
  // Predicated region
  $region66: #{decoder_rnn_forward.1} parent=0 // pred_check
    _
  $region67: #{decoder_rnn_forward.1} parent=0 // pred_check_branch
    %58 = sbr.rel (0) target = $region69
  $region68: #{decoder_rnn_forward.1} parent=0 // pred_region
    _
  $region69: #{decoder_rnn_forward.1} parent=0 // pred_fallthru
    _
  // Predicated region
  $region70: #{decoder_rnn_forward.1} parent=0 // pred_check
    _
  $region71: #{decoder_rnn_forward.1} parent=0 // pred_check_branch
    %60 = sbr.rel (0) target = $region73
  $region72: #{decoder_rnn_forward.1} parent=0 // pred_region
    _
  $region73: #{decoder_rnn_forward.1} parent=0 // pred_fallthru
    _
  %v61 = vld [vmem:[%s0] sm:$0xff]
  %v62 = vld [vmem:[%s0 + $0x8] sm:$0xff]
  %v63 = vld [vmem:[%s0 + $0x10] sm:$0xff]
  %v64 = vld [vmem:[%s0 + $0x18] sm:$0xff]
  %vm65 = vcmask 261120
  %v66 = vsel %vm65, %v61, 0.0
  %v67 = vsel %vm65, %v62, 0.0
  %v68 = vadd.f32 %v66, %v67
  %v69 = vrot.slane %v68, 4
  %v70 = vadd.f32 %v68, %v69
  %v71 = vrot.slane %v70, 2
  %v72 = vadd.f32 %v70, %v71
  %v73 = vrot.slane %v72, 1
  %v74 = vadd.f32 %v72, %v73
  %v75 = vsel %vm65, %v63, 0.0
  %v76 = vsel %vm65, %v64, 0.0
  %v77 = vadd.f32 %v75, %v76
  %v78 = vrot.slane %v77, 4
  %v79 = vadd.f32 %v77, %v78
  %v80 = vrot.slane %v79, 2
  %v81 = vadd.f32 %v79, %v80
  %v82 = vrot.slane %v81, 1
  %v83 = vadd.f32 %v81, %v82
  %v84 = vrcp.pop 16.0
  %v85 = vmul.f32 16.0, %v84
  %v86 = vsub.f32 1.0, %v85
  %v87 = vmul.f32 %v84, %v86
  %v88 = vadd.f32 %v84, %v87
  %vm89 = vweird.f32 %v84
  %v90 = vsel %vm89, %v84, %v88
  %v91 = vmul.f32 %v74, %v90
  %v92 = vmul.f32 %v83, %v90
  %v93 = vld [vmem:[%s8] sm:$0xff]
  %v94 = vld [vmem:[%s8 + $0x8] sm:$0xff]
  %v95 = vld [vmem:[%s8 + $0x10] sm:$0xff]
  %v96 = vld [vmem:[%s8 + $0x18] sm:$0xff]
  %v97 = vld [vmem:[%s9] sm:$0x1]
  %v99 = vperm.slane %v97, 0
  %vm103 = vcmask 1041409
  %v104 = vsel %vm103, %v92, %v91
  %v105 = vsel %vm65, %v104, 0
  %107 = vmatpush.msra.mxu0 0.0
  %108 = vmatpush.msra.mxu0 0.0
  %109 = vmatpush.msra.mxu0 0.0
  %110 = vmatpush.msra.mxu0 0.0
  %111 = vmatpush.msra.mxu0 0.0
  %112 = vmatpush.msra.mxu0 0.0
  %113 = vmatpush.msra.mxu0 0.0
  %114 = vmatpush.msra.mxu0 0.0
  %115 = vmatpush.msra.mxu0 0.0
  %116 = vmatpush.msra.mxu0 0.0
  %117 = vmatpush.msra.mxu0 0.0
  %118 = vmatpush.msra.mxu0 0.0
  %119 = vmatpush.msra.mxu0 %v96
  %120 = vmatpush.msra.mxu0 %v95
  %121 = vmatpush.msra.mxu0 %v94
  %122 = vmatpush.msra.mxu0 %v93
  %123 = vmatmul.f32.gmra.mxu0 %v105
  %v124 = vpop.f32.mrf.mxu0
  %v125 = vadd.f32 %v99, %v124
  %126 = vdwg.mxu0
  %v127 = vld [vmem:[%s10] sm:$0xff]
  %v128 = vld [vmem:[%s10 + $0x8] sm:$0xff]
  %v129 = vld [vmem:[%s10 + $0x10] sm:$0xff]
  %v130 = vld [vmem:[%s10 + $0x18] sm:$0xff]
  %v131 = vld [vmem:[%s11] sm:$0x1]
  %v133 = vperm.slane %v131, 0
  %135 = vmatpush.msra.mxu0 0.0
  %136 = vmatpush.msra.mxu0 0.0
  %137 = vmatpush.msra.mxu0 0.0
  %138 = vmatpush.msra.mxu0 0.0
  %139 = vmatpush.msra.mxu0 0.0
  %140 = vmatpush.msra.mxu0 0.0
  %141 = vmatpush.msra.mxu0 0.0
  %142 = vmatpush.msra.mxu0 0.0
  %143 = vmatpush.msra.mxu0 0.0
  %144 = vmatpush.msra.mxu0 0.0
  %145 = vmatpush.msra.mxu0 0.0
  %146 = vmatpush.msra.mxu0 0.0
  %147 = vmatpush.msra.mxu0 %v130
  %148 = vmatpush.msra.mxu0 %v129
  %149 = vmatpush.msra.mxu0 %v128
  %150 = vmatpush.msra.mxu0 %v127
  %151 = vmatmul.f32.gmra.mxu0 %v105
  %v152 = vpop.f32.mrf.mxu0
  %v153 = vadd.f32 %v133, %v152
  %154 = vdwg.mxu0
  %v155 = vld [vmem:[%s2] sm:$0xff]
  %v156 = vld [vmem:[%s2 + $0x8] sm:$0xff]
  %v157 = vld [vmem:[%s2 + $0x10] sm:$0xff]
  %v158 = vld [vmem:[%s2 + $0x18] sm:$0xff]
  %v160 = vsel %vm65, %v61, 0
  %v163 = vsel %vm65, %v62, 0
  %v166 = vsel %vm65, %v63, 0
  %v169 = vsel %vm65, %v64, 0
  %171 = vmatpush.msra.mxu0 0.0
  %172 = vmatpush.msra.mxu0 0.0
  %173 = vmatpush.msra.mxu0 0.0
  %174 = vmatpush.msra.mxu0 0.0
  %175 = vmatpush.msra.mxu0 0.0
  %176 = vmatpush.msra.mxu0 0.0
  %177 = vmatpush.msra.mxu0 0.0
  %178 = vmatpush.msra.mxu0 0.0
  %179 = vmatpush.msra.mxu0 0.0
  %180 = vmatpush.msra.mxu0 0.0
  %181 = vmatpush.msra.mxu0 0.0
  %182 = vmatpush.msra.mxu0 0.0
  %183 = vmatpush.msra.mxu0 %v158
  %184 = vmatpush.msra.mxu0 %v157
  %185 = vmatpush.msra.mxu0 %v156
  %186 = vmatpush.msra.mxu0 %v155
  %187 = vmatmul.f32.gmra.mxu0 %v160
  %v188 = vpop.f32.mrf.mxu0
  %v189 = vadd.f32 0.0, %v188
  %190 = vmatmul.f32.gmra.mxu0 %v163
  %v191 = vpop.f32.mrf.mxu0
  %v192 = vadd.f32 0.0, %v191
  %193 = vmatmul.f32.gmra.mxu0 %v166
  %v194 = vpop.f32.mrf.mxu0
  %v195 = vadd.f32 0.0, %v194
  %196 = vmatmul.f32.gmra.mxu0 %v169
  %v197 = vpop.f32.mrf.mxu0
  %v198 = vadd.f32 0.0, %v197
  %199 = vdwg.mxu0
  %v200 = vld [vmem:[%s3] sm:$0x1]
  %v202 = vperm.slane %v200, 0
  %v204 = vadd.f32 %v189, %v202
  %v205 = vadd.f32 %v192, %v202
  %v206 = vadd.f32 %v195, %v202
  %v207 = vadd.f32 %v198, %v202
  %v208 = vld [vmem:[%s6] sm:$0x1]
  %v209 = vld [vmem:[#allocation2] sm:$0x1]
  %v210 = vld [vmem:[%s4] sm:$0xff]
  %v211 = vld [vmem:[%s4 + $0x8] sm:$0xff]
  %v212 = vld [vmem:[%s4 + $0x10] sm:$0xff]
  %v213 = vld [vmem:[%s4 + $0x18] sm:$0xff]
  %v214 = vld [vmem:[%s4 + $0x20] sm:$0xff]
  %v215 = vld [vmem:[%s4 + $0x28] sm:$0xff]
  %v216 = vld [vmem:[%s4 + $0x30] sm:$0xff]
  %v217 = vld [vmem:[%s4 + $0x38] sm:$0xff]
  %v218 = vld [vmem:[%s4 + $0x40] sm:$0xff]
  %v219 = vld [vmem:[%s4 + $0x48] sm:$0xff]
  %v220 = vld [vmem:[%s4 + $0x50] sm:$0xff]
  %v221 = vld [vmem:[%s4 + $0x58] sm:$0xff]
  %v222 = vld [vmem:[%s4 + $0x60] sm:$0xff]
  %v223 = vld [vmem:[%s4 + $0x68] sm:$0xff]
  %v224 = vld [vmem:[%s4 + $0x70] sm:$0xff]
  %v225 = vld [vmem:[%s4 + $0x78] sm:$0xff]
  %v226 = vld [vmem:[%s5] sm:$0x1]
  %v227 = vld [vmem:[%s12] sm:$0xff]
  %v228 = vld [vmem:[%s12 + $0x8] sm:$0xff]
  %v229 = vld [vmem:[%s12 + $0x10] sm:$0xff]
  %v230 = vld [vmem:[%s12 + $0x18] sm:$0xff]
  %v231 = vld [vmem:[%s12 + $0x20] sm:$0xff]
  %v232 = vld [vmem:[%s12 + $0x28] sm:$0xff]
  %v233 = vld [vmem:[%s12 + $0x30] sm:$0xff]
  %v234 = vld [vmem:[%s12 + $0x38] sm:$0xff]
  %v235 = vld [vmem:[%s12 + $0x40] sm:$0xff]
  %v236 = vld [vmem:[%s12 + $0x48] sm:$0xff]
  %v237 = vld [vmem:[%s12 + $0x50] sm:$0xff]
  %v238 = vld [vmem:[%s12 + $0x58] sm:$0xff]
  %v239 = vld [vmem:[%s12 + $0x60] sm:$0xff]
  %v240 = vld [vmem:[%s12 + $0x68] sm:$0xff]
  %v241 = vld [vmem:[%s12 + $0x70] sm:$0xff]
  %v242 = vld [vmem:[%s12 + $0x78] sm:$0xff]
  %v243 = vld [vmem:[%s13] sm:$0xff]
  %v244 = vld [vmem:[%s13 + $0x8] sm:$0xff]
  %v245 = vld [vmem:[%s13 + $0x10] sm:$0xff]
  %v246 = vld [vmem:[%s13 + $0x18] sm:$0xff]
  %v247 = vld [vmem:[%s13 + $0x20] sm:$0xff]
  %v248 = vld [vmem:[%s13 + $0x28] sm:$0xff]
  %v249 = vld [vmem:[%s13 + $0x30] sm:$0xff]
  %v250 = vld [vmem:[%s13 + $0x38] sm:$0xff]
  %v251 = vld [vmem:[%s13 + $0x40] sm:$0xff]
  %v252 = vld [vmem:[%s13 + $0x48] sm:$0xff]
  %v253 = vld [vmem:[%s13 + $0x50] sm:$0xff]
  %v254 = vld [vmem:[%s13 + $0x58] sm:$0xff]
  %v255 = vld [vmem:[%s13 + $0x60] sm:$0xff]
  %v256 = vld [vmem:[%s13 + $0x68] sm:$0xff]
  %v257 = vld [vmem:[%s13 + $0x70] sm:$0xff]
  %v258 = vld [vmem:[%s13 + $0x78] sm:$0xff]
  %v259 = vld [vmem:[%s14] sm:$0xff]
  %v260 = vld [vmem:[%s14 + $0x8] sm:$0xff]
  %v261 = vld [vmem:[%s14 + $0x10] sm:$0xff]
  %v262 = vld [vmem:[%s14 + $0x18] sm:$0xff]
  %v263 = vld [vmem:[%s14 + $0x20] sm:$0xff]
  %v264 = vld [vmem:[%s14 + $0x28] sm:$0xff]
  %v265 = vld [vmem:[%s14 + $0x30] sm:$0xff]
  %v266 = vld [vmem:[%s14 + $0x38] sm:$0xff]
  %v267 = vld [vmem:[%s14 + $0x40] sm:$0xff]
  %v268 = vld [vmem:[%s14 + $0x48] sm:$0xff]
  %v269 = vld [vmem:[%s14 + $0x50] sm:$0xff]
  %v270 = vld [vmem:[%s14 + $0x58] sm:$0xff]
  %v271 = vld [vmem:[%s14 + $0x60] sm:$0xff]
  %v272 = vld [vmem:[%s14 + $0x68] sm:$0xff]
  %v273 = vld [vmem:[%s14 + $0x70] sm:$0xff]
  %v274 = vld [vmem:[%s14 + $0x78] sm:$0xff]
  %v275 = vld [vmem:[%s14 + $0x80] sm:$0xff]
  %v276 = vld [vmem:[%s14 + $0x88] sm:$0xff]
  %v277 = vld [vmem:[%s14 + $0x90] sm:$0xff]
  %v278 = vld [vmem:[%s14 + $0x98] sm:$0xff]
  %v279 = vld [vmem:[%s14 + $0xa0] sm:$0xff]
  %v280 = vld [vmem:[%s14 + $0xa8] sm:$0xff]
  %v281 = vld [vmem:[%s14 + $0xb0] sm:$0xff]
  %v282 = vld [vmem:[%s14 + $0xb8] sm:$0xff]
  %v283 = vld [vmem:[%s14 + $0xc0] sm:$0xff]
  %v284 = vld [vmem:[%s14 + $0xc8] sm:$0xff]
  %v285 = vld [vmem:[%s14 + $0xd0] sm:$0xff]
  %v286 = vld [vmem:[%s14 + $0xd8] sm:$0xff]
  %v287 = vld [vmem:[%s14 + $0xe0] sm:$0xff]
  %v288 = vld [vmem:[%s14 + $0xe8] sm:$0xff]
  %v289 = vld [vmem:[%s14 + $0xf0] sm:$0xff]
  %v290 = vld [vmem:[%s14 + $0xf8] sm:$0xff]
  %v291 = vld [vmem:[%s14 + $0x100] sm:$0xff]
  %v292 = vld [vmem:[%s14 + $0x108] sm:$0xff]
  %v293 = vld [vmem:[%s14 + $0x110] sm:$0xff]
  %v294 = vld [vmem:[%s14 + $0x118] sm:$0xff]
  %v295 = vld [vmem:[%s14 + $0x120] sm:$0xff]
  %v296 = vld [vmem:[%s14 + $0x128] sm:$0xff]
  %v297 = vld [vmem:[%s14 + $0x130] sm:$0xff]
  %v298 = vld [vmem:[%s14 + $0x138] sm:$0xff]
  %v299 = vld [vmem:[%s14 + $0x140] sm:$0xff]
  %v300 = vld [vmem:[%s14 + $0x148] sm:$0xff]
  %v301 = vld [vmem:[%s14 + $0x150] sm:$0xff]
  %v302 = vld [vmem:[%s14 + $0x158] sm:$0xff]
  %v303 = vld [vmem:[%s14 + $0x160] sm:$0xff]
  %v304 = vld [vmem:[%s14 + $0x168] sm:$0xff]
  %v305 = vld [vmem:[%s14 + $0x170] sm:$0xff]
  %v306 = vld [vmem:[%s14 + $0x178] sm:$0xff]
  %v307 = vld [vmem:[%s14 + $0x180] sm:$0xff]
  %v308 = vld [vmem:[%s14 + $0x188] sm:$0xff]
  %v309 = vld [vmem:[%s14 + $0x190] sm:$0xff]
  %v310 = vld [vmem:[%s14 + $0x198] sm:$0xff]
  %v311 = vld [vmem:[%s14 + $0x1a0] sm:$0xff]
  %v312 = vld [vmem:[%s14 + $0x1a8] sm:$0xff]
  %v313 = vld [vmem:[%s14 + $0x1b0] sm:$0xff]
  %v314 = vld [vmem:[%s14 + $0x1b8] sm:$0xff]
  %v315 = vld [vmem:[%s14 + $0x1c0] sm:$0xff]
  %v316 = vld [vmem:[%s14 + $0x1c8] sm:$0xff]
  %v317 = vld [vmem:[%s14 + $0x1d0] sm:$0xff]
  %v318 = vld [vmem:[%s14 + $0x1d8] sm:$0xff]
  %v319 = vld [vmem:[%s14 + $0x1e0] sm:$0xff]
  %v320 = vld [vmem:[%s14 + $0x1e8] sm:$0xff]
  %v321 = vld [vmem:[%s14 + $0x1f0] sm:$0xff]
  %v322 = vld [vmem:[%s14 + $0x1f8] sm:$0xff]
  %v323 = vld [vmem:[%s15] sm:$0xf]
  %v324 = vld [vmem:[%s16] sm:$0xff]
  %v325 = vld [vmem:[%s16 + $0x8] sm:$0xff]
  %v326 = vld [vmem:[%s16 + $0x10] sm:$0xff]
  %v327 = vld [vmem:[%s16 + $0x18] sm:$0xff]
  %v328 = vld [vmem:[%s16 + $0x20] sm:$0xff]
  %v329 = vld [vmem:[%s16 + $0x28] sm:$0xff]
  %v330 = vld [vmem:[%s16 + $0x30] sm:$0xff]
  %v331 = vld [vmem:[%s16 + $0x38] sm:$0xff]
  %v332 = vld [vmem:[%s16 + $0x40] sm:$0xff]
  %v333 = vld [vmem:[%s16 + $0x48] sm:$0xff]
  %v334 = vld [vmem:[%s16 + $0x50] sm:$0xff]
  %v335 = vld [vmem:[%s16 + $0x58] sm:$0xff]
  %v336 = vld [vmem:[%s16 + $0x60] sm:$0xff]
  %v337 = vld [vmem:[%s16 + $0x68] sm:$0xff]
  %v338 = vld [vmem:[%s16 + $0x70] sm:$0xff]
  %v339 = vld [vmem:[%s16 + $0x78] sm:$0xff]
  %v340 = vld [vmem:[%s17] sm:$0x1]
  %v342 = vperm.slane %v226, 0
  %344 = vmatpush.msra.mxu0 %v225
  %345 = vmatpush.msra.mxu0 %v224
  %346 = vmatpush.msra.mxu0 %v223
  %347 = vmatpush.msra.mxu0 %v222
  %348 = vmatpush.msra.mxu0 %v221
  %349 = vmatpush.msra.mxu0 %v220
  %350 = vmatpush.msra.mxu0 %v219
  %351 = vmatpush.msra.mxu0 %v218
  %352 = vmatpush.msra.mxu0 %v217
  %353 = vmatpush.msra.mxu0 %v216
  %354 = vmatpush.msra.mxu0 %v215
  %355 = vmatpush.msra.mxu0 %v214
  %356 = vmatpush.msra.mxu0 %v213
  %357 = vmatpush.msra.mxu0 %v212
  %358 = vmatpush.msra.mxu0 %v211
  %359 = vmatpush.msra.mxu0 %v210
  %360 = vmatmul.f32.gmra.mxu0 %v125
  %v361 = vpop.f32.mrf.mxu0
  %v362 = vadd.f32 %v342, %v361
  %363 = vdwg.mxu0
  %v365 = vrot.slane %v362, 1
  %v366 = vperm.slane %v362, 0
  %v367 = vperm.slane %v365, 0
  %v370 = vadd.f32 %v204, %v366
  %v371 = vadd.f32 %v205, %v366
  %v372 = vadd.f32 %v206, %v367
  %v373 = vadd.f32 %v207, %v367
  %v374 = vtanh.pop %v370
  %v375 = vtanh.pop %v371
  %v376 = vtanh.pop %v372
  %v377 = vtanh.pop %v373
  %v379 = vperm.slane %v208, 0
  %v381 = vmul.f32 %v374, %v379
  %v382 = vmul.f32 %v375, %v379
  %v383 = vmul.f32 %v376, %v379
  %v384 = vmul.f32 %v377, %v379
  %385 = vadd.xlane.f32.xlu0 %v381
  %v386 = vpop.xlane.xlu0 %385
  %387 = vadd.xlane.f32.xlu0 %v382
  %v388 = vpop.xlane.xlu0 %387
  %389 = vadd.xlane.f32.xlu0 %v383
  %v390 = vpop.xlane.xlu0 %389
  %391 = vadd.xlane.f32.xlu0 %v384
  %v392 = vpop.xlane.xlu0 %391
  %v394 = vperm.slane %v209, 0
  %395 = vset.pattern.permute.xlu0 0
  %396 = vperm.xlu0 %395, %v394
  %v397 = vpop.permute.xlu0 %396
  %v399 = vadd.f32 %v386, %v397
  %v400 = vadd.f32 %v388, %v397
  %v401 = vadd.f32 %v390, %v397
  %v402 = vadd.f32 %v392, %v397
  %v407 = vlaneseq
  %v408 = vand.u32 %v407, 127
  %v409 = vperm.slane %v399, %v408
  %v410 = vadd.s32 %v408, 4294967288
  %v411 = vperm.slane %v400, %v410
  %vm412 = vcmask 130112
  %v413 = vsel %vm412, %v411, %v409
  %v414 = vperm.slane %v401, %v408
  %v415 = vperm.slane %v402, %v410
  %v416 = vsel %vm412, %v415, %v414
  %v417 = vsel %vm103, %v416, %v413
  %vm419 = vcmask 123904
  %v420 = vsel %vm419, %v417, -inf
  %421 = vmax.xlane.f32.xlu0 %v420
  %v422 = vpop.xlane.xlu0 %421
  %v424 = vperm.slane %v422, 0
  %v425 = vperm.slane %v422, 1
  %v428 = vsub.f32 %v399, %v424
  %v429 = vsub.f32 %v400, %v424
  %v430 = vsub.f32 %v401, %v425
  %v431 = vsub.f32 %v402, %v425
  %v432 = vmul.f32 %v428, 1.442695
  %v433 = vpow.pop %v432
  %v434 = vmul.f32 %v429, 1.442695
  %v435 = vpow.pop %v434
  %v436 = vmul.f32 %v430, 1.442695
  %v437 = vpow.pop %v436
  %v438 = vmul.f32 %v431, 1.442695
  %v439 = vpow.pop %v438
  %444 = vset.pattern.permute.xlu0 0
  %445 = vperm.xlu0 %444, %v433
  %v446 = vpop.permute.xlu0 %445
  %447 = vset.pattern.permute.xlu0 0
  %448 = vperm.xlu0 %447, %v435
  %v449 = vpop.permute.xlu0 %448
  %450 = vset.pattern.permute.xlu0 0
  %451 = vperm.xlu0 %450, %v437
  %v452 = vpop.permute.xlu0 %451
  %453 = vset.pattern.permute.xlu0 0
  %454 = vperm.xlu0 %453, %v439
  %v455 = vpop.permute.xlu0 %454
  %v456 = vperm.slane %v446, %v408
  %v457 = vperm.slane %v449, %v410
  %v458 = vsel %vm412, %v457, %v456
  %v459 = vperm.slane %v452, %v408
  %v460 = vperm.slane %v455, %v410
  %v461 = vsel %vm412, %v460, %v459
  %v462 = vsel %vm103, %v461, %v458
  %v464 = vsel %vm419, %v462, 0.0
  %465 = vadd.xlane.f32.xlu0 %v464
  %v466 = vpop.xlane.xlu0 %465
  %v467 = vrcp.pop %v466
  %v469 = vperm.slane %v467, 0
  %v470 = vperm.slane %v467, 1
  %v473 = vmul.f32 %v433, %v469
  %v474 = vmul.f32 %v435, %v469
  %v475 = vmul.f32 %v437, %v470
  %v476 = vmul.f32 %v439, %v470
  %478 = vset.pattern.permute.xlu0 0
  %479 = vperm.xlu0 %478, %v473
  %v480 = vpop.permute.xlu0 %479
  %483 = vset.pattern.permute.xlu0 0
  %484 = vperm.xlu0 %483, %v474
  %v485 = vpop.permute.xlu0 %484
  %488 = vset.pattern.permute.xlu0 0
  %489 = vperm.xlu0 %488, %v475
  %v490 = vpop.permute.xlu0 %489
  %493 = vset.pattern.permute.xlu0 0
  %494 = vperm.xlu0 %493, %v476
  %v495 = vpop.permute.xlu0 %494
  %v497 = vmul.f32 %v61, %v480
  %v498 = vmul.f32 %v62, %v485
  %v499 = vmul.f32 %v63, %v490
  %v500 = vmul.f32 %v64, %v495
  %v501 = vsel %vm65, %v497, 0.0
  %v502 = vsel %vm65, %v498, 0.0
  %v503 = vadd.f32 %v501, %v502
  %v504 = vrot.slane %v503, 4
  %v505 = vadd.f32 %v503, %v504
  %v506 = vrot.slane %v505, 2
  %v507 = vadd.f32 %v505, %v506
  %v508 = vrot.slane %v507, 1
  %v509 = vadd.f32 %v507, %v508
  %v510 = vsel %vm65, %v499, 0.0
  %v511 = vsel %vm65, %v500, 0.0
  %v512 = vadd.f32 %v510, %v511
  %v513 = vrot.slane %v512, 4
  %v514 = vadd.f32 %v512, %v513
  %v515 = vrot.slane %v514, 2
  %v516 = vadd.f32 %v514, %v515
  %v517 = vrot.slane %v516, 1
  %v518 = vadd.f32 %v516, %v517
  %v519 = vld [vmem:[%s1] sm:$0x3]
  %v522 = vsel %vm103, %v518, %v509
  %v523 = vsel %vm65, %v522, 0
  %525 = vmatpush.msra.mxu0 0.0
  %526 = vmatpush.msra.mxu0 0.0
  %527 = vmatpush.msra.mxu0 0.0
  %528 = vmatpush.msra.mxu0 0.0
  %529 = vmatpush.msra.mxu0 0.0
  %530 = vmatpush.msra.mxu0 0.0
  %531 = vmatpush.msra.mxu0 0.0
  %532 = vmatpush.msra.mxu0 0.0
  %533 = vmatpush.msra.mxu0 0.0
  %534 = vmatpush.msra.mxu0 0.0
  %535 = vmatpush.msra.mxu0 0.0
  %536 = vmatpush.msra.mxu0 0.0
  %537 = vmatpush.msra.mxu0 %v255
  %538 = vmatpush.msra.mxu0 %v251
  %539 = vmatpush.msra.mxu0 %v247
  %540 = vmatpush.msra.mxu0 %v243
  %541 = vmatmul.f32.gmra.mxu0 %v523
  %v542 = vpop.f32.mrf.mxu0
  %v543 = vadd.f32 0.0, %v542
  %544 = vdwg.mxu0
  %545 = vmatpush.msra.mxu0 0.0
  %546 = vmatpush.msra.mxu0 0.0
  %547 = vmatpush.msra.mxu0 0.0
  %548 = vmatpush.msra.mxu0 0.0
  %549 = vmatpush.msra.mxu0 0.0
  %550 = vmatpush.msra.mxu0 0.0
  %551 = vmatpush.msra.mxu0 0.0
  %552 = vmatpush.msra.mxu0 0.0
  %553 = vmatpush.msra.mxu0 0.0
  %554 = vmatpush.msra.mxu0 0.0
  %555 = vmatpush.msra.mxu0 0.0
  %556 = vmatpush.msra.mxu0 0.0
  %557 = vmatpush.msra.mxu0 %v256
  %558 = vmatpush.msra.mxu0 %v252
  %559 = vmatpush.msra.mxu0 %v248
  %560 = vmatpush.msra.mxu0 %v244
  %561 = vmatmul.f32.gmra.mxu0 %v523
  %v562 = vpop.f32.mrf.mxu0
  %v563 = vadd.f32 0.0, %v562
  %564 = vdwg.mxu0
  %565 = vmatpush.msra.mxu0 0.0
  %566 = vmatpush.msra.mxu0 0.0
  %567 = vmatpush.msra.mxu0 0.0
  %568 = vmatpush.msra.mxu0 0.0
  %569 = vmatpush.msra.mxu0 0.0
  %570 = vmatpush.msra.mxu0 0.0
  %571 = vmatpush.msra.mxu0 0.0
  %572 = vmatpush.msra.mxu0 0.0
  %573 = vmatpush.msra.mxu0 0.0
  %574 = vmatpush.msra.mxu0 0.0
  %575 = vmatpush.msra.mxu0 0.0
  %576 = vmatpush.msra.mxu0 0.0
  %577 = vmatpush.msra.mxu0 %v257
  %578 = vmatpush.msra.mxu0 %v253
  %579 = vmatpush.msra.mxu0 %v249
  %580 = vmatpush.msra.mxu0 %v245
  %581 = vmatmul.f32.gmra.mxu0 %v523
  %v582 = vpop.f32.mrf.mxu0
  %v583 = vadd.f32 0.0, %v582
  %584 = vdwg.mxu0
  %585 = vmatpush.msra.mxu0 0.0
  %586 = vmatpush.msra.mxu0 0.0
  %587 = vmatpush.msra.mxu0 0.0
  %588 = vmatpush.msra.mxu0 0.0
  %589 = vmatpush.msra.mxu0 0.0
  %590 = vmatpush.msra.mxu0 0.0
  %591 = vmatpush.msra.mxu0 0.0
  %592 = vmatpush.msra.mxu0 0.0
  %593 = vmatpush.msra.mxu0 0.0
  %594 = vmatpush.msra.mxu0 0.0
  %595 = vmatpush.msra.mxu0 0.0
  %596 = vmatpush.msra.mxu0 0.0
  %597 = vmatpush.msra.mxu0 %v258
  %598 = vmatpush.msra.mxu0 %v254
  %599 = vmatpush.msra.mxu0 %v250
  %600 = vmatpush.msra.mxu0 %v246
  %601 = vmatmul.f32.gmra.mxu0 %v523
  %v602 = vpop.f32.mrf.mxu0
  %v603 = vadd.f32 0.0, %v602
  %604 = vdwg.mxu0
  %v606 = vsel %vm65, %v519, 0
  %608 = vmatpush.msra.mxu0 0.0
  %609 = vmatpush.msra.mxu0 0.0
  %610 = vmatpush.msra.mxu0 0.0
  %611 = vmatpush.msra.mxu0 0.0
  %612 = vmatpush.msra.mxu0 0.0
  %613 = vmatpush.msra.mxu0 0.0
  %614 = vmatpush.msra.mxu0 0.0
  %615 = vmatpush.msra.mxu0 0.0
  %616 = vmatpush.msra.mxu0 0.0
  %617 = vmatpush.msra.mxu0 0.0
  %618 = vmatpush.msra.mxu0 0.0
  %619 = vmatpush.msra.mxu0 0.0
  %620 = vmatpush.msra.mxu0 %v239
  %621 = vmatpush.msra.mxu0 %v235
  %622 = vmatpush.msra.mxu0 %v231
  %623 = vmatpush.msra.mxu0 %v227
  %624 = vmatmul.f32.gmra.mxu0 %v606
  %v625 = vpop.f32.mrf.mxu0
  %v626 = vadd.f32 %v543, %v625
  %627 = vdwg.mxu0
  %628 = vmatpush.msra.mxu0 0.0
  %629 = vmatpush.msra.mxu0 0.0
  %630 = vmatpush.msra.mxu0 0.0
  %631 = vmatpush.msra.mxu0 0.0
  %632 = vmatpush.msra.mxu0 0.0
  %633 = vmatpush.msra.mxu0 0.0
  %634 = vmatpush.msra.mxu0 0.0
  %635 = vmatpush.msra.mxu0 0.0
  %636 = vmatpush.msra.mxu0 0.0
  %637 = vmatpush.msra.mxu0 0.0
  %638 = vmatpush.msra.mxu0 0.0
  %639 = vmatpush.msra.mxu0 0.0
  %640 = vmatpush.msra.mxu0 %v240
  %641 = vmatpush.msra.mxu0 %v236
  %642 = vmatpush.msra.mxu0 %v232
  %643 = vmatpush.msra.mxu0 %v228
  %644 = vmatmul.f32.gmra.mxu0 %v606
  %v645 = vpop.f32.mrf.mxu0
  %v646 = vadd.f32 %v563, %v645
  %647 = vdwg.mxu0
  %648 = vmatpush.msra.mxu0 0.0
  %649 = vmatpush.msra.mxu0 0.0
  %650 = vmatpush.msra.mxu0 0.0
  %651 = vmatpush.msra.mxu0 0.0
  %652 = vmatpush.msra.mxu0 0.0
  %653 = vmatpush.msra.mxu0 0.0
  %654 = vmatpush.msra.mxu0 0.0
  %655 = vmatpush.msra.mxu0 0.0
  %656 = vmatpush.msra.mxu0 0.0
  %657 = vmatpush.msra.mxu0 0.0
  %658 = vmatpush.msra.mxu0 0.0
  %659 = vmatpush.msra.mxu0 0.0
  %660 = vmatpush.msra.mxu0 %v241
  %661 = vmatpush.msra.mxu0 %v237
  %662 = vmatpush.msra.mxu0 %v233
  %663 = vmatpush.msra.mxu0 %v229
  %664 = vmatmul.f32.gmra.mxu0 %v606
  %v665 = vpop.f32.mrf.mxu0
  %v666 = vadd.f32 %v583, %v665
  %667 = vdwg.mxu0
  %668 = vmatpush.msra.mxu0 0.0
  %669 = vmatpush.msra.mxu0 0.0
  %670 = vmatpush.msra.mxu0 0.0
  %671 = vmatpush.msra.mxu0 0.0
  %672 = vmatpush.msra.mxu0 0.0
  %673 = vmatpush.msra.mxu0 0.0
  %674 = vmatpush.msra.mxu0 0.0
  %675 = vmatpush.msra.mxu0 0.0
  %676 = vmatpush.msra.mxu0 0.0
  %677 = vmatpush.msra.mxu0 0.0
  %678 = vmatpush.msra.mxu0 0.0
  %679 = vmatpush.msra.mxu0 0.0
  %680 = vmatpush.msra.mxu0 %v242
  %681 = vmatpush.msra.mxu0 %v238
  %682 = vmatpush.msra.mxu0 %v234
  %683 = vmatpush.msra.mxu0 %v230
  %684 = vmatmul.f32.gmra.mxu0 %v606
  %v685 = vpop.f32.mrf.mxu0
  %v686 = vadd.f32 %v603, %v685
  %687 = vdwg.mxu0
  %688 = vmatpush.msra.mxu0 %v319
  %689 = vmatpush.msra.mxu0 %v315
  %690 = vmatpush.msra.mxu0 %v311
  %691 = vmatpush.msra.mxu0 %v307
  %692 = vmatpush.msra.mxu0 %v303
  %693 = vmatpush.msra.mxu0 %v299
  %694 = vmatpush.msra.mxu0 %v295
  %695 = vmatpush.msra.mxu0 %v291
  %696 = vmatpush.msra.mxu0 %v287
  %697 = vmatpush.msra.mxu0 %v283
  %698 = vmatpush.msra.mxu0 %v279
  %699 = vmatpush.msra.mxu0 %v275
  %700 = vmatpush.msra.mxu0 %v271
  %701 = vmatpush.msra.mxu0 %v267
  %702 = vmatpush.msra.mxu0 %v263
  %703 = vmatpush.msra.mxu0 %v259
  %704 = vmatmul.f32.gmra.mxu0 %v125
  %v705 = vpop.f32.mrf.mxu0
  %v706 = vadd.f32 0.0, %v705
  %707 = vdwg.mxu0
  %708 = vmatpush.msra.mxu0 %v320
  %709 = vmatpush.msra.mxu0 %v316
  %710 = vmatpush.msra.mxu0 %v312
  %711 = vmatpush.msra.mxu0 %v308
  %712 = vmatpush.msra.mxu0 %v304
  %713 = vmatpush.msra.mxu0 %v300
  %714 = vmatpush.msra.mxu0 %v296
  %715 = vmatpush.msra.mxu0 %v292
  %716 = vmatpush.msra.mxu0 %v288
  %717 = vmatpush.msra.mxu0 %v284
  %718 = vmatpush.msra.mxu0 %v280
  %719 = vmatpush.msra.mxu0 %v276
  %720 = vmatpush.msra.mxu0 %v272
  %721 = vmatpush.msra.mxu0 %v268
  %722 = vmatpush.msra.mxu0 %v264
  %723 = vmatpush.msra.mxu0 %v260
  %724 = vmatmul.f32.gmra.mxu0 %v125
  %v725 = vpop.f32.mrf.mxu0
  %v726 = vadd.f32 0.0, %v725
  %727 = vdwg.mxu0
  %728 = vmatpush.msra.mxu0 %v321
  %729 = vmatpush.msra.mxu0 %v317
  %730 = vmatpush.msra.mxu0 %v313
  %731 = vmatpush.msra.mxu0 %v309
  %732 = vmatpush.msra.mxu0 %v305
  %733 = vmatpush.msra.mxu0 %v301
  %734 = vmatpush.msra.mxu0 %v297
  %735 = vmatpush.msra.mxu0 %v293
  %736 = vmatpush.msra.mxu0 %v289
  %737 = vmatpush.msra.mxu0 %v285
  %738 = vmatpush.msra.mxu0 %v281
  %739 = vmatpush.msra.mxu0 %v277
  %740 = vmatpush.msra.mxu0 %v273
  %741 = vmatpush.msra.mxu0 %v269
  %742 = vmatpush.msra.mxu0 %v265
  %743 = vmatpush.msra.mxu0 %v261
  %744 = vmatmul.f32.gmra.mxu0 %v125
  %v745 = vpop.f32.mrf.mxu0
  %v746 = vadd.f32 0.0, %v745
  %747 = vdwg.mxu0
  %748 = vmatpush.msra.mxu0 %v322
  %749 = vmatpush.msra.mxu0 %v318
  %750 = vmatpush.msra.mxu0 %v314
  %751 = vmatpush.msra.mxu0 %v310
  %752 = vmatpush.msra.mxu0 %v306
  %753 = vmatpush.msra.mxu0 %v302
  %754 = vmatpush.msra.mxu0 %v298
  %755 = vmatpush.msra.mxu0 %v294
  %756 = vmatpush.msra.mxu0 %v290
  %757 = vmatpush.msra.mxu0 %v286
  %758 = vmatpush.msra.mxu0 %v282
  %759 = vmatpush.msra.mxu0 %v278
  %760 = vmatpush.msra.mxu0 %v274
  %761 = vmatpush.msra.mxu0 %v270
  %762 = vmatpush.msra.mxu0 %v266
  %763 = vmatpush.msra.mxu0 %v262
  %764 = vmatmul.f32.gmra.mxu0 %v125
  %v765 = vpop.f32.mrf.mxu0
  %v766 = vadd.f32 0.0, %v765
  %767 = vdwg.mxu0
  %v768 = vadd.f32 %v626, %v706
  %v769 = vadd.f32 %v646, %v726
  %v770 = vadd.f32 %v666, %v746
  %v771 = vadd.f32 %v686, %v766
  %v773 = vperm.slane %v323, 0
  %v774 = vperm.slane %v323, 1
  %v775 = vperm.slane %v323, 2
  %v776 = vperm.slane %v323, 3
  %v781 = vadd.f32 %v768, %v773
  %v782 = vadd.f32 %v769, %v774
  %v783 = vadd.f32 %v770, %v775
  %v784 = vadd.f32 %v771, %v776
  %v785 = vxor.u32 %v781, 2147483648
  %v786 = vmul.f32 %v785, 1.442695
  %v787 = vpow.pop %v786
  %v788 = vadd.f32 %v787, 1.0
  %v789 = vrcp.pop %v788
  %v790 = vmul.f32 %v788, %v789
  %v791 = vsub.f32 1.0, %v790
  %v792 = vmul.f32 %v789, %v791
  %v793 = vadd.f32 %v789, %v792
  %vm794 = vweird.f32 %v788
  %vm795 = vweird.f32 %v789
  %vm796 = vmor %vm794, %vm795
  %v797 = vsel %vm796, %v789, %v793
  %v798 = vand.u32 2147483647, %v788
  %vm799 = vcmp.eq.f32.partialorder %v798, 8.507059e+37
  %v800 = vand.u32 %v788, 2147483648
  %v801 = vor.u32 1.1754944e-38, %v800
  %v802 = vsel %vm799, %v801, %v797
  %v803 = vmul.f32 1.0, %v802
  %v804 = vxor.u32 %v782, 2147483648
  %v805 = vmul.f32 %v804, 1.442695
  %v806 = vpow.pop %v805
  %v807 = vadd.f32 %v806, 1.0
  %v808 = vrcp.pop %v807
  %v809 = vmul.f32 %v807, %v808
  %v810 = vsub.f32 1.0, %v809
  %v811 = vmul.f32 %v808, %v810
  %v812 = vadd.f32 %v808, %v811
  %vm813 = vweird.f32 %v807
  %vm814 = vweird.f32 %v808
  %vm815 = vmor %vm813, %vm814
  %v816 = vsel %vm815, %v808, %v812
  %v817 = vand.u32 2147483647, %v807
  %vm818 = vcmp.eq.f32.partialorder %v817, 8.507059e+37
  %v819 = vand.u32 %v807, 2147483648
  %v820 = vor.u32 1.1754944e-38, %v819
  %v821 = vsel %vm818, %v820, %v816
  %v822 = vmul.f32 1.0, %v821
  %v823 = vtanh.pop %v783
  %v824 = vxor.u32 %v784, 2147483648
  %v825 = vmul.f32 %v824, 1.442695
  %v826 = vpow.pop %v825
  %v827 = vadd.f32 %v826, 1.0
  %v828 = vrcp.pop %v827
  %v829 = vmul.f32 %v827, %v828
  %v830 = vsub.f32 1.0, %v829
  %v831 = vmul.f32 %v828, %v830
  %v832 = vadd.f32 %v828, %v831
  %vm833 = vweird.f32 %v827
  %vm834 = vweird.f32 %v828
  %vm835 = vmor %vm833, %vm834
  %v836 = vsel %vm835, %v828, %v832
  %v837 = vand.u32 2147483647, %v827
  %vm838 = vcmp.eq.f32.partialorder %v837, 8.507059e+37
  %v839 = vand.u32 %v827, 2147483648
  %v840 = vor.u32 1.1754944e-38, %v839
  %v841 = vsel %vm838, %v840, %v836
  %v842 = vmul.f32 1.0, %v841
  %v843 = vmul.f32 %v822, %v153
  %v844 = vmul.f32 %v803, %v823
  %v845 = vadd.f32 %v843, %v844
  %v846 = vtanh.pop %v845
  %v847 = vmul.f32 %v842, %v846
  %v849 = vperm.slane %v340, 0
  %851 = vmatpush.msra.mxu0 %v339
  %852 = vmatpush.msra.mxu0 %v338
  %853 = vmatpush.msra.mxu0 %v337
  %854 = vmatpush.msra.mxu0 %v336
  %855 = vmatpush.msra.mxu0 %v335
  %856 = vmatpush.msra.mxu0 %v334
  %857 = vmatpush.msra.mxu0 %v333
  %858 = vmatpush.msra.mxu0 %v332
  %859 = vmatpush.msra.mxu0 %v331
  %860 = vmatpush.msra.mxu0 %v330
  %861 = vmatpush.msra.mxu0 %v329
  %862 = vmatpush.msra.mxu0 %v328
  %863 = vmatpush.msra.mxu0 %v327
  %864 = vmatpush.msra.mxu0 %v326
  %865 = vmatpush.msra.mxu0 %v325
  %866 = vmatpush.msra.mxu0 %v324
  %867 = vmatmul.f32.gmra.mxu0 %v847
  %v868 = vpop.f32.mrf.mxu0
  %v869 = vadd.f32 %v849, %v868
  %870 = vdwg.mxu0
  %871 = vst [vmem:[%s18] sm:$0x3] %v869
  %872 = vmatpush.msra.mxu0 %v225
  %873 = vmatpush.msra.mxu0 %v224
  %874 = vmatpush.msra.mxu0 %v223
  %875 = vmatpush.msra.mxu0 %v222
  %876 = vmatpush.msra.mxu0 %v221
  %877 = vmatpush.msra.mxu0 %v220
  %878 = vmatpush.msra.mxu0 %v219
  %879 = vmatpush.msra.mxu0 %v218
  %880 = vmatpush.msra.mxu0 %v217
  %881 = vmatpush.msra.mxu0 %v216
  %882 = vmatpush.msra.mxu0 %v215
  %883 = vmatpush.msra.mxu0 %v214
  %884 = vmatpush.msra.mxu0 %v213
  %885 = vmatpush.msra.mxu0 %v212
  %886 = vmatpush.msra.mxu0 %v211
  %887 = vmatpush.msra.mxu0 %v210
  %888 = vmatmul.f32.gmra.mxu0 %v847
  %v889 = vpop.f32.mrf.mxu0
  %v890 = vadd.f32 %v342, %v889
  %891 = vdwg.mxu0
  %v893 = vrot.slane %v890, 1
  %v894 = vperm.slane %v890, 0
  %v895 = vperm.slane %v893, 0
  %v898 = vadd.f32 %v204, %v894
  %v899 = vadd.f32 %v205, %v894
  %v900 = vadd.f32 %v206, %v895
  %v901 = vadd.f32 %v207, %v895
  %v902 = vtanh.pop %v898
  %v903 = vtanh.pop %v899
  %v904 = vtanh.pop %v900
  %v905 = vtanh.pop %v901
  %v906 = vmul.f32 %v902, %v379
  %v907 = vmul.f32 %v903, %v379
  %v908 = vmul.f32 %v904, %v379
  %v909 = vmul.f32 %v905, %v379
  %910 = vadd.xlane.f32.xlu0 %v906
  %v911 = vpop.xlane.xlu0 %910
  %912 = vadd.xlane.f32.xlu0 %v907
  %v913 = vpop.xlane.xlu0 %912
  %914 = vadd.xlane.f32.xlu0 %v908
  %v915 = vpop.xlane.xlu0 %914
  %916 = vadd.xlane.f32.xlu0 %v909
  %v917 = vpop.xlane.xlu0 %916
  %v918 = vadd.f32 %v911, %v397
  %v919 = vadd.f32 %v913, %v397
  %v920 = vadd.f32 %v915, %v397
  %v921 = vadd.f32 %v917, %v397
  %v926 = vperm.slane %v918, %v408
  %v927 = vperm.slane %v919, %v410
  %v928 = vsel %vm412, %v927, %v926
  %v929 = vperm.slane %v920, %v408
  %v930 = vperm.slane %v921, %v410
  %v931 = vsel %vm412, %v930, %v929
  %v932 = vsel %vm103, %v931, %v928
  %v934 = vsel %vm419, %v932, -inf
  %935 = vmax.xlane.f32.xlu0 %v934
  %v936 = vpop.xlane.xlu0 %935
  %v938 = vperm.slane %v936, 0
  %v939 = vperm.slane %v936, 1
  %v942 = vsub.f32 %v918, %v938
  %v943 = vsub.f32 %v919, %v938
  %v944 = vsub.f32 %v920, %v939
  %v945 = vsub.f32 %v921, %v939
  %v946 = vmul.f32 %v942, 1.442695
  %v947 = vpow.pop %v946
  %v948 = vmul.f32 %v943, 1.442695
  %v949 = vpow.pop %v948
  %v950 = vmul.f32 %v944, 1.442695
  %v951 = vpow.pop %v950
  %v952 = vmul.f32 %v945, 1.442695
  %v953 = vpow.pop %v952
  %958 = vset.pattern.permute.xlu0 0
  %959 = vperm.xlu0 %958, %v947
  %v960 = vpop.permute.xlu0 %959
  %961 = vset.pattern.permute.xlu0 0
  %962 = vperm.xlu0 %961, %v949
  %v963 = vpop.permute.xlu0 %962
  %964 = vset.pattern.permute.xlu0 0
  %965 = vperm.xlu0 %964, %v951
  %v966 = vpop.permute.xlu0 %965
  %967 = vset.pattern.permute.xlu0 0
  %968 = vperm.xlu0 %967, %v953
  %v969 = vpop.permute.xlu0 %968
  %v970 = vperm.slane %v960, %v408
  %v971 = vperm.slane %v963, %v410
  %v972 = vsel %vm412, %v971, %v970
  %v973 = vperm.slane %v966, %v408
  %v974 = vperm.slane %v969, %v410
  %v975 = vsel %vm412, %v974, %v973
  %v976 = vsel %vm103, %v975, %v972
  %v978 = vsel %vm419, %v976, 0.0
  %979 = vadd.xlane.f32.xlu0 %v978
  %v980 = vpop.xlane.xlu0 %979
  %v981 = vrcp.pop %v980
  %v983 = vperm.slane %v981, 0
  %v984 = vperm.slane %v981, 1
  %v987 = vmul.f32 %v947, %v983
  %v988 = vmul.f32 %v949, %v983
  %v989 = vmul.f32 %v951, %v984
  %v990 = vmul.f32 %v953, %v984
  %992 = vset.pattern.permute.xlu0 0
  %993 = vperm.xlu0 %992, %v987
  %v994 = vpop.permute.xlu0 %993
  %997 = vset.pattern.permute.xlu0 0
  %998 = vperm.xlu0 %997, %v988
  %v999 = vpop.permute.xlu0 %998
  %1002 = vset.pattern.permute.xlu0 0
  %1003 = vperm.xlu0 %1002, %v989
  %v1004 = vpop.permute.xlu0 %1003
  %1007 = vset.pattern.permute.xlu0 0
  %1008 = vperm.xlu0 %1007, %v990
  %v1009 = vpop.permute.xlu0 %1008
  %v1011 = vmul.f32 %v61, %v994
  %v1012 = vmul.f32 %v62, %v999
  %v1013 = vmul.f32 %v63, %v1004
  %v1014 = vmul.f32 %v64, %v1009
  %v1015 = vsel %vm65, %v1011, 0.0
  %v1016 = vsel %vm65, %v1012, 0.0
  %v1017 = vadd.f32 %v1015, %v1016
  %v1018 = vrot.slane %v1017, 4
  %v1019 = vadd.f32 %v1017, %v1018
  %v1020 = vrot.slane %v1019, 2
  %v1021 = vadd.f32 %v1019, %v1020
  %v1022 = vrot.slane %v1021, 1
  %v1023 = vadd.f32 %v1021, %v1022
  %v1024 = vsel %vm65, %v1013, 0.0
  %v1025 = vsel %vm65, %v1014, 0.0
  %v1026 = vadd.f32 %v1024, %v1025
  %v1027 = vrot.slane %v1026, 4
  %v1028 = vadd.f32 %v1026, %v1027
  %v1029 = vrot.slane %v1028, 2
  %v1030 = vadd.f32 %v1028, %v1029
  %v1031 = vrot.slane %v1030, 1
  %v1032 = vadd.f32 %v1030, %v1031
  %s1033 = scalar_lea.vmem %s1, 2
  %v1034 = vld [vmem:[%s1033] sm:$0x3]
  %v1037 = vsel %vm103, %v1032, %v1023
  %v1038 = vsel %vm65, %v1037, 0
  %1040 = vmatpush.msra.mxu0 0.0
  %1041 = vmatpush.msra.mxu0 0.0
  %1042 = vmatpush.msra.mxu0 0.0
  %1043 = vmatpush.msra.mxu0 0.0
  %1044 = vmatpush.msra.mxu0 0.0
  %1045 = vmatpush.msra.mxu0 0.0
  %1046 = vmatpush.msra.mxu0 0.0
  %1047 = vmatpush.msra.mxu0 0.0
  %1048 = vmatpush.msra.mxu0 0.0
  %1049 = vmatpush.msra.mxu0 0.0
  %1050 = vmatpush.msra.mxu0 0.0
  %1051 = vmatpush.msra.mxu0 0.0
  %1052 = vmatpush.msra.mxu0 %v255
  %1053 = vmatpush.msra.mxu0 %v251
  %1054 = vmatpush.msra.mxu0 %v247
  %1055 = vmatpush.msra.mxu0 %v243
  %1056 = vmatmul.f32.gmra.mxu0 %v1038
  %v1057 = vpop.f32.mrf.mxu0
  %v1058 = vadd.f32 0.0, %v1057
  %1059 = vdwg.mxu0
  %1060 = vmatpush.msra.mxu0 0.0
  %1061 = vmatpush.msra.mxu0 0.0
  %1062 = vmatpush.msra.mxu0 0.0
  %1063 = vmatpush.msra.mxu0 0.0
  %1064 = vmatpush.msra.mxu0 0.0
  %1065 = vmatpush.msra.mxu0 0.0
  %1066 = vmatpush.msra.mxu0 0.0
  %1067 = vmatpush.msra.mxu0 0.0
  %1068 = vmatpush.msra.mxu0 0.0
  %1069 = vmatpush.msra.mxu0 0.0
  %1070 = vmatpush.msra.mxu0 0.0
  %1071 = vmatpush.msra.mxu0 0.0
  %1072 = vmatpush.msra.mxu0 %v256
  %1073 = vmatpush.msra.mxu0 %v252
  %1074 = vmatpush.msra.mxu0 %v248
  %1075 = vmatpush.msra.mxu0 %v244
  %1076 = vmatmul.f32.gmra.mxu0 %v1038
  %v1077 = vpop.f32.mrf.mxu0
  %v1078 = vadd.f32 0.0, %v1077
  %1079 = vdwg.mxu0
  %1080 = vmatpush.msra.mxu0 0.0
  %1081 = vmatpush.msra.mxu0 0.0
  %1082 = vmatpush.msra.mxu0 0.0
  %1083 = vmatpush.msra.mxu0 0.0
  %1084 = vmatpush.msra.mxu0 0.0
  %1085 = vmatpush.msra.mxu0 0.0
  %1086 = vmatpush.msra.mxu0 0.0
  %1087 = vmatpush.msra.mxu0 0.0
  %1088 = vmatpush.msra.mxu0 0.0
  %1089 = vmatpush.msra.mxu0 0.0
  %1090 = vmatpush.msra.mxu0 0.0
  %1091 = vmatpush.msra.mxu0 0.0
  %1092 = vmatpush.msra.mxu0 %v257
  %1093 = vmatpush.msra.mxu0 %v253
  %1094 = vmatpush.msra.mxu0 %v249
  %1095 = vmatpush.msra.mxu0 %v245
  %1096 = vmatmul.f32.gmra.mxu0 %v1038
  %v1097 = vpop.f32.mrf.mxu0
  %v1098 = vadd.f32 0.0, %v1097
  %1099 = vdwg.mxu0
  %1100 = vmatpush.msra.mxu0 0.0
  %1101 = vmatpush.msra.mxu0 0.0
  %1102 = vmatpush.msra.mxu0 0.0
  %1103 = vmatpush.msra.mxu0 0.0
  %1104 = vmatpush.msra.mxu0 0.0
  %1105 = vmatpush.msra.mxu0 0.0
  %1106 = vmatpush.msra.mxu0 0.0
  %1107 = vmatpush.msra.mxu0 0.0
  %1108 = vmatpush.msra.mxu0 0.0
  %1109 = vmatpush.msra.mxu0 0.0
  %1110 = vmatpush.msra.mxu0 0.0
  %1111 = vmatpush.msra.mxu0 0.0
  %1112 = vmatpush.msra.mxu0 %v258
  %1113 = vmatpush.msra.mxu0 %v254
  %1114 = vmatpush.msra.mxu0 %v250
  %1115 = vmatpush.msra.mxu0 %v246
  %1116 = vmatmul.f32.gmra.mxu0 %v1038
  %v1117 = vpop.f32.mrf.mxu0
  %v1118 = vadd.f32 0.0, %v1117
  %1119 = vdwg.mxu0
  %v1121 = vsel %vm65, %v1034, 0
  %1123 = vmatpush.msra.mxu0 0.0
  %1124 = vmatpush.msra.mxu0 0.0
  %1125 = vmatpush.msra.mxu0 0.0
  %1126 = vmatpush.msra.mxu0 0.0
  %1127 = vmatpush.msra.mxu0 0.0
  %1128 = vmatpush.msra.mxu0 0.0
  %1129 = vmatpush.msra.mxu0 0.0
  %1130 = vmatpush.msra.mxu0 0.0
  %1131 = vmatpush.msra.mxu0 0.0
  %1132 = vmatpush.msra.mxu0 0.0
  %1133 = vmatpush.msra.mxu0 0.0
  %1134 = vmatpush.msra.mxu0 0.0
  %1135 = vmatpush.msra.mxu0 %v239
  %1136 = vmatpush.msra.mxu0 %v235
  %1137 = vmatpush.msra.mxu0 %v231
  %1138 = vmatpush.msra.mxu0 %v227
  %1139 = vmatmul.f32.gmra.mxu0 %v1121
  %v1140 = vpop.f32.mrf.mxu0
  %v1141 = vadd.f32 %v1058, %v1140
  %1142 = vdwg.mxu0
  %1143 = vmatpush.msra.mxu0 0.0
  %1144 = vmatpush.msra.mxu0 0.0
  %1145 = vmatpush.msra.mxu0 0.0
  %1146 = vmatpush.msra.mxu0 0.0
  %1147 = vmatpush.msra.mxu0 0.0
  %1148 = vmatpush.msra.mxu0 0.0
  %1149 = vmatpush.msra.mxu0 0.0
  %1150 = vmatpush.msra.mxu0 0.0
  %1151 = vmatpush.msra.mxu0 0.0
  %1152 = vmatpush.msra.mxu0 0.0
  %1153 = vmatpush.msra.mxu0 0.0
  %1154 = vmatpush.msra.mxu0 0.0
  %1155 = vmatpush.msra.mxu0 %v240
  %1156 = vmatpush.msra.mxu0 %v236
  %1157 = vmatpush.msra.mxu0 %v232
  %1158 = vmatpush.msra.mxu0 %v228
  %1159 = vmatmul.f32.gmra.mxu0 %v1121
  %v1160 = vpop.f32.mrf.mxu0
  %v1161 = vadd.f32 %v1078, %v1160
  %1162 = vdwg.mxu0
  %1163 = vmatpush.msra.mxu0 0.0
  %1164 = vmatpush.msra.mxu0 0.0
  %1165 = vmatpush.msra.mxu0 0.0
  %1166 = vmatpush.msra.mxu0 0.0
  %1167 = vmatpush.msra.mxu0 0.0
  %1168 = vmatpush.msra.mxu0 0.0
  %1169 = vmatpush.msra.mxu0 0.0
  %1170 = vmatpush.msra.mxu0 0.0
  %1171 = vmatpush.msra.mxu0 0.0
  %1172 = vmatpush.msra.mxu0 0.0
  %1173 = vmatpush.msra.mxu0 0.0
  %1174 = vmatpush.msra.mxu0 0.0
  %1175 = vmatpush.msra.mxu0 %v241
  %1176 = vmatpush.msra.mxu0 %v237
  %1177 = vmatpush.msra.mxu0 %v233
  %1178 = vmatpush.msra.mxu0 %v229
  %1179 = vmatmul.f32.gmra.mxu0 %v1121
  %v1180 = vpop.f32.mrf.mxu0
  %v1181 = vadd.f32 %v1098, %v1180
  %1182 = vdwg.mxu0
  %1183 = vmatpush.msra.mxu0 0.0
  %1184 = vmatpush.msra.mxu0 0.0
  %1185 = vmatpush.msra.mxu0 0.0
  %1186 = vmatpush.msra.mxu0 0.0
  %1187 = vmatpush.msra.mxu0 0.0
  %1188 = vmatpush.msra.mxu0 0.0
  %1189 = vmatpush.msra.mxu0 0.0
  %1190 = vmatpush.msra.mxu0 0.0
  %1191 = vmatpush.msra.mxu0 0.0
  %1192 = vmatpush.msra.mxu0 0.0
  %1193 = vmatpush.msra.mxu0 0.0
  %1194 = vmatpush.msra.mxu0 0.0
  %1195 = vmatpush.msra.mxu0 %v242
  %1196 = vmatpush.msra.mxu0 %v238
  %1197 = vmatpush.msra.mxu0 %v234
  %1198 = vmatpush.msra.mxu0 %v230
  %1199 = vmatmul.f32.gmra.mxu0 %v1121
  %v1200 = vpop.f32.mrf.mxu0
  %v1201 = vadd.f32 %v1118, %v1200
  %1202 = vdwg.mxu0
  %1203 = vmatpush.msra.mxu0 %v319
  %1204 = vmatpush.msra.mxu0 %v315
  %1205 = vmatpush.msra.mxu0 %v311
  %1206 = vmatpush.msra.mxu0 %v307
  %1207 = vmatpush.msra.mxu0 %v303
  %1208 = vmatpush.msra.mxu0 %v299
  %1209 = vmatpush.msra.mxu0 %v295
  %1210 = vmatpush.msra.mxu0 %v291
  %1211 = vmatpush.msra.mxu0 %v287
  %1212 = vmatpush.msra.mxu0 %v283
  %1213 = vmatpush.msra.mxu0 %v279
  %1214 = vmatpush.msra.mxu0 %v275
  %1215 = vmatpush.msra.mxu0 %v271
  %1216 = vmatpush.msra.mxu0 %v267
  %1217 = vmatpush.msra.mxu0 %v263
  %1218 = vmatpush.msra.mxu0 %v259
  %1219 = vmatmul.f32.gmra.mxu0 %v847
  %v1220 = vpop.f32.mrf.mxu0
  %v1221 = vadd.f32 0.0, %v1220
  %1222 = vdwg.mxu0
  %1223 = vmatpush.msra.mxu0 %v320
  %1224 = vmatpush.msra.mxu0 %v316
  %1225 = vmatpush.msra.mxu0 %v312
  %1226 = vmatpush.msra.mxu0 %v308
  %1227 = vmatpush.msra.mxu0 %v304
  %1228 = vmatpush.msra.mxu0 %v300
  %1229 = vmatpush.msra.mxu0 %v296
  %1230 = vmatpush.msra.mxu0 %v292
  %1231 = vmatpush.msra.mxu0 %v288
  %1232 = vmatpush.msra.mxu0 %v284
  %1233 = vmatpush.msra.mxu0 %v280
  %1234 = vmatpush.msra.mxu0 %v276
  %1235 = vmatpush.msra.mxu0 %v272
  %1236 = vmatpush.msra.mxu0 %v268
  %1237 = vmatpush.msra.mxu0 %v264
  %1238 = vmatpush.msra.mxu0 %v260
  %1239 = vmatmul.f32.gmra.mxu0 %v847
  %v1240 = vpop.f32.mrf.mxu0
  %v1241 = vadd.f32 0.0, %v1240
  %1242 = vdwg.mxu0
  %1243 = vmatpush.msra.mxu0 %v321
  %1244 = vmatpush.msra.mxu0 %v317
  %1245 = vmatpush.msra.mxu0 %v313
  %1246 = vmatpush.msra.mxu0 %v309
  %1247 = vmatpush.msra.mxu0 %v305
  %1248 = vmatpush.msra.mxu0 %v301
  %1249 = vmatpush.msra.mxu0 %v297
  %1250 = vmatpush.msra.mxu0 %v293
  %1251 = vmatpush.msra.mxu0 %v289
  %1252 = vmatpush.msra.mxu0 %v285
  %1253 = vmatpush.msra.mxu0 %v281
  %1254 = vmatpush.msra.mxu0 %v277
  %1255 = vmatpush.msra.mxu0 %v273
  %1256 = vmatpush.msra.mxu0 %v269
  %1257 = vmatpush.msra.mxu0 %v265
  %1258 = vmatpush.msra.mxu0 %v261
  %1259 = vmatmul.f32.gmra.mxu0 %v847
  %v1260 = vpop.f32.mrf.mxu0
  %v1261 = vadd.f32 0.0, %v1260
  %1262 = vdwg.mxu0
  %1263 = vmatpush.msra.mxu0 %v322
  %1264 = vmatpush.msra.mxu0 %v318
  %1265 = vmatpush.msra.mxu0 %v314
  %1266 = vmatpush.msra.mxu0 %v310
  %1267 = vmatpush.msra.mxu0 %v306
  %1268 = vmatpush.msra.mxu0 %v302
  %1269 = vmatpush.msra.mxu0 %v298
  %1270 = vmatpush.msra.mxu0 %v294
  %1271 = vmatpush.msra.mxu0 %v290
  %1272 = vmatpush.msra.mxu0 %v286
  %1273 = vmatpush.msra.mxu0 %v282
  %1274 = vmatpush.msra.mxu0 %v278
  %1275 = vmatpush.msra.mxu0 %v274
  %1276 = vmatpush.msra.mxu0 %v270
  %1277 = vmatpush.msra.mxu0 %v266
  %1278 = vmatpush.msra.mxu0 %v262
  %1279 = vmatmul.f32.gmra.mxu0 %v847
  %v1280 = vpop.f32.mrf.mxu0
  %v1281 = vadd.f32 0.0, %v1280
  %1282 = vdwg.mxu0
  %v1283 = vadd.f32 %v1141, %v1221
  %v1284 = vadd.f32 %v1161, %v1241
  %v1285 = vadd.f32 %v1181, %v1261
  %v1286 = vadd.f32 %v1201, %v1281
  %v1287 = vadd.f32 %v1283, %v773
  %v1288 = vadd.f32 %v1284, %v774
  %v1289 = vadd.f32 %v1285, %v775
  %v1290 = vadd.f32 %v1286, %v776
  %v1291 = vxor.u32 %v1287, 2147483648
  %v1292 = vmul.f32 %v1291, 1.442695
  %v1293 = vpow.pop %v1292
  %v1294 = vadd.f32 %v1293, 1.0
  %v1295 = vrcp.pop %v1294
  %v1296 = vmul.f32 %v1294, %v1295
  %v1297 = vsub.f32 1.0, %v1296
  %v1298 = vmul.f32 %v1295, %v1297
  %v1299 = vadd.f32 %v1295, %v1298
  %vm1300 = vweird.f32 %v1294
  %vm1301 = vweird.f32 %v1295
  %vm1302 = vmor %vm1300, %vm1301
  %v1303 = vsel %vm1302, %v1295, %v1299
  %v1304 = vand.u32 2147483647, %v1294
  %vm1305 = vcmp.eq.f32.partialorder %v1304, 8.507059e+37
  %v1306 = vand.u32 %v1294, 2147483648
  %v1307 = vor.u32 1.1754944e-38, %v1306
  %v1308 = vsel %vm1305, %v1307, %v1303
  %v1309 = vmul.f32 1.0, %v1308
  %v1310 = vxor.u32 %v1288, 2147483648
  %v1311 = vmul.f32 %v1310, 1.442695
  %v1312 = vpow.pop %v1311
  %v1313 = vadd.f32 %v1312, 1.0
  %v1314 = vrcp.pop %v1313
  %v1315 = vmul.f32 %v1313, %v1314
  %v1316 = vsub.f32 1.0, %v1315
  %v1317 = vmul.f32 %v1314, %v1316
  %v1318 = vadd.f32 %v1314, %v1317
  %vm1319 = vweird.f32 %v1313
  %vm1320 = vweird.f32 %v1314
  %vm1321 = vmor %vm1319, %vm1320
  %v1322 = vsel %vm1321, %v1314, %v1318
  %v1323 = vand.u32 2147483647, %v1313
  %vm1324 = vcmp.eq.f32.partialorder %v1323, 8.507059e+37
  %v1325 = vand.u32 %v1313, 2147483648
  %v1326 = vor.u32 1.1754944e-38, %v1325
  %v1327 = vsel %vm1324, %v1326, %v1322
  %v1328 = vmul.f32 1.0, %v1327
  %v1329 = vtanh.pop %v1289
  %v1330 = vxor.u32 %v1290, 2147483648
  %v1331 = vmul.f32 %v1330, 1.442695
  %v1332 = vpow.pop %v1331
  %v1333 = vadd.f32 %v1332, 1.0
  %v1334 = vrcp.pop %v1333
  %v1335 = vmul.f32 %v1333, %v1334
  %v1336 = vsub.f32 1.0, %v1335
  %v1337 = vmul.f32 %v1334, %v1336
  %v1338 = vadd.f32 %v1334, %v1337
  %vm1339 = vweird.f32 %v1333
  %vm1340 = vweird.f32 %v1334
  %vm1341 = vmor %vm1339, %vm1340
  %v1342 = vsel %vm1341, %v1334, %v1338
  %v1343 = vand.u32 2147483647, %v1333
  %vm1344 = vcmp.eq.f32.partialorder %v1343, 8.507059e+37
  %v1345 = vand.u32 %v1333, 2147483648
  %v1346 = vor.u32 1.1754944e-38, %v1345
  %v1347 = vsel %vm1344, %v1346, %v1342
  %v1348 = vmul.f32 1.0, %v1347
  %v1349 = vmul.f32 %v1328, %v845
  %v1350 = vmul.f32 %v1309, %v1329
  %v1351 = vadd.f32 %v1349, %v1350
  %v1352 = vtanh.pop %v1351
  %v1353 = vmul.f32 %v1348, %v1352
  %1354 = vmatpush.msra.mxu0 %v339
  %1355 = vmatpush.msra.mxu0 %v338
  %1356 = vmatpush.msra.mxu0 %v337
  %1357 = vmatpush.msra.mxu0 %v336
  %1358 = vmatpush.msra.mxu0 %v335
  %1359 = vmatpush.msra.mxu0 %v334
  %1360 = vmatpush.msra.mxu0 %v333
  %1361 = vmatpush.msra.mxu0 %v332
  %1362 = vmatpush.msra.mxu0 %v331
  %1363 = vmatpush.msra.mxu0 %v330
  %1364 = vmatpush.msra.mxu0 %v329
  %1365 = vmatpush.msra.mxu0 %v328
  %1366 = vmatpush.msra.mxu0 %v327
  %1367 = vmatpush.msra.mxu0 %v326
  %1368 = vmatpush.msra.mxu0 %v325
  %1369 = vmatpush.msra.mxu0 %v324
  %1370 = vmatmul.f32.gmra.mxu0 %v1353
  %v1371 = vpop.f32.mrf.mxu0
  %v1372 = vadd.f32 %v849, %v1371
  %1373 = vdwg.mxu0
  %s1374 = scalar_lea.vmem %s18, 2
  %1375 = vst [vmem:[%s1374] sm:$0x3] %v1372
  %1376 = vmatpush.msra.mxu0 %v225
  %1377 = vmatpush.msra.mxu0 %v224
  %1378 = vmatpush.msra.mxu0 %v223
  %1379 = vmatpush.msra.mxu0 %v222
  %1380 = vmatpush.msra.mxu0 %v221
  %1381 = vmatpush.msra.mxu0 %v220
  %1382 = vmatpush.msra.mxu0 %v219
  %1383 = vmatpush.msra.mxu0 %v218
  %1384 = vmatpush.msra.mxu0 %v217
  %1385 = vmatpush.msra.mxu0 %v216
  %1386 = vmatpush.msra.mxu0 %v215
  %1387 = vmatpush.msra.mxu0 %v214
  %1388 = vmatpush.msra.mxu0 %v213
  %1389 = vmatpush.msra.mxu0 %v212
  %1390 = vmatpush.msra.mxu0 %v211
  %1391 = vmatpush.msra.mxu0 %v210
  %1392 = vmatmul.f32.gmra.mxu0 %v1353
  %v1393 = vpop.f32.mrf.mxu0
  %v1394 = vadd.f32 %v342, %v1393
  %1395 = vdwg.mxu0
  %v1397 = vrot.slane %v1394, 1
  %v1398 = vperm.slane %v1394, 0
  %v1399 = vperm.slane %v1397, 0
  %v1402 = vadd.f32 %v204, %v1398
  %v1403 = vadd.f32 %v205, %v1398
  %v1404 = vadd.f32 %v206, %v1399
  %v1405 = vadd.f32 %v207, %v1399
  %v1406 = vtanh.pop %v1402
  %v1407 = vtanh.pop %v1403
  %v1408 = vtanh.pop %v1404
  %v1409 = vtanh.pop %v1405
  %v1410 = vmul.f32 %v1406, %v379
  %v1411 = vmul.f32 %v1407, %v379
  %v1412 = vmul.f32 %v1408, %v379
  %v1413 = vmul.f32 %v1409, %v379
  %1414 = vadd.xlane.f32.xlu0 %v1410
  %v1415 = vpop.xlane.xlu0 %1414
  %1416 = vadd.xlane.f32.xlu0 %v1411
  %v1417 = vpop.xlane.xlu0 %1416
  %1418 = vadd.xlane.f32.xlu0 %v1412
  %v1419 = vpop.xlane.xlu0 %1418
  %1420 = vadd.xlane.f32.xlu0 %v1413
  %v1421 = vpop.xlane.xlu0 %1420
  %v1422 = vadd.f32 %v1415, %v397
  %v1423 = vadd.f32 %v1417, %v397
  %v1424 = vadd.f32 %v1419, %v397
  %v1425 = vadd.f32 %v1421, %v397
  %v1430 = vperm.slane %v1422, %v408
  %v1431 = vperm.slane %v1423, %v410
  %v1432 = vsel %vm412, %v1431, %v1430
  %v1433 = vperm.slane %v1424, %v408
  %v1434 = vperm.slane %v1425, %v410
  %v1435 = vsel %vm412, %v1434, %v1433
  %v1436 = vsel %vm103, %v1435, %v1432
  %v1438 = vsel %vm419, %v1436, -inf
  %1439 = vmax.xlane.f32.xlu0 %v1438
  %v1440 = vpop.xlane.xlu0 %1439
  %v1442 = vperm.slane %v1440, 0
  %v1443 = vperm.slane %v1440, 1
  %v1446 = vsub.f32 %v1422, %v1442
  %v1447 = vsub.f32 %v1423, %v1442
  %v1448 = vsub.f32 %v1424, %v1443
  %v1449 = vsub.f32 %v1425, %v1443
  %v1450 = vmul.f32 %v1446, 1.442695
  %v1451 = vpow.pop %v1450
  %v1452 = vmul.f32 %v1447, 1.442695
  %v1453 = vpow.pop %v1452
  %v1454 = vmul.f32 %v1448, 1.442695
  %v1455 = vpow.pop %v1454
  %v1456 = vmul.f32 %v1449, 1.442695
  %v1457 = vpow.pop %v1456
  %1462 = vset.pattern.permute.xlu0 0
  %1463 = vperm.xlu0 %1462, %v1451
  %v1464 = vpop.permute.xlu0 %1463
  %1465 = vset.pattern.permute.xlu0 0
  %1466 = vperm.xlu0 %1465, %v1453
  %v1467 = vpop.permute.xlu0 %1466
  %1468 = vset.pattern.permute.xlu0 0
  %1469 = vperm.xlu0 %1468, %v1455
  %v1470 = vpop.permute.xlu0 %1469
  %1471 = vset.pattern.permute.xlu0 0
  %1472 = vperm.xlu0 %1471, %v1457
  %v1473 = vpop.permute.xlu0 %1472
  %v1474 = vperm.slane %v1464, %v408
  %v1475 = vperm.slane %v1467, %v410
  %v1476 = vsel %vm412, %v1475, %v1474
  %v1477 = vperm.slane %v1470, %v408
  %v1478 = vperm.slane %v1473, %v410
  %v1479 = vsel %vm412, %v1478, %v1477
  %v1480 = vsel %vm103, %v1479, %v1476
  %v1482 = vsel %vm419, %v1480, 0.0
  %1483 = vadd.xlane.f32.xlu0 %v1482
  %v1484 = vpop.xlane.xlu0 %1483
  %v1485 = vrcp.pop %v1484
  %v1487 = vperm.slane %v1485, 0
  %v1488 = vperm.slane %v1485, 1
  %v1491 = vmul.f32 %v1451, %v1487
  %v1492 = vmul.f32 %v1453, %v1487
  %v1493 = vmul.f32 %v1455, %v1488
  %v1494 = vmul.f32 %v1457, %v1488
  %1496 = vset.pattern.permute.xlu0 0
  %1497 = vperm.xlu0 %1496, %v1491
  %v1498 = vpop.permute.xlu0 %1497
  %1501 = vset.pattern.permute.xlu0 0
  %1502 = vperm.xlu0 %1501, %v1492
  %v1503 = vpop.permute.xlu0 %1502
  %1506 = vset.pattern.permute.xlu0 0
  %1507 = vperm.xlu0 %1506, %v1493
  %v1508 = vpop.permute.xlu0 %1507
  %1511 = vset.pattern.permute.xlu0 0
  %1512 = vperm.xlu0 %1511, %v1494
  %v1513 = vpop.permute.xlu0 %1512
  %v1515 = vmul.f32 %v61, %v1498
  %v1516 = vmul.f32 %v62, %v1503
  %v1517 = vmul.f32 %v63, %v1508
  %v1518 = vmul.f32 %v64, %v1513
  %v1519 = vsel %vm65, %v1515, 0.0
  %v1520 = vsel %vm65, %v1516, 0.0
  %v1521 = vadd.f32 %v1519, %v1520
  %v1522 = vrot.slane %v1521, 4
  %v1523 = vadd.f32 %v1521, %v1522
  %v1524 = vrot.slane %v1523, 2
  %v1525 = vadd.f32 %v1523, %v1524
  %v1526 = vrot.slane %v1525, 1
  %v1527 = vadd.f32 %v1525, %v1526
  %v1528 = vsel %vm65, %v1517, 0.0
  %v1529 = vsel %vm65, %v1518, 0.0
  %v1530 = vadd.f32 %v1528, %v1529
  %v1531 = vrot.slane %v1530, 4
  %v1532 = vadd.f32 %v1530, %v1531
  %v1533 = vrot.slane %v1532, 2
  %v1534 = vadd.f32 %v1532, %v1533
  %v1535 = vrot.slane %v1534, 1
  %v1536 = vadd.f32 %v1534, %v1535
  %s1537 = scalar_lea.vmem %s1, 4
  %v1538 = vld [vmem:[%s1537] sm:$0x3]
  %v1541 = vsel %vm103, %v1536, %v1527
  %v1542 = vsel %vm65, %v1541, 0
  %1544 = vmatpush.msra.mxu0 0.0
  %1545 = vmatpush.msra.mxu0 0.0
  %1546 = vmatpush.msra.mxu0 0.0
  %1547 = vmatpush.msra.mxu0 0.0
  %1548 = vmatpush.msra.mxu0 0.0
  %1549 = vmatpush.msra.mxu0 0.0
  %1550 = vmatpush.msra.mxu0 0.0
  %1551 = vmatpush.msra.mxu0 0.0
  %1552 = vmatpush.msra.mxu0 0.0
  %1553 = vmatpush.msra.mxu0 0.0
  %1554 = vmatpush.msra.mxu0 0.0
  %1555 = vmatpush.msra.mxu0 0.0
  %1556 = vmatpush.msra.mxu0 %v255
  %1557 = vmatpush.msra.mxu0 %v251
  %1558 = vmatpush.msra.mxu0 %v247
  %1559 = vmatpush.msra.mxu0 %v243
  %1560 = vmatmul.f32.gmra.mxu0 %v1542
  %v1561 = vpop.f32.mrf.mxu0
  %v1562 = vadd.f32 0.0, %v1561
  %1563 = vdwg.mxu0
  %1564 = vmatpush.msra.mxu0 0.0
  %1565 = vmatpush.msra.mxu0 0.0
  %1566 = vmatpush.msra.mxu0 0.0
  %1567 = vmatpush.msra.mxu0 0.0
  %1568 = vmatpush.msra.mxu0 0.0
  %1569 = vmatpush.msra.mxu0 0.0
  %1570 = vmatpush.msra.mxu0 0.0
  %1571 = vmatpush.msra.mxu0 0.0
  %1572 = vmatpush.msra.mxu0 0.0
  %1573 = vmatpush.msra.mxu0 0.0
  %1574 = vmatpush.msra.mxu0 0.0
  %1575 = vmatpush.msra.mxu0 0.0
  %1576 = vmatpush.msra.mxu0 %v256
  %1577 = vmatpush.msra.mxu0 %v252
  %1578 = vmatpush.msra.mxu0 %v248
  %1579 = vmatpush.msra.mxu0 %v244
  %1580 = vmatmul.f32.gmra.mxu0 %v1542
  %v1581 = vpop.f32.mrf.mxu0
  %v1582 = vadd.f32 0.0, %v1581
  %1583 = vdwg.mxu0
  %1584 = vmatpush.msra.mxu0 0.0
  %1585 = vmatpush.msra.mxu0 0.0
  %1586 = vmatpush.msra.mxu0 0.0
  %1587 = vmatpush.msra.mxu0 0.0
  %1588 = vmatpush.msra.mxu0 0.0
  %1589 = vmatpush.msra.mxu0 0.0
  %1590 = vmatpush.msra.mxu0 0.0
  %1591 = vmatpush.msra.mxu0 0.0
  %1592 = vmatpush.msra.mxu0 0.0
  %1593 = vmatpush.msra.mxu0 0.0
  %1594 = vmatpush.msra.mxu0 0.0
  %1595 = vmatpush.msra.mxu0 0.0
  %1596 = vmatpush.msra.mxu0 %v257
  %1597 = vmatpush.msra.mxu0 %v253
  %1598 = vmatpush.msra.mxu0 %v249
  %1599 = vmatpush.msra.mxu0 %v245
  %1600 = vmatmul.f32.gmra.mxu0 %v1542
  %v1601 = vpop.f32.mrf.mxu0
  %v1602 = vadd.f32 0.0, %v1601
  %1603 = vdwg.mxu0
  %1604 = vmatpush.msra.mxu0 0.0
  %1605 = vmatpush.msra.mxu0 0.0
  %1606 = vmatpush.msra.mxu0 0.0
  %1607 = vmatpush.msra.mxu0 0.0
  %1608 = vmatpush.msra.mxu0 0.0
  %1609 = vmatpush.msra.mxu0 0.0
  %1610 = vmatpush.msra.mxu0 0.0
  %1611 = vmatpush.msra.mxu0 0.0
  %1612 = vmatpush.msra.mxu0 0.0
  %1613 = vmatpush.msra.mxu0 0.0
  %1614 = vmatpush.msra.mxu0 0.0
  %1615 = vmatpush.msra.mxu0 0.0
  %1616 = vmatpush.msra.mxu0 %v258
  %1617 = vmatpush.msra.mxu0 %v254
  %1618 = vmatpush.msra.mxu0 %v250
  %1619 = vmatpush.msra.mxu0 %v246
  %1620 = vmatmul.f32.gmra.mxu0 %v1542
  %v1621 = vpop.f32.mrf.mxu0
  %v1622 = vadd.f32 0.0, %v1621
  %1623 = vdwg.mxu0
  %v1625 = vsel %vm65, %v1538, 0
  %1627 = vmatpush.msra.mxu0 0.0
  %1628 = vmatpush.msra.mxu0 0.0
  %1629 = vmatpush.msra.mxu0 0.0
  %1630 = vmatpush.msra.mxu0 0.0
  %1631 = vmatpush.msra.mxu0 0.0
  %1632 = vmatpush.msra.mxu0 0.0
  %1633 = vmatpush.msra.mxu0 0.0
  %1634 = vmatpush.msra.mxu0 0.0
  %1635 = vmatpush.msra.mxu0 0.0
  %1636 = vmatpush.msra.mxu0 0.0
  %1637 = vmatpush.msra.mxu0 0.0
  %1638 = vmatpush.msra.mxu0 0.0
  %1639 = vmatpush.msra.mxu0 %v239
  %1640 = vmatpush.msra.mxu0 %v235
  %1641 = vmatpush.msra.mxu0 %v231
  %1642 = vmatpush.msra.mxu0 %v227
  %1643 = vmatmul.f32.gmra.mxu0 %v1625
  %v1644 = vpop.f32.mrf.mxu0
  %v1645 = vadd.f32 %v1562, %v1644
  %1646 = vdwg.mxu0
  %1647 = vmatpush.msra.mxu0 0.0
  %1648 = vmatpush.msra.mxu0 0.0
  %1649 = vmatpush.msra.mxu0 0.0
  %1650 = vmatpush.msra.mxu0 0.0
  %1651 = vmatpush.msra.mxu0 0.0
  %1652 = vmatpush.msra.mxu0 0.0
  %1653 = vmatpush.msra.mxu0 0.0
  %1654 = vmatpush.msra.mxu0 0.0
  %1655 = vmatpush.msra.mxu0 0.0
  %1656 = vmatpush.msra.mxu0 0.0
  %1657 = vmatpush.msra.mxu0 0.0
  %1658 = vmatpush.msra.mxu0 0.0
  %1659 = vmatpush.msra.mxu0 %v240
  %1660 = vmatpush.msra.mxu0 %v236
  %1661 = vmatpush.msra.mxu0 %v232
  %1662 = vmatpush.msra.mxu0 %v228
  %1663 = vmatmul.f32.gmra.mxu0 %v1625
  %v1664 = vpop.f32.mrf.mxu0
  %v1665 = vadd.f32 %v1582, %v1664
  %1666 = vdwg.mxu0
  %1667 = vmatpush.msra.mxu0 0.0
  %1668 = vmatpush.msra.mxu0 0.0
  %1669 = vmatpush.msra.mxu0 0.0
  %1670 = vmatpush.msra.mxu0 0.0
  %1671 = vmatpush.msra.mxu0 0.0
  %1672 = vmatpush.msra.mxu0 0.0
  %1673 = vmatpush.msra.mxu0 0.0
  %1674 = vmatpush.msra.mxu0 0.0
  %1675 = vmatpush.msra.mxu0 0.0
  %1676 = vmatpush.msra.mxu0 0.0
  %1677 = vmatpush.msra.mxu0 0.0
  %1678 = vmatpush.msra.mxu0 0.0
  %1679 = vmatpush.msra.mxu0 %v241
  %1680 = vmatpush.msra.mxu0 %v237
  %1681 = vmatpush.msra.mxu0 %v233
  %1682 = vmatpush.msra.mxu0 %v229
  %1683 = vmatmul.f32.gmra.mxu0 %v1625
  %v1684 = vpop.f32.mrf.mxu0
  %v1685 = vadd.f32 %v1602, %v1684
  %1686 = vdwg.mxu0
  %1687 = vmatpush.msra.mxu0 0.0
  %1688 = vmatpush.msra.mxu0 0.0
  %1689 = vmatpush.msra.mxu0 0.0
  %1690 = vmatpush.msra.mxu0 0.0
  %1691 = vmatpush.msra.mxu0 0.0
  %1692 = vmatpush.msra.mxu0 0.0
  %1693 = vmatpush.msra.mxu0 0.0
  %1694 = vmatpush.msra.mxu0 0.0
  %1695 = vmatpush.msra.mxu0 0.0
  %1696 = vmatpush.msra.mxu0 0.0
  %1697 = vmatpush.msra.mxu0 0.0
  %1698 = vmatpush.msra.mxu0 0.0
  %1699 = vmatpush.msra.mxu0 %v242
  %1700 = vmatpush.msra.mxu0 %v238
  %1701 = vmatpush.msra.mxu0 %v234
  %1702 = vmatpush.msra.mxu0 %v230
  %1703 = vmatmul.f32.gmra.mxu0 %v1625
  %v1704 = vpop.f32.mrf.mxu0
  %v1705 = vadd.f32 %v1622, %v1704
  %1706 = vdwg.mxu0
  %1707 = vmatpush.msra.mxu0 %v319
  %1708 = vmatpush.msra.mxu0 %v315
  %1709 = vmatpush.msra.mxu0 %v311
  %1710 = vmatpush.msra.mxu0 %v307
  %1711 = vmatpush.msra.mxu0 %v303
  %1712 = vmatpush.msra.mxu0 %v299
  %1713 = vmatpush.msra.mxu0 %v295
  %1714 = vmatpush.msra.mxu0 %v291
  %1715 = vmatpush.msra.mxu0 %v287
  %1716 = vmatpush.msra.mxu0 %v283
  %1717 = vmatpush.msra.mxu0 %v279
  %1718 = vmatpush.msra.mxu0 %v275
  %1719 = vmatpush.msra.mxu0 %v271
  %1720 = vmatpush.msra.mxu0 %v267
  %1721 = vmatpush.msra.mxu0 %v263
  %1722 = vmatpush.msra.mxu0 %v259
  %1723 = vmatmul.f32.gmra.mxu0 %v1353
  %v1724 = vpop.f32.mrf.mxu0
  %v1725 = vadd.f32 0.0, %v1724
  %1726 = vdwg.mxu0
  %1727 = vmatpush.msra.mxu0 %v320
  %1728 = vmatpush.msra.mxu0 %v316
  %1729 = vmatpush.msra.mxu0 %v312
  %1730 = vmatpush.msra.mxu0 %v308
  %1731 = vmatpush.msra.mxu0 %v304
  %1732 = vmatpush.msra.mxu0 %v300
  %1733 = vmatpush.msra.mxu0 %v296
  %1734 = vmatpush.msra.mxu0 %v292
  %1735 = vmatpush.msra.mxu0 %v288
  %1736 = vmatpush.msra.mxu0 %v284
  %1737 = vmatpush.msra.mxu0 %v280
  %1738 = vmatpush.msra.mxu0 %v276
  %1739 = vmatpush.msra.mxu0 %v272
  %1740 = vmatpush.msra.mxu0 %v268
  %1741 = vmatpush.msra.mxu0 %v264
  %1742 = vmatpush.msra.mxu0 %v260
  %1743 = vmatmul.f32.gmra.mxu0 %v1353
  %v1744 = vpop.f32.mrf.mxu0
  %v1745 = vadd.f32 0.0, %v1744
  %1746 = vdwg.mxu0
  %1747 = vmatpush.msra.mxu0 %v321
  %1748 = vmatpush.msra.mxu0 %v317
  %1749 = vmatpush.msra.mxu0 %v313
  %1750 = vmatpush.msra.mxu0 %v309
  %1751 = vmatpush.msra.mxu0 %v305
  %1752 = vmatpush.msra.mxu0 %v301
  %1753 = vmatpush.msra.mxu0 %v297
  %1754 = vmatpush.msra.mxu0 %v293
  %1755 = vmatpush.msra.mxu0 %v289
  %1756 = vmatpush.msra.mxu0 %v285
  %1757 = vmatpush.msra.mxu0 %v281
  %1758 = vmatpush.msra.mxu0 %v277
  %1759 = vmatpush.msra.mxu0 %v273
  %1760 = vmatpush.msra.mxu0 %v269
  %1761 = vmatpush.msra.mxu0 %v265
  %1762 = vmatpush.msra.mxu0 %v261
  %1763 = vmatmul.f32.gmra.mxu0 %v1353
  %v1764 = vpop.f32.mrf.mxu0
  %v1765 = vadd.f32 0.0, %v1764
  %1766 = vdwg.mxu0
  %1767 = vmatpush.msra.mxu0 %v322
  %1768 = vmatpush.msra.mxu0 %v318
  %1769 = vmatpush.msra.mxu0 %v314
  %1770 = vmatpush.msra.mxu0 %v310
  %1771 = vmatpush.msra.mxu0 %v306
  %1772 = vmatpush.msra.mxu0 %v302
  %1773 = vmatpush.msra.mxu0 %v298
  %1774 = vmatpush.msra.mxu0 %v294
  %1775 = vmatpush.msra.mxu0 %v290
  %1776 = vmatpush.msra.mxu0 %v286
  %1777 = vmatpush.msra.mxu0 %v282
  %1778 = vmatpush.msra.mxu0 %v278
  %1779 = vmatpush.msra.mxu0 %v274
  %1780 = vmatpush.msra.mxu0 %v270
  %1781 = vmatpush.msra.mxu0 %v266
  %1782 = vmatpush.msra.mxu0 %v262
  %1783 = vmatmul.f32.gmra.mxu0 %v1353
  %v1784 = vpop.f32.mrf.mxu0
  %v1785 = vadd.f32 0.0, %v1784
  %1786 = vdwg.mxu0
  %v1787 = vadd.f32 %v1645, %v1725
  %v1788 = vadd.f32 %v1665, %v1745
  %v1789 = vadd.f32 %v1685, %v1765
  %v1790 = vadd.f32 %v1705, %v1785
  %v1791 = vadd.f32 %v1787, %v773
  %v1792 = vadd.f32 %v1788, %v774
  %v1793 = vadd.f32 %v1789, %v775
  %v1794 = vadd.f32 %v1790, %v776
  %v1795 = vxor.u32 %v1791, 2147483648
  %v1796 = vmul.f32 %v1795, 1.442695
  %v1797 = vpow.pop %v1796
  %v1798 = vadd.f32 %v1797, 1.0
  %v1799 = vrcp.pop %v1798
  %v1800 = vmul.f32 %v1798, %v1799
  %v1801 = vsub.f32 1.0, %v1800
  %v1802 = vmul.f32 %v1799, %v1801
  %v1803 = vadd.f32 %v1799, %v1802
  %vm1804 = vweird.f32 %v1798
  %vm1805 = vweird.f32 %v1799
  %vm1806 = vmor %vm1804, %vm1805
  %v1807 = vsel %vm1806, %v1799, %v1803
  %v1808 = vand.u32 2147483647, %v1798
  %vm1809 = vcmp.eq.f32.partialorder %v1808, 8.507059e+37
  %v1810 = vand.u32 %v1798, 2147483648
  %v1811 = vor.u32 1.1754944e-38, %v1810
  %v1812 = vsel %vm1809, %v1811, %v1807
  %v1813 = vmul.f32 1.0, %v1812
  %v1814 = vxor.u32 %v1792, 2147483648
  %v1815 = vmul.f32 %v1814, 1.442695
  %v1816 = vpow.pop %v1815
  %v1817 = vadd.f32 %v1816, 1.0
  %v1818 = vrcp.pop %v1817
  %v1819 = vmul.f32 %v1817, %v1818
  %v1820 = vsub.f32 1.0, %v1819
  %v1821 = vmul.f32 %v1818, %v1820
  %v1822 = vadd.f32 %v1818, %v1821
  %vm1823 = vweird.f32 %v1817
  %vm1824 = vweird.f32 %v1818
  %vm1825 = vmor %vm1823, %vm1824
  %v1826 = vsel %vm1825, %v1818, %v1822
  %v1827 = vand.u32 2147483647, %v1817
  %vm1828 = vcmp.eq.f32.partialorder %v1827, 8.507059e+37
  %v1829 = vand.u32 %v1817, 2147483648
  %v1830 = vor.u32 1.1754944e-38, %v1829
  %v1831 = vsel %vm1828, %v1830, %v1826
  %v1832 = vmul.f32 1.0, %v1831
  %v1833 = vtanh.pop %v1793
  %v1834 = vxor.u32 %v1794, 2147483648
  %v1835 = vmul.f32 %v1834, 1.442695
  %v1836 = vpow.pop %v1835
  %v1837 = vadd.f32 %v1836, 1.0
  %v1838 = vrcp.pop %v1837
  %v1839 = vmul.f32 %v1837, %v1838
  %v1840 = vsub.f32 1.0, %v1839
  %v1841 = vmul.f32 %v1838, %v1840
  %v1842 = vadd.f32 %v1838, %v1841
  %vm1843 = vweird.f32 %v1837
  %vm1844 = vweird.f32 %v1838
  %vm1845 = vmor %vm1843, %vm1844
  %v1846 = vsel %vm1845, %v1838, %v1842
  %v1847 = vand.u32 2147483647, %v1837
  %vm1848 = vcmp.eq.f32.partialorder %v1847, 8.507059e+37
  %v1849 = vand.u32 %v1837, 2147483648
  %v1850 = vor.u32 1.1754944e-38, %v1849
  %v1851 = vsel %vm1848, %v1850, %v1846
  %v1852 = vmul.f32 1.0, %v1851
  %v1853 = vmul.f32 %v1832, %v1351
  %v1854 = vmul.f32 %v1813, %v1833
  %v1855 = vadd.f32 %v1853, %v1854
  %v1856 = vtanh.pop %v1855
  %v1857 = vmul.f32 %v1852, %v1856
  %1858 = vmatpush.msra.mxu0 %v339
  %1859 = vmatpush.msra.mxu0 %v338
  %1860 = vmatpush.msra.mxu0 %v337
  %1861 = vmatpush.msra.mxu0 %v336
  %1862 = vmatpush.msra.mxu0 %v335
  %1863 = vmatpush.msra.mxu0 %v334
  %1864 = vmatpush.msra.mxu0 %v333
  %1865 = vmatpush.msra.mxu0 %v332
  %1866 = vmatpush.msra.mxu0 %v331
  %1867 = vmatpush.msra.mxu0 %v330
  %1868 = vmatpush.msra.mxu0 %v329
  %1869 = vmatpush.msra.mxu0 %v328
  %1870 = vmatpush.msra.mxu0 %v327
  %1871 = vmatpush.msra.mxu0 %v326
  %1872 = vmatpush.msra.mxu0 %v325
  %1873 = vmatpush.msra.mxu0 %v324
  %1874 = vmatmul.f32.gmra.mxu0 %v1857
  %v1875 = vpop.f32.mrf.mxu0
  %v1876 = vadd.f32 %v849, %v1875
  %1877 = vdwg.mxu0
  %s1878 = scalar_lea.vmem %s18, 4
  %1879 = vst [vmem:[%s1878] sm:$0x3] %v1876
  %1880 = vmatpush.msra.mxu0 %v225
  %1881 = vmatpush.msra.mxu0 %v224
  %1882 = vmatpush.msra.mxu0 %v223
  %1883 = vmatpush.msra.mxu0 %v222
  %1884 = vmatpush.msra.mxu0 %v221
  %1885 = vmatpush.msra.mxu0 %v220
  %1886 = vmatpush.msra.mxu0 %v219
  %1887 = vmatpush.msra.mxu0 %v218
  %1888 = vmatpush.msra.mxu0 %v217
  %1889 = vmatpush.msra.mxu0 %v216
  %1890 = vmatpush.msra.mxu0 %v215
  %1891 = vmatpush.msra.mxu0 %v214
  %1892 = vmatpush.msra.mxu0 %v213
  %1893 = vmatpush.msra.mxu0 %v212
  %1894 = vmatpush.msra.mxu0 %v211
  %1895 = vmatpush.msra.mxu0 %v210
  %1896 = vmatmul.f32.gmra.mxu0 %v1857
  %v1897 = vpop.f32.mrf.mxu0
  %v1898 = vadd.f32 %v342, %v1897
  %1899 = vdwg.mxu0
  %v1901 = vrot.slane %v1898, 1
  %v1902 = vperm.slane %v1898, 0
  %v1903 = vperm.slane %v1901, 0
  %v1906 = vadd.f32 %v204, %v1902
  %v1907 = vadd.f32 %v205, %v1902
  %v1908 = vadd.f32 %v206, %v1903
  %v1909 = vadd.f32 %v207, %v1903
  %v1910 = vtanh.pop %v1906
  %v1911 = vtanh.pop %v1907
  %v1912 = vtanh.pop %v1908
  %v1913 = vtanh.pop %v1909
  %v1914 = vmul.f32 %v1910, %v379
  %v1915 = vmul.f32 %v1911, %v379
  %v1916 = vmul.f32 %v1912, %v379
  %v1917 = vmul.f32 %v1913, %v379
  %1918 = vadd.xlane.f32.xlu0 %v1914
  %v1919 = vpop.xlane.xlu0 %1918
  %1920 = vadd.xlane.f32.xlu0 %v1915
  %v1921 = vpop.xlane.xlu0 %1920
  %1922 = vadd.xlane.f32.xlu0 %v1916
  %v1923 = vpop.xlane.xlu0 %1922
  %1924 = vadd.xlane.f32.xlu0 %v1917
  %v1925 = vpop.xlane.xlu0 %1924
  %v1926 = vadd.f32 %v1919, %v397
  %v1927 = vadd.f32 %v1921, %v397
  %v1928 = vadd.f32 %v1923, %v397
  %v1929 = vadd.f32 %v1925, %v397
  %v1934 = vperm.slane %v1926, %v408
  %v1935 = vperm.slane %v1927, %v410
  %v1936 = vsel %vm412, %v1935, %v1934
  %v1937 = vperm.slane %v1928, %v408
  %v1938 = vperm.slane %v1929, %v410
  %v1939 = vsel %vm412, %v1938, %v1937
  %v1940 = vsel %vm103, %v1939, %v1936
  %v1942 = vsel %vm419, %v1940, -inf
  %1943 = vmax.xlane.f32.xlu0 %v1942
  %v1944 = vpop.xlane.xlu0 %1943
  %v1946 = vperm.slane %v1944, 0
  %v1947 = vperm.slane %v1944, 1
  %v1950 = vsub.f32 %v1926, %v1946
  %v1951 = vsub.f32 %v1927, %v1946
  %v1952 = vsub.f32 %v1928, %v1947
  %v1953 = vsub.f32 %v1929, %v1947
  %v1954 = vmul.f32 %v1950, 1.442695
  %v1955 = vpow.pop %v1954
  %v1956 = vmul.f32 %v1951, 1.442695
  %v1957 = vpow.pop %v1956
  %v1958 = vmul.f32 %v1952, 1.442695
  %v1959 = vpow.pop %v1958
  %v1960 = vmul.f32 %v1953, 1.442695
  %v1961 = vpow.pop %v1960
  %1966 = vset.pattern.permute.xlu0 0
  %1967 = vperm.xlu0 %1966, %v1955
  %v1968 = vpop.permute.xlu0 %1967
  %1969 = vset.pattern.permute.xlu0 0
  %1970 = vperm.xlu0 %1969, %v1957
  %v1971 = vpop.permute.xlu0 %1970
  %1972 = vset.pattern.permute.xlu0 0
  %1973 = vperm.xlu0 %1972, %v1959
  %v1974 = vpop.permute.xlu0 %1973
  %1975 = vset.pattern.permute.xlu0 0
  %1976 = vperm.xlu0 %1975, %v1961
  %v1977 = vpop.permute.xlu0 %1976
  %v1978 = vperm.slane %v1968, %v408
  %v1979 = vperm.slane %v1971, %v410
  %v1980 = vsel %vm412, %v1979, %v1978
  %v1981 = vperm.slane %v1974, %v408
  %v1982 = vperm.slane %v1977, %v410
  %v1983 = vsel %vm412, %v1982, %v1981
  %v1984 = vsel %vm103, %v1983, %v1980
  %v1986 = vsel %vm419, %v1984, 0.0
  %1987 = vadd.xlane.f32.xlu0 %v1986
  %v1988 = vpop.xlane.xlu0 %1987
  %v1989 = vrcp.pop %v1988
  %v1991 = vperm.slane %v1989, 0
  %v1992 = vperm.slane %v1989, 1
  %v1995 = vmul.f32 %v1955, %v1991
  %v1996 = vmul.f32 %v1957, %v1991
  %v1997 = vmul.f32 %v1959, %v1992
  %v1998 = vmul.f32 %v1961, %v1992
  %2000 = vset.pattern.permute.xlu0 0
  %2001 = vperm.xlu0 %2000, %v1995
  %v2002 = vpop.permute.xlu0 %2001
  %2005 = vset.pattern.permute.xlu0 0
  %2006 = vperm.xlu0 %2005, %v1996
  %v2007 = vpop.permute.xlu0 %2006
  %2010 = vset.pattern.permute.xlu0 0
  %2011 = vperm.xlu0 %2010, %v1997
  %v2012 = vpop.permute.xlu0 %2011
  %2015 = vset.pattern.permute.xlu0 0
  %2016 = vperm.xlu0 %2015, %v1998
  %v2017 = vpop.permute.xlu0 %2016
  %v2019 = vmul.f32 %v61, %v2002
  %v2020 = vmul.f32 %v62, %v2007
  %v2021 = vmul.f32 %v63, %v2012
  %v2022 = vmul.f32 %v64, %v2017
  %v2023 = vsel %vm65, %v2019, 0.0
  %v2024 = vsel %vm65, %v2020, 0.0
  %v2025 = vadd.f32 %v2023, %v2024
  %v2026 = vrot.slane %v2025, 4
  %v2027 = vadd.f32 %v2025, %v2026
  %v2028 = vrot.slane %v2027, 2
  %v2029 = vadd.f32 %v2027, %v2028
  %v2030 = vrot.slane %v2029, 1
  %v2031 = vadd.f32 %v2029, %v2030
  %v2032 = vsel %vm65, %v2021, 0.0
  %v2033 = vsel %vm65, %v2022, 0.0
  %v2034 = vadd.f32 %v2032, %v2033
  %v2035 = vrot.slane %v2034, 4
  %v2036 = vadd.f32 %v2034, %v2035
  %v2037 = vrot.slane %v2036, 2
  %v2038 = vadd.f32 %v2036, %v2037
  %v2039 = vrot.slane %v2038, 1
  %v2040 = vadd.f32 %v2038, %v2039
  %s2041 = scalar_lea.vmem %s1, 6
  %v2042 = vld [vmem:[%s2041] sm:$0x3]
  %v2045 = vsel %vm103, %v2040, %v2031
  %v2046 = vsel %vm65, %v2045, 0
  %2048 = vmatpush.msra.mxu0 0.0
  %2049 = vmatpush.msra.mxu0 0.0
  %2050 = vmatpush.msra.mxu0 0.0
  %2051 = vmatpush.msra.mxu0 0.0
  %2052 = vmatpush.msra.mxu0 0.0
  %2053 = vmatpush.msra.mxu0 0.0
  %2054 = vmatpush.msra.mxu0 0.0
  %2055 = vmatpush.msra.mxu0 0.0
  %2056 = vmatpush.msra.mxu0 0.0
  %2057 = vmatpush.msra.mxu0 0.0
  %2058 = vmatpush.msra.mxu0 0.0
  %2059 = vmatpush.msra.mxu0 0.0
  %2060 = vmatpush.msra.mxu0 %v255
  %2061 = vmatpush.msra.mxu0 %v251
  %2062 = vmatpush.msra.mxu0 %v247
  %2063 = vmatpush.msra.mxu0 %v243
  %2064 = vmatmul.f32.gmra.mxu0 %v2046
  %v2065 = vpop.f32.mrf.mxu0
  %v2066 = vadd.f32 0.0, %v2065
  %2067 = vdwg.mxu0
  %2068 = vmatpush.msra.mxu0 0.0
  %2069 = vmatpush.msra.mxu0 0.0
  %2070 = vmatpush.msra.mxu0 0.0
  %2071 = vmatpush.msra.mxu0 0.0
  %2072 = vmatpush.msra.mxu0 0.0
  %2073 = vmatpush.msra.mxu0 0.0
  %2074 = vmatpush.msra.mxu0 0.0
  %2075 = vmatpush.msra.mxu0 0.0
  %2076 = vmatpush.msra.mxu0 0.0
  %2077 = vmatpush.msra.mxu0 0.0
  %2078 = vmatpush.msra.mxu0 0.0
  %2079 = vmatpush.msra.mxu0 0.0
  %2080 = vmatpush.msra.mxu0 %v256
  %2081 = vmatpush.msra.mxu0 %v252
  %2082 = vmatpush.msra.mxu0 %v248
  %2083 = vmatpush.msra.mxu0 %v244
  %2084 = vmatmul.f32.gmra.mxu0 %v2046
  %v2085 = vpop.f32.mrf.mxu0
  %v2086 = vadd.f32 0.0, %v2085
  %2087 = vdwg.mxu0
  %2088 = vmatpush.msra.mxu0 0.0
  %2089 = vmatpush.msra.mxu0 0.0
  %2090 = vmatpush.msra.mxu0 0.0
  %2091 = vmatpush.msra.mxu0 0.0
  %2092 = vmatpush.msra.mxu0 0.0
  %2093 = vmatpush.msra.mxu0 0.0
  %2094 = vmatpush.msra.mxu0 0.0
  %2095 = vmatpush.msra.mxu0 0.0
  %2096 = vmatpush.msra.mxu0 0.0
  %2097 = vmatpush.msra.mxu0 0.0
  %2098 = vmatpush.msra.mxu0 0.0
  %2099 = vmatpush.msra.mxu0 0.0
  %2100 = vmatpush.msra.mxu0 %v257
  %2101 = vmatpush.msra.mxu0 %v253
  %2102 = vmatpush.msra.mxu0 %v249
  %2103 = vmatpush.msra.mxu0 %v245
  %2104 = vmatmul.f32.gmra.mxu0 %v2046
  %v2105 = vpop.f32.mrf.mxu0
  %v2106 = vadd.f32 0.0, %v2105
  %2107 = vdwg.mxu0
  %2108 = vmatpush.msra.mxu0 0.0
  %2109 = vmatpush.msra.mxu0 0.0
  %2110 = vmatpush.msra.mxu0 0.0
  %2111 = vmatpush.msra.mxu0 0.0
  %2112 = vmatpush.msra.mxu0 0.0
  %2113 = vmatpush.msra.mxu0 0.0
  %2114 = vmatpush.msra.mxu0 0.0
  %2115 = vmatpush.msra.mxu0 0.0
  %2116 = vmatpush.msra.mxu0 0.0
  %2117 = vmatpush.msra.mxu0 0.0
  %2118 = vmatpush.msra.mxu0 0.0
  %2119 = vmatpush.msra.mxu0 0.0
  %2120 = vmatpush.msra.mxu0 %v258
  %2121 = vmatpush.msra.mxu0 %v254
  %2122 = vmatpush.msra.mxu0 %v250
  %2123 = vmatpush.msra.mxu0 %v246
  %2124 = vmatmul.f32.gmra.mxu0 %v2046
  %v2125 = vpop.f32.mrf.mxu0
  %v2126 = vadd.f32 0.0, %v2125
  %2127 = vdwg.mxu0
  %v2129 = vsel %vm65, %v2042, 0
  %2131 = vmatpush.msra.mxu0 0.0
  %2132 = vmatpush.msra.mxu0 0.0
  %2133 = vmatpush.msra.mxu0 0.0
  %2134 = vmatpush.msra.mxu0 0.0
  %2135 = vmatpush.msra.mxu0 0.0
  %2136 = vmatpush.msra.mxu0 0.0
  %2137 = vmatpush.msra.mxu0 0.0
  %2138 = vmatpush.msra.mxu0 0.0
  %2139 = vmatpush.msra.mxu0 0.0
  %2140 = vmatpush.msra.mxu0 0.0
  %2141 = vmatpush.msra.mxu0 0.0
  %2142 = vmatpush.msra.mxu0 0.0
  %2143 = vmatpush.msra.mxu0 %v239
  %2144 = vmatpush.msra.mxu0 %v235
  %2145 = vmatpush.msra.mxu0 %v231
  %2146 = vmatpush.msra.mxu0 %v227
  %2147 = vmatmul.f32.gmra.mxu0 %v2129
  %v2148 = vpop.f32.mrf.mxu0
  %v2149 = vadd.f32 %v2066, %v2148
  %2150 = vdwg.mxu0
  %2151 = vmatpush.msra.mxu0 0.0
  %2152 = vmatpush.msra.mxu0 0.0
  %2153 = vmatpush.msra.mxu0 0.0
  %2154 = vmatpush.msra.mxu0 0.0
  %2155 = vmatpush.msra.mxu0 0.0
  %2156 = vmatpush.msra.mxu0 0.0
  %2157 = vmatpush.msra.mxu0 0.0
  %2158 = vmatpush.msra.mxu0 0.0
  %2159 = vmatpush.msra.mxu0 0.0
  %2160 = vmatpush.msra.mxu0 0.0
  %2161 = vmatpush.msra.mxu0 0.0
  %2162 = vmatpush.msra.mxu0 0.0
  %2163 = vmatpush.msra.mxu0 %v240
  %2164 = vmatpush.msra.mxu0 %v236
  %2165 = vmatpush.msra.mxu0 %v232
  %2166 = vmatpush.msra.mxu0 %v228
  %2167 = vmatmul.f32.gmra.mxu0 %v2129
  %v2168 = vpop.f32.mrf.mxu0
  %v2169 = vadd.f32 %v2086, %v2168
  %2170 = vdwg.mxu0
  %2171 = vmatpush.msra.mxu0 0.0
  %2172 = vmatpush.msra.mxu0 0.0
  %2173 = vmatpush.msra.mxu0 0.0
  %2174 = vmatpush.msra.mxu0 0.0
  %2175 = vmatpush.msra.mxu0 0.0
  %2176 = vmatpush.msra.mxu0 0.0
  %2177 = vmatpush.msra.mxu0 0.0
  %2178 = vmatpush.msra.mxu0 0.0
  %2179 = vmatpush.msra.mxu0 0.0
  %2180 = vmatpush.msra.mxu0 0.0
  %2181 = vmatpush.msra.mxu0 0.0
  %2182 = vmatpush.msra.mxu0 0.0
  %2183 = vmatpush.msra.mxu0 %v241
  %2184 = vmatpush.msra.mxu0 %v237
  %2185 = vmatpush.msra.mxu0 %v233
  %2186 = vmatpush.msra.mxu0 %v229
  %2187 = vmatmul.f32.gmra.mxu0 %v2129
  %v2188 = vpop.f32.mrf.mxu0
  %v2189 = vadd.f32 %v2106, %v2188
  %2190 = vdwg.mxu0
  %2191 = vmatpush.msra.mxu0 0.0
  %2192 = vmatpush.msra.mxu0 0.0
  %2193 = vmatpush.msra.mxu0 0.0
  %2194 = vmatpush.msra.mxu0 0.0
  %2195 = vmatpush.msra.mxu0 0.0
  %2196 = vmatpush.msra.mxu0 0.0
  %2197 = vmatpush.msra.mxu0 0.0
  %2198 = vmatpush.msra.mxu0 0.0
  %2199 = vmatpush.msra.mxu0 0.0
  %2200 = vmatpush.msra.mxu0 0.0
  %2201 = vmatpush.msra.mxu0 0.0
  %2202 = vmatpush.msra.mxu0 0.0
  %2203 = vmatpush.msra.mxu0 %v242
  %2204 = vmatpush.msra.mxu0 %v238
  %2205 = vmatpush.msra.mxu0 %v234
  %2206 = vmatpush.msra.mxu0 %v230
  %2207 = vmatmul.f32.gmra.mxu0 %v2129
  %v2208 = vpop.f32.mrf.mxu0
  %v2209 = vadd.f32 %v2126, %v2208
  %2210 = vdwg.mxu0
  %2211 = vmatpush.msra.mxu0 %v319
  %2212 = vmatpush.msra.mxu0 %v315
  %2213 = vmatpush.msra.mxu0 %v311
  %2214 = vmatpush.msra.mxu0 %v307
  %2215 = vmatpush.msra.mxu0 %v303
  %2216 = vmatpush.msra.mxu0 %v299
  %2217 = vmatpush.msra.mxu0 %v295
  %2218 = vmatpush.msra.mxu0 %v291
  %2219 = vmatpush.msra.mxu0 %v287
  %2220 = vmatpush.msra.mxu0 %v283
  %2221 = vmatpush.msra.mxu0 %v279
  %2222 = vmatpush.msra.mxu0 %v275
  %2223 = vmatpush.msra.mxu0 %v271
  %2224 = vmatpush.msra.mxu0 %v267
  %2225 = vmatpush.msra.mxu0 %v263
  %2226 = vmatpush.msra.mxu0 %v259
  %2227 = vmatmul.f32.gmra.mxu0 %v1857
  %v2228 = vpop.f32.mrf.mxu0
  %v2229 = vadd.f32 0.0, %v2228
  %2230 = vdwg.mxu0
  %2231 = vmatpush.msra.mxu0 %v320
  %2232 = vmatpush.msra.mxu0 %v316
  %2233 = vmatpush.msra.mxu0 %v312
  %2234 = vmatpush.msra.mxu0 %v308
  %2235 = vmatpush.msra.mxu0 %v304
  %2236 = vmatpush.msra.mxu0 %v300
  %2237 = vmatpush.msra.mxu0 %v296
  %2238 = vmatpush.msra.mxu0 %v292
  %2239 = vmatpush.msra.mxu0 %v288
  %2240 = vmatpush.msra.mxu0 %v284
  %2241 = vmatpush.msra.mxu0 %v280
  %2242 = vmatpush.msra.mxu0 %v276
  %2243 = vmatpush.msra.mxu0 %v272
  %2244 = vmatpush.msra.mxu0 %v268
  %2245 = vmatpush.msra.mxu0 %v264
  %2246 = vmatpush.msra.mxu0 %v260
  %2247 = vmatmul.f32.gmra.mxu0 %v1857
  %v2248 = vpop.f32.mrf.mxu0
  %v2249 = vadd.f32 0.0, %v2248
  %2250 = vdwg.mxu0
  %2251 = vmatpush.msra.mxu0 %v321
  %2252 = vmatpush.msra.mxu0 %v317
  %2253 = vmatpush.msra.mxu0 %v313
  %2254 = vmatpush.msra.mxu0 %v309
  %2255 = vmatpush.msra.mxu0 %v305
  %2256 = vmatpush.msra.mxu0 %v301
  %2257 = vmatpush.msra.mxu0 %v297
  %2258 = vmatpush.msra.mxu0 %v293
  %2259 = vmatpush.msra.mxu0 %v289
  %2260 = vmatpush.msra.mxu0 %v285
  %2261 = vmatpush.msra.mxu0 %v281
  %2262 = vmatpush.msra.mxu0 %v277
  %2263 = vmatpush.msra.mxu0 %v273
  %2264 = vmatpush.msra.mxu0 %v269
  %2265 = vmatpush.msra.mxu0 %v265
  %2266 = vmatpush.msra.mxu0 %v261
  %2267 = vmatmul.f32.gmra.mxu0 %v1857
  %v2268 = vpop.f32.mrf.mxu0
  %v2269 = vadd.f32 0.0, %v2268
  %2270 = vdwg.mxu0
  %2271 = vmatpush.msra.mxu0 %v322
  %2272 = vmatpush.msra.mxu0 %v318
  %2273 = vmatpush.msra.mxu0 %v314
  %2274 = vmatpush.msra.mxu0 %v310
  %2275 = vmatpush.msra.mxu0 %v306
  %2276 = vmatpush.msra.mxu0 %v302
  %2277 = vmatpush.msra.mxu0 %v298
  %2278 = vmatpush.msra.mxu0 %v294
  %2279 = vmatpush.msra.mxu0 %v290
  %2280 = vmatpush.msra.mxu0 %v286
  %2281 = vmatpush.msra.mxu0 %v282
  %2282 = vmatpush.msra.mxu0 %v278
  %2283 = vmatpush.msra.mxu0 %v274
  %2284 = vmatpush.msra.mxu0 %v270
  %2285 = vmatpush.msra.mxu0 %v266
  %2286 = vmatpush.msra.mxu0 %v262
  %2287 = vmatmul.f32.gmra.mxu0 %v1857
  %v2288 = vpop.f32.mrf.mxu0
  %v2289 = vadd.f32 0.0, %v2288
  %2290 = vdwg.mxu0
  %v2291 = vadd.f32 %v2149, %v2229
  %v2292 = vadd.f32 %v2169, %v2249
  %v2293 = vadd.f32 %v2189, %v2269
  %v2294 = vadd.f32 %v2209, %v2289
  %v2295 = vadd.f32 %v2291, %v773
  %v2296 = vadd.f32 %v2292, %v774
  %v2297 = vadd.f32 %v2293, %v775
  %v2298 = vadd.f32 %v2294, %v776
  %v2299 = vxor.u32 %v2295, 2147483648
  %v2300 = vmul.f32 %v2299, 1.442695
  %v2301 = vpow.pop %v2300
  %v2302 = vadd.f32 %v2301, 1.0
  %v2303 = vrcp.pop %v2302
  %v2304 = vmul.f32 %v2302, %v2303
  %v2305 = vsub.f32 1.0, %v2304
  %v2306 = vmul.f32 %v2303, %v2305
  %v2307 = vadd.f32 %v2303, %v2306
  %vm2308 = vweird.f32 %v2302
  %vm2309 = vweird.f32 %v2303
  %vm2310 = vmor %vm2308, %vm2309
  %v2311 = vsel %vm2310, %v2303, %v2307
  %v2312 = vand.u32 2147483647, %v2302
  %vm2313 = vcmp.eq.f32.partialorder %v2312, 8.507059e+37
  %v2314 = vand.u32 %v2302, 2147483648
  %v2315 = vor.u32 1.1754944e-38, %v2314
  %v2316 = vsel %vm2313, %v2315, %v2311
  %v2317 = vmul.f32 1.0, %v2316
  %v2318 = vxor.u32 %v2296, 2147483648
  %v2319 = vmul.f32 %v2318, 1.442695
  %v2320 = vpow.pop %v2319
  %v2321 = vadd.f32 %v2320, 1.0
  %v2322 = vrcp.pop %v2321
  %v2323 = vmul.f32 %v2321, %v2322
  %v2324 = vsub.f32 1.0, %v2323
  %v2325 = vmul.f32 %v2322, %v2324
  %v2326 = vadd.f32 %v2322, %v2325
  %vm2327 = vweird.f32 %v2321
  %vm2328 = vweird.f32 %v2322
  %vm2329 = vmor %vm2327, %vm2328
  %v2330 = vsel %vm2329, %v2322, %v2326
  %v2331 = vand.u32 2147483647, %v2321
  %vm2332 = vcmp.eq.f32.partialorder %v2331, 8.507059e+37
  %v2333 = vand.u32 %v2321, 2147483648
  %v2334 = vor.u32 1.1754944e-38, %v2333
  %v2335 = vsel %vm2332, %v2334, %v2330
  %v2336 = vmul.f32 1.0, %v2335
  %v2337 = vtanh.pop %v2297
  %v2338 = vxor.u32 %v2298, 2147483648
  %v2339 = vmul.f32 %v2338, 1.442695
  %v2340 = vpow.pop %v2339
  %v2341 = vadd.f32 %v2340, 1.0
  %v2342 = vrcp.pop %v2341
  %v2343 = vmul.f32 %v2341, %v2342
  %v2344 = vsub.f32 1.0, %v2343
  %v2345 = vmul.f32 %v2342, %v2344
  %v2346 = vadd.f32 %v2342, %v2345
  %vm2347 = vweird.f32 %v2341
  %vm2348 = vweird.f32 %v2342
  %vm2349 = vmor %vm2347, %vm2348
  %v2350 = vsel %vm2349, %v2342, %v2346
  %v2351 = vand.u32 2147483647, %v2341
  %vm2352 = vcmp.eq.f32.partialorder %v2351, 8.507059e+37
  %v2353 = vand.u32 %v2341, 2147483648
  %v2354 = vor.u32 1.1754944e-38, %v2353
  %v2355 = vsel %vm2352, %v2354, %v2350
  %v2356 = vmul.f32 1.0, %v2355
  %v2357 = vmul.f32 %v2336, %v1855
  %v2358 = vmul.f32 %v2317, %v2337
  %v2359 = vadd.f32 %v2357, %v2358
  %v2360 = vtanh.pop %v2359
  %v2361 = vmul.f32 %v2356, %v2360
  %2362 = vmatpush.msra.mxu0 %v339
  %2363 = vmatpush.msra.mxu0 %v338
  %2364 = vmatpush.msra.mxu0 %v337
  %2365 = vmatpush.msra.mxu0 %v336
  %2366 = vmatpush.msra.mxu0 %v335
  %2367 = vmatpush.msra.mxu0 %v334
  %2368 = vmatpush.msra.mxu0 %v333
  %2369 = vmatpush.msra.mxu0 %v332
  %2370 = vmatpush.msra.mxu0 %v331
  %2371 = vmatpush.msra.mxu0 %v330
  %2372 = vmatpush.msra.mxu0 %v329
  %2373 = vmatpush.msra.mxu0 %v328
  %2374 = vmatpush.msra.mxu0 %v327
  %2375 = vmatpush.msra.mxu0 %v326
  %2376 = vmatpush.msra.mxu0 %v325
  %2377 = vmatpush.msra.mxu0 %v324
  %2378 = vmatmul.f32.gmra.mxu0 %v2361
  %v2379 = vpop.f32.mrf.mxu0
  %v2380 = vadd.f32 %v849, %v2379
  %2381 = vdwg.mxu0
  %s2382 = scalar_lea.vmem %s18, 6
  %2383 = vst [vmem:[%s2382] sm:$0x3] %v2380
  %2384 = vmatpush.msra.mxu0 %v225
  %2385 = vmatpush.msra.mxu0 %v224
  %2386 = vmatpush.msra.mxu0 %v223
  %2387 = vmatpush.msra.mxu0 %v222
  %2388 = vmatpush.msra.mxu0 %v221
  %2389 = vmatpush.msra.mxu0 %v220
  %2390 = vmatpush.msra.mxu0 %v219
  %2391 = vmatpush.msra.mxu0 %v218
  %2392 = vmatpush.msra.mxu0 %v217
  %2393 = vmatpush.msra.mxu0 %v216
  %2394 = vmatpush.msra.mxu0 %v215
  %2395 = vmatpush.msra.mxu0 %v214
  %2396 = vmatpush.msra.mxu0 %v213
  %2397 = vmatpush.msra.mxu0 %v212
  %2398 = vmatpush.msra.mxu0 %v211
  %2399 = vmatpush.msra.mxu0 %v210
  %2400 = vmatmul.f32.gmra.mxu0 %v2361
  %v2401 = vpop.f32.mrf.mxu0
  %v2402 = vadd.f32 %v342, %v2401
  %2403 = vdwg.mxu0
  %v2405 = vrot.slane %v2402, 1
  %v2406 = vperm.slane %v2402, 0
  %v2407 = vperm.slane %v2405, 0
  %v2410 = vadd.f32 %v204, %v2406
  %v2411 = vadd.f32 %v205, %v2406
  %v2412 = vadd.f32 %v206, %v2407
  %v2413 = vadd.f32 %v207, %v2407
  %v2414 = vtanh.pop %v2410
  %v2415 = vtanh.pop %v2411
  %v2416 = vtanh.pop %v2412
  %v2417 = vtanh.pop %v2413
  %v2418 = vmul.f32 %v2414, %v379
  %v2419 = vmul.f32 %v2415, %v379
  %v2420 = vmul.f32 %v2416, %v379
  %v2421 = vmul.f32 %v2417, %v379
  %2422 = vadd.xlane.f32.xlu0 %v2418
  %v2423 = vpop.xlane.xlu0 %2422
  %2424 = vadd.xlane.f32.xlu0 %v2419
  %v2425 = vpop.xlane.xlu0 %2424
  %2426 = vadd.xlane.f32.xlu0 %v2420
  %v2427 = vpop.xlane.xlu0 %2426
  %2428 = vadd.xlane.f32.xlu0 %v2421
  %v2429 = vpop.xlane.xlu0 %2428
  %v2430 = vadd.f32 %v2423, %v397
  %v2431 = vadd.f32 %v2425, %v397
  %v2432 = vadd.f32 %v2427, %v397
  %v2433 = vadd.f32 %v2429, %v397
  %v2438 = vperm.slane %v2430, %v408
  %v2439 = vperm.slane %v2431, %v410
  %v2440 = vsel %vm412, %v2439, %v2438
  %v2441 = vperm.slane %v2432, %v408
  %v2442 = vperm.slane %v2433, %v410
  %v2443 = vsel %vm412, %v2442, %v2441
  %v2444 = vsel %vm103, %v2443, %v2440
  %v2446 = vsel %vm419, %v2444, -inf
  %2447 = vmax.xlane.f32.xlu0 %v2446
  %v2448 = vpop.xlane.xlu0 %2447
  %v2450 = vperm.slane %v2448, 0
  %v2451 = vperm.slane %v2448, 1
  %v2454 = vsub.f32 %v2430, %v2450
  %v2455 = vsub.f32 %v2431, %v2450
  %v2456 = vsub.f32 %v2432, %v2451
  %v2457 = vsub.f32 %v2433, %v2451
  %v2458 = vmul.f32 %v2454, 1.442695
  %v2459 = vpow.pop %v2458
  %v2460 = vmul.f32 %v2455, 1.442695
  %v2461 = vpow.pop %v2460
  %v2462 = vmul.f32 %v2456, 1.442695
  %v2463 = vpow.pop %v2462
  %v2464 = vmul.f32 %v2457, 1.442695
  %v2465 = vpow.pop %v2464
  %2470 = vset.pattern.permute.xlu0 0
  %2471 = vperm.xlu0 %2470, %v2459
  %v2472 = vpop.permute.xlu0 %2471
  %2473 = vset.pattern.permute.xlu0 0
  %2474 = vperm.xlu0 %2473, %v2461
  %v2475 = vpop.permute.xlu0 %2474
  %2476 = vset.pattern.permute.xlu0 0
  %2477 = vperm.xlu0 %2476, %v2463
  %v2478 = vpop.permute.xlu0 %2477
  %2479 = vset.pattern.permute.xlu0 0
  %2480 = vperm.xlu0 %2479, %v2465
  %v2481 = vpop.permute.xlu0 %2480
  %v2482 = vperm.slane %v2472, %v408
  %v2483 = vperm.slane %v2475, %v410
  %v2484 = vsel %vm412, %v2483, %v2482
  %v2485 = vperm.slane %v2478, %v408
  %v2486 = vperm.slane %v2481, %v410
  %v2487 = vsel %vm412, %v2486, %v2485
  %v2488 = vsel %vm103, %v2487, %v2484
  %v2490 = vsel %vm419, %v2488, 0.0
  %2491 = vadd.xlane.f32.xlu0 %v2490
  %v2492 = vpop.xlane.xlu0 %2491
  %v2493 = vrcp.pop %v2492
  %v2495 = vperm.slane %v2493, 0
  %v2496 = vperm.slane %v2493, 1
  %v2499 = vmul.f32 %v2459, %v2495
  %v2500 = vmul.f32 %v2461, %v2495
  %v2501 = vmul.f32 %v2463, %v2496
  %v2502 = vmul.f32 %v2465, %v2496
  %2504 = vset.pattern.permute.xlu0 0
  %2505 = vperm.xlu0 %2504, %v2499
  %v2506 = vpop.permute.xlu0 %2505
  %2509 = vset.pattern.permute.xlu0 0
  %2510 = vperm.xlu0 %2509, %v2500
  %v2511 = vpop.permute.xlu0 %2510
  %2514 = vset.pattern.permute.xlu0 0
  %2515 = vperm.xlu0 %2514, %v2501
  %v2516 = vpop.permute.xlu0 %2515
  %2519 = vset.pattern.permute.xlu0 0
  %2520 = vperm.xlu0 %2519, %v2502
  %v2521 = vpop.permute.xlu0 %2520
  %v2523 = vmul.f32 %v61, %v2506
  %v2524 = vmul.f32 %v62, %v2511
  %v2525 = vmul.f32 %v63, %v2516
  %v2526 = vmul.f32 %v64, %v2521
  %v2527 = vsel %vm65, %v2523, 0.0
  %v2528 = vsel %vm65, %v2524, 0.0
  %v2529 = vadd.f32 %v2527, %v2528
  %v2530 = vrot.slane %v2529, 4
  %v2531 = vadd.f32 %v2529, %v2530
  %v2532 = vrot.slane %v2531, 2
  %v2533 = vadd.f32 %v2531, %v2532
  %v2534 = vrot.slane %v2533, 1
  %v2535 = vadd.f32 %v2533, %v2534
  %v2536 = vsel %vm65, %v2525, 0.0
  %v2537 = vsel %vm65, %v2526, 0.0
  %v2538 = vadd.f32 %v2536, %v2537
  %v2539 = vrot.slane %v2538, 4
  %v2540 = vadd.f32 %v2538, %v2539
  %v2541 = vrot.slane %v2540, 2
  %v2542 = vadd.f32 %v2540, %v2541
  %v2543 = vrot.slane %v2542, 1
  %v2544 = vadd.f32 %v2542, %v2543
  %s2545 = scalar_lea.vmem %s1, 8
  %v2546 = vld [vmem:[%s2545] sm:$0x3]
  %v2549 = vsel %vm103, %v2544, %v2535
  %v2550 = vsel %vm65, %v2549, 0
  %2552 = vmatpush.msra.mxu0 0.0
  %2553 = vmatpush.msra.mxu0 0.0
  %2554 = vmatpush.msra.mxu0 0.0
  %2555 = vmatpush.msra.mxu0 0.0
  %2556 = vmatpush.msra.mxu0 0.0
  %2557 = vmatpush.msra.mxu0 0.0
  %2558 = vmatpush.msra.mxu0 0.0
  %2559 = vmatpush.msra.mxu0 0.0
  %2560 = vmatpush.msra.mxu0 0.0
  %2561 = vmatpush.msra.mxu0 0.0
  %2562 = vmatpush.msra.mxu0 0.0
  %2563 = vmatpush.msra.mxu0 0.0
  %2564 = vmatpush.msra.mxu0 %v255
  %2565 = vmatpush.msra.mxu0 %v251
  %2566 = vmatpush.msra.mxu0 %v247
  %2567 = vmatpush.msra.mxu0 %v243
  %2568 = vmatmul.f32.gmra.mxu0 %v2550
  %v2569 = vpop.f32.mrf.mxu0
  %v2570 = vadd.f32 0.0, %v2569
  %2571 = vdwg.mxu0
  %2572 = vmatpush.msra.mxu0 0.0
  %2573 = vmatpush.msra.mxu0 0.0
  %2574 = vmatpush.msra.mxu0 0.0
  %2575 = vmatpush.msra.mxu0 0.0
  %2576 = vmatpush.msra.mxu0 0.0
  %2577 = vmatpush.msra.mxu0 0.0
  %2578 = vmatpush.msra.mxu0 0.0
  %2579 = vmatpush.msra.mxu0 0.0
  %2580 = vmatpush.msra.mxu0 0.0
  %2581 = vmatpush.msra.mxu0 0.0
  %2582 = vmatpush.msra.mxu0 0.0
  %2583 = vmatpush.msra.mxu0 0.0
  %2584 = vmatpush.msra.mxu0 %v256
  %2585 = vmatpush.msra.mxu0 %v252
  %2586 = vmatpush.msra.mxu0 %v248
  %2587 = vmatpush.msra.mxu0 %v244
  %2588 = vmatmul.f32.gmra.mxu0 %v2550
  %v2589 = vpop.f32.mrf.mxu0
  %v2590 = vadd.f32 0.0, %v2589
  %2591 = vdwg.mxu0
  %2592 = vmatpush.msra.mxu0 0.0
  %2593 = vmatpush.msra.mxu0 0.0
  %2594 = vmatpush.msra.mxu0 0.0
  %2595 = vmatpush.msra.mxu0 0.0
  %2596 = vmatpush.msra.mxu0 0.0
  %2597 = vmatpush.msra.mxu0 0.0
  %2598 = vmatpush.msra.mxu0 0.0
  %2599 = vmatpush.msra.mxu0 0.0
  %2600 = vmatpush.msra.mxu0 0.0
  %2601 = vmatpush.msra.mxu0 0.0
  %2602 = vmatpush.msra.mxu0 0.0
  %2603 = vmatpush.msra.mxu0 0.0
  %2604 = vmatpush.msra.mxu0 %v257
  %2605 = vmatpush.msra.mxu0 %v253
  %2606 = vmatpush.msra.mxu0 %v249
  %2607 = vmatpush.msra.mxu0 %v245
  %2608 = vmatmul.f32.gmra.mxu0 %v2550
  %v2609 = vpop.f32.mrf.mxu0
  %v2610 = vadd.f32 0.0, %v2609
  %2611 = vdwg.mxu0
  %2612 = vmatpush.msra.mxu0 0.0
  %2613 = vmatpush.msra.mxu0 0.0
  %2614 = vmatpush.msra.mxu0 0.0
  %2615 = vmatpush.msra.mxu0 0.0
  %2616 = vmatpush.msra.mxu0 0.0
  %2617 = vmatpush.msra.mxu0 0.0
  %2618 = vmatpush.msra.mxu0 0.0
  %2619 = vmatpush.msra.mxu0 0.0
  %2620 = vmatpush.msra.mxu0 0.0
  %2621 = vmatpush.msra.mxu0 0.0
  %2622 = vmatpush.msra.mxu0 0.0
  %2623 = vmatpush.msra.mxu0 0.0
  %2624 = vmatpush.msra.mxu0 %v258
  %2625 = vmatpush.msra.mxu0 %v254
  %2626 = vmatpush.msra.mxu0 %v250
  %2627 = vmatpush.msra.mxu0 %v246
  %2628 = vmatmul.f32.gmra.mxu0 %v2550
  %v2629 = vpop.f32.mrf.mxu0
  %v2630 = vadd.f32 0.0, %v2629
  %2631 = vdwg.mxu0
  %v2633 = vsel %vm65, %v2546, 0
  %2635 = vmatpush.msra.mxu0 0.0
  %2636 = vmatpush.msra.mxu0 0.0
  %2637 = vmatpush.msra.mxu0 0.0
  %2638 = vmatpush.msra.mxu0 0.0
  %2639 = vmatpush.msra.mxu0 0.0
  %2640 = vmatpush.msra.mxu0 0.0
  %2641 = vmatpush.msra.mxu0 0.0
  %2642 = vmatpush.msra.mxu0 0.0
  %2643 = vmatpush.msra.mxu0 0.0
  %2644 = vmatpush.msra.mxu0 0.0
  %2645 = vmatpush.msra.mxu0 0.0
  %2646 = vmatpush.msra.mxu0 0.0
  %2647 = vmatpush.msra.mxu0 %v239
  %2648 = vmatpush.msra.mxu0 %v235
  %2649 = vmatpush.msra.mxu0 %v231
  %2650 = vmatpush.msra.mxu0 %v227
  %2651 = vmatmul.f32.gmra.mxu0 %v2633
  %v2652 = vpop.f32.mrf.mxu0
  %v2653 = vadd.f32 %v2570, %v2652
  %2654 = vdwg.mxu0
  %2655 = vmatpush.msra.mxu0 0.0
  %2656 = vmatpush.msra.mxu0 0.0
  %2657 = vmatpush.msra.mxu0 0.0
  %2658 = vmatpush.msra.mxu0 0.0
  %2659 = vmatpush.msra.mxu0 0.0
  %2660 = vmatpush.msra.mxu0 0.0
  %2661 = vmatpush.msra.mxu0 0.0
  %2662 = vmatpush.msra.mxu0 0.0
  %2663 = vmatpush.msra.mxu0 0.0
  %2664 = vmatpush.msra.mxu0 0.0
  %2665 = vmatpush.msra.mxu0 0.0
  %2666 = vmatpush.msra.mxu0 0.0
  %2667 = vmatpush.msra.mxu0 %v240
  %2668 = vmatpush.msra.mxu0 %v236
  %2669 = vmatpush.msra.mxu0 %v232
  %2670 = vmatpush.msra.mxu0 %v228
  %2671 = vmatmul.f32.gmra.mxu0 %v2633
  %v2672 = vpop.f32.mrf.mxu0
  %v2673 = vadd.f32 %v2590, %v2672
  %2674 = vdwg.mxu0
  %2675 = vmatpush.msra.mxu0 0.0
  %2676 = vmatpush.msra.mxu0 0.0
  %2677 = vmatpush.msra.mxu0 0.0
  %2678 = vmatpush.msra.mxu0 0.0
  %2679 = vmatpush.msra.mxu0 0.0
  %2680 = vmatpush.msra.mxu0 0.0
  %2681 = vmatpush.msra.mxu0 0.0
  %2682 = vmatpush.msra.mxu0 0.0
  %2683 = vmatpush.msra.mxu0 0.0
  %2684 = vmatpush.msra.mxu0 0.0
  %2685 = vmatpush.msra.mxu0 0.0
  %2686 = vmatpush.msra.mxu0 0.0
  %2687 = vmatpush.msra.mxu0 %v241
  %2688 = vmatpush.msra.mxu0 %v237
  %2689 = vmatpush.msra.mxu0 %v233
  %2690 = vmatpush.msra.mxu0 %v229
  %2691 = vmatmul.f32.gmra.mxu0 %v2633
  %v2692 = vpop.f32.mrf.mxu0
  %v2693 = vadd.f32 %v2610, %v2692
  %2694 = vdwg.mxu0
  %2695 = vmatpush.msra.mxu0 0.0
  %2696 = vmatpush.msra.mxu0 0.0
  %2697 = vmatpush.msra.mxu0 0.0
  %2698 = vmatpush.msra.mxu0 0.0
  %2699 = vmatpush.msra.mxu0 0.0
  %2700 = vmatpush.msra.mxu0 0.0
  %2701 = vmatpush.msra.mxu0 0.0
  %2702 = vmatpush.msra.mxu0 0.0
  %2703 = vmatpush.msra.mxu0 0.0
  %2704 = vmatpush.msra.mxu0 0.0
  %2705 = vmatpush.msra.mxu0 0.0
  %2706 = vmatpush.msra.mxu0 0.0
  %2707 = vmatpush.msra.mxu0 %v242
  %2708 = vmatpush.msra.mxu0 %v238
  %2709 = vmatpush.msra.mxu0 %v234
  %2710 = vmatpush.msra.mxu0 %v230
  %2711 = vmatmul.f32.gmra.mxu0 %v2633
  %v2712 = vpop.f32.mrf.mxu0
  %v2713 = vadd.f32 %v2630, %v2712
  %2714 = vdwg.mxu0
  %2715 = vmatpush.msra.mxu0 %v319
  %2716 = vmatpush.msra.mxu0 %v315
  %2717 = vmatpush.msra.mxu0 %v311
  %2718 = vmatpush.msra.mxu0 %v307
  %2719 = vmatpush.msra.mxu0 %v303
  %2720 = vmatpush.msra.mxu0 %v299
  %2721 = vmatpush.msra.mxu0 %v295
  %2722 = vmatpush.msra.mxu0 %v291
  %2723 = vmatpush.msra.mxu0 %v287
  %2724 = vmatpush.msra.mxu0 %v283
  %2725 = vmatpush.msra.mxu0 %v279
  %2726 = vmatpush.msra.mxu0 %v275
  %2727 = vmatpush.msra.mxu0 %v271
  %2728 = vmatpush.msra.mxu0 %v267
  %2729 = vmatpush.msra.mxu0 %v263
  %2730 = vmatpush.msra.mxu0 %v259
  %2731 = vmatmul.f32.gmra.mxu0 %v2361
  %v2732 = vpop.f32.mrf.mxu0
  %v2733 = vadd.f32 0.0, %v2732
  %2734 = vdwg.mxu0
  %2735 = vmatpush.msra.mxu0 %v320
  %2736 = vmatpush.msra.mxu0 %v316
  %2737 = vmatpush.msra.mxu0 %v312
  %2738 = vmatpush.msra.mxu0 %v308
  %2739 = vmatpush.msra.mxu0 %v304
  %2740 = vmatpush.msra.mxu0 %v300
  %2741 = vmatpush.msra.mxu0 %v296
  %2742 = vmatpush.msra.mxu0 %v292
  %2743 = vmatpush.msra.mxu0 %v288
  %2744 = vmatpush.msra.mxu0 %v284
  %2745 = vmatpush.msra.mxu0 %v280
  %2746 = vmatpush.msra.mxu0 %v276
  %2747 = vmatpush.msra.mxu0 %v272
  %2748 = vmatpush.msra.mxu0 %v268
  %2749 = vmatpush.msra.mxu0 %v264
  %2750 = vmatpush.msra.mxu0 %v260
  %2751 = vmatmul.f32.gmra.mxu0 %v2361
  %v2752 = vpop.f32.mrf.mxu0
  %v2753 = vadd.f32 0.0, %v2752
  %2754 = vdwg.mxu0
  %2755 = vmatpush.msra.mxu0 %v321
  %2756 = vmatpush.msra.mxu0 %v317
  %2757 = vmatpush.msra.mxu0 %v313
  %2758 = vmatpush.msra.mxu0 %v309
  %2759 = vmatpush.msra.mxu0 %v305
  %2760 = vmatpush.msra.mxu0 %v301
  %2761 = vmatpush.msra.mxu0 %v297
  %2762 = vmatpush.msra.mxu0 %v293
  %2763 = vmatpush.msra.mxu0 %v289
  %2764 = vmatpush.msra.mxu0 %v285
  %2765 = vmatpush.msra.mxu0 %v281
  %2766 = vmatpush.msra.mxu0 %v277
  %2767 = vmatpush.msra.mxu0 %v273
  %2768 = vmatpush.msra.mxu0 %v269
  %2769 = vmatpush.msra.mxu0 %v265
  %2770 = vmatpush.msra.mxu0 %v261
  %2771 = vmatmul.f32.gmra.mxu0 %v2361
  %v2772 = vpop.f32.mrf.mxu0
  %v2773 = vadd.f32 0.0, %v2772
  %2774 = vdwg.mxu0
  %2775 = vmatpush.msra.mxu0 %v322
  %2776 = vmatpush.msra.mxu0 %v318
  %2777 = vmatpush.msra.mxu0 %v314
  %2778 = vmatpush.msra.mxu0 %v310
  %2779 = vmatpush.msra.mxu0 %v306
  %2780 = vmatpush.msra.mxu0 %v302
  %2781 = vmatpush.msra.mxu0 %v298
  %2782 = vmatpush.msra.mxu0 %v294
  %2783 = vmatpush.msra.mxu0 %v290
  %2784 = vmatpush.msra.mxu0 %v286
  %2785 = vmatpush.msra.mxu0 %v282
  %2786 = vmatpush.msra.mxu0 %v278
  %2787 = vmatpush.msra.mxu0 %v274
  %2788 = vmatpush.msra.mxu0 %v270
  %2789 = vmatpush.msra.mxu0 %v266
  %2790 = vmatpush.msra.mxu0 %v262
  %2791 = vmatmul.f32.gmra.mxu0 %v2361
  %v2792 = vpop.f32.mrf.mxu0
  %v2793 = vadd.f32 0.0, %v2792
  %2794 = vdwg.mxu0
  %v2795 = vadd.f32 %v2653, %v2733
  %v2796 = vadd.f32 %v2673, %v2753
  %v2797 = vadd.f32 %v2693, %v2773
  %v2798 = vadd.f32 %v2713, %v2793
  %v2799 = vadd.f32 %v2795, %v773
  %v2800 = vadd.f32 %v2796, %v774
  %v2801 = vadd.f32 %v2797, %v775
  %v2802 = vadd.f32 %v2798, %v776
  %v2803 = vxor.u32 %v2799, 2147483648
  %v2804 = vmul.f32 %v2803, 1.442695
  %v2805 = vpow.pop %v2804
  %v2806 = vadd.f32 %v2805, 1.0
  %v2807 = vrcp.pop %v2806
  %v2808 = vmul.f32 %v2806, %v2807
  %v2809 = vsub.f32 1.0, %v2808
  %v2810 = vmul.f32 %v2807, %v2809
  %v2811 = vadd.f32 %v2807, %v2810
  %vm2812 = vweird.f32 %v2806
  %vm2813 = vweird.f32 %v2807
  %vm2814 = vmor %vm2812, %vm2813
  %v2815 = vsel %vm2814, %v2807, %v2811
  %v2816 = vand.u32 2147483647, %v2806
  %vm2817 = vcmp.eq.f32.partialorder %v2816, 8.507059e+37
  %v2818 = vand.u32 %v2806, 2147483648
  %v2819 = vor.u32 1.1754944e-38, %v2818
  %v2820 = vsel %vm2817, %v2819, %v2815
  %v2821 = vmul.f32 1.0, %v2820
  %v2822 = vxor.u32 %v2800, 2147483648
  %v2823 = vmul.f32 %v2822, 1.442695
  %v2824 = vpow.pop %v2823
  %v2825 = vadd.f32 %v2824, 1.0
  %v2826 = vrcp.pop %v2825
  %v2827 = vmul.f32 %v2825, %v2826
  %v2828 = vsub.f32 1.0, %v2827
  %v2829 = vmul.f32 %v2826, %v2828
  %v2830 = vadd.f32 %v2826, %v2829
  %vm2831 = vweird.f32 %v2825
  %vm2832 = vweird.f32 %v2826
  %vm2833 = vmor %vm2831, %vm2832
  %v2834 = vsel %vm2833, %v2826, %v2830
  %v2835 = vand.u32 2147483647, %v2825
  %vm2836 = vcmp.eq.f32.partialorder %v2835, 8.507059e+37
  %v2837 = vand.u32 %v2825, 2147483648
  %v2838 = vor.u32 1.1754944e-38, %v2837
  %v2839 = vsel %vm2836, %v2838, %v2834
  %v2840 = vmul.f32 1.0, %v2839
  %v2841 = vtanh.pop %v2801
  %v2842 = vxor.u32 %v2802, 2147483648
  %v2843 = vmul.f32 %v2842, 1.442695
  %v2844 = vpow.pop %v2843
  %v2845 = vadd.f32 %v2844, 1.0
  %v2846 = vrcp.pop %v2845
  %v2847 = vmul.f32 %v2845, %v2846
  %v2848 = vsub.f32 1.0, %v2847
  %v2849 = vmul.f32 %v2846, %v2848
  %v2850 = vadd.f32 %v2846, %v2849
  %vm2851 = vweird.f32 %v2845
  %vm2852 = vweird.f32 %v2846
  %vm2853 = vmor %vm2851, %vm2852
  %v2854 = vsel %vm2853, %v2846, %v2850
  %v2855 = vand.u32 2147483647, %v2845
  %vm2856 = vcmp.eq.f32.partialorder %v2855, 8.507059e+37
  %v2857 = vand.u32 %v2845, 2147483648
  %v2858 = vor.u32 1.1754944e-38, %v2857
  %v2859 = vsel %vm2856, %v2858, %v2854
  %v2860 = vmul.f32 1.0, %v2859
  %v2861 = vmul.f32 %v2840, %v2359
  %v2862 = vmul.f32 %v2821, %v2841
  %v2863 = vadd.f32 %v2861, %v2862
  %v2864 = vtanh.pop %v2863
  %v2865 = vmul.f32 %v2860, %v2864
  %2866 = vmatpush.msra.mxu0 %v339
  %2867 = vmatpush.msra.mxu0 %v338
  %2868 = vmatpush.msra.mxu0 %v337
  %2869 = vmatpush.msra.mxu0 %v336
  %2870 = vmatpush.msra.mxu0 %v335
  %2871 = vmatpush.msra.mxu0 %v334
  %2872 = vmatpush.msra.mxu0 %v333
  %2873 = vmatpush.msra.mxu0 %v332
  %2874 = vmatpush.msra.mxu0 %v331
  %2875 = vmatpush.msra.mxu0 %v330
  %2876 = vmatpush.msra.mxu0 %v329
  %2877 = vmatpush.msra.mxu0 %v328
  %2878 = vmatpush.msra.mxu0 %v327
  %2879 = vmatpush.msra.mxu0 %v326
  %2880 = vmatpush.msra.mxu0 %v325
  %2881 = vmatpush.msra.mxu0 %v324
  %2882 = vmatmul.f32.gmra.mxu0 %v2865
  %v2883 = vpop.f32.mrf.mxu0
  %v2884 = vadd.f32 %v849, %v2883
  %2885 = vdwg.mxu0
  %s2886 = scalar_lea.vmem %s18, 8
  %2887 = vst [vmem:[%s2886] sm:$0x3] %v2884
  %2888 = vmatpush.msra.mxu0 %v225
  %2889 = vmatpush.msra.mxu0 %v224
  %2890 = vmatpush.msra.mxu0 %v223
  %2891 = vmatpush.msra.mxu0 %v222
  %2892 = vmatpush.msra.mxu0 %v221
  %2893 = vmatpush.msra.mxu0 %v220
  %2894 = vmatpush.msra.mxu0 %v219
  %2895 = vmatpush.msra.mxu0 %v218
  %2896 = vmatpush.msra.mxu0 %v217
  %2897 = vmatpush.msra.mxu0 %v216
  %2898 = vmatpush.msra.mxu0 %v215
  %2899 = vmatpush.msra.mxu0 %v214
  %2900 = vmatpush.msra.mxu0 %v213
  %2901 = vmatpush.msra.mxu0 %v212
  %2902 = vmatpush.msra.mxu0 %v211
  %2903 = vmatpush.msra.mxu0 %v210
  %2904 = vmatmul.f32.gmra.mxu0 %v2865
  %v2905 = vpop.f32.mrf.mxu0
  %v2906 = vadd.f32 %v342, %v2905
  %2907 = vdwg.mxu0
  %v2909 = vrot.slane %v2906, 1
  %v2910 = vperm.slane %v2906, 0
  %v2911 = vperm.slane %v2909, 0
  %v2914 = vadd.f32 %v204, %v2910
  %v2915 = vadd.f32 %v205, %v2910
  %v2916 = vadd.f32 %v206, %v2911
  %v2917 = vadd.f32 %v207, %v2911
  %v2918 = vtanh.pop %v2914
  %v2919 = vtanh.pop %v2915
  %v2920 = vtanh.pop %v2916
  %v2921 = vtanh.pop %v2917
  %v2922 = vmul.f32 %v2918, %v379
  %v2923 = vmul.f32 %v2919, %v379
  %v2924 = vmul.f32 %v2920, %v379
  %v2925 = vmul.f32 %v2921, %v379
  %2926 = vadd.xlane.f32.xlu0 %v2922
  %v2927 = vpop.xlane.xlu0 %2926
  %2928 = vadd.xlane.f32.xlu0 %v2923
  %v2929 = vpop.xlane.xlu0 %2928
  %2930 = vadd.xlane.f32.xlu0 %v2924
  %v2931 = vpop.xlane.xlu0 %2930
  %2932 = vadd.xlane.f32.xlu0 %v2925
  %v2933 = vpop.xlane.xlu0 %2932
  %v2934 = vadd.f32 %v2927, %v397
  %v2935 = vadd.f32 %v2929, %v397
  %v2936 = vadd.f32 %v2931, %v397
  %v2937 = vadd.f32 %v2933, %v397
  %v2942 = vperm.slane %v2934, %v408
  %v2943 = vperm.slane %v2935, %v410
  %v2944 = vsel %vm412, %v2943, %v2942
  %v2945 = vperm.slane %v2936, %v408
  %v2946 = vperm.slane %v2937, %v410
  %v2947 = vsel %vm412, %v2946, %v2945
  %v2948 = vsel %vm103, %v2947, %v2944
  %v2950 = vsel %vm419, %v2948, -inf
  %2951 = vmax.xlane.f32.xlu0 %v2950
  %v2952 = vpop.xlane.xlu0 %2951
  %v2954 = vperm.slane %v2952, 0
  %v2955 = vperm.slane %v2952, 1
  %v2958 = vsub.f32 %v2934, %v2954
  %v2959 = vsub.f32 %v2935, %v2954
  %v2960 = vsub.f32 %v2936, %v2955
  %v2961 = vsub.f32 %v2937, %v2955
  %v2962 = vmul.f32 %v2958, 1.442695
  %v2963 = vpow.pop %v2962
  %v2964 = vmul.f32 %v2959, 1.442695
  %v2965 = vpow.pop %v2964
  %v2966 = vmul.f32 %v2960, 1.442695
  %v2967 = vpow.pop %v2966
  %v2968 = vmul.f32 %v2961, 1.442695
  %v2969 = vpow.pop %v2968
  %2974 = vset.pattern.permute.xlu0 0
  %2975 = vperm.xlu0 %2974, %v2963
  %v2976 = vpop.permute.xlu0 %2975
  %2977 = vset.pattern.permute.xlu0 0
  %2978 = vperm.xlu0 %2977, %v2965
  %v2979 = vpop.permute.xlu0 %2978
  %2980 = vset.pattern.permute.xlu0 0
  %2981 = vperm.xlu0 %2980, %v2967
  %v2982 = vpop.permute.xlu0 %2981
  %2983 = vset.pattern.permute.xlu0 0
  %2984 = vperm.xlu0 %2983, %v2969
  %v2985 = vpop.permute.xlu0 %2984
  %v2986 = vperm.slane %v2976, %v408
  %v2987 = vperm.slane %v2979, %v410
  %v2988 = vsel %vm412, %v2987, %v2986
  %v2989 = vperm.slane %v2982, %v408
  %v2990 = vperm.slane %v2985, %v410
  %v2991 = vsel %vm412, %v2990, %v2989
  %v2992 = vsel %vm103, %v2991, %v2988
  %v2994 = vsel %vm419, %v2992, 0.0
  %2995 = vadd.xlane.f32.xlu0 %v2994
  %v2996 = vpop.xlane.xlu0 %2995
  %v2997 = vrcp.pop %v2996
  %v2999 = vperm.slane %v2997, 0
  %v3000 = vperm.slane %v2997, 1
  %v3003 = vmul.f32 %v2963, %v2999
  %v3004 = vmul.f32 %v2965, %v2999
  %v3005 = vmul.f32 %v2967, %v3000
  %v3006 = vmul.f32 %v2969, %v3000
  %3008 = vset.pattern.permute.xlu0 0
  %3009 = vperm.xlu0 %3008, %v3003
  %v3010 = vpop.permute.xlu0 %3009
  %3013 = vset.pattern.permute.xlu0 0
  %3014 = vperm.xlu0 %3013, %v3004
  %v3015 = vpop.permute.xlu0 %3014
  %3018 = vset.pattern.permute.xlu0 0
  %3019 = vperm.xlu0 %3018, %v3005
  %v3020 = vpop.permute.xlu0 %3019
  %3023 = vset.pattern.permute.xlu0 0
  %3024 = vperm.xlu0 %3023, %v3006
  %v3025 = vpop.permute.xlu0 %3024
  %v3027 = vmul.f32 %v61, %v3010
  %v3028 = vmul.f32 %v62, %v3015
  %v3029 = vmul.f32 %v63, %v3020
  %v3030 = vmul.f32 %v64, %v3025
  %v3031 = vsel %vm65, %v3027, 0.0
  %v3032 = vsel %vm65, %v3028, 0.0
  %v3033 = vadd.f32 %v3031, %v3032
  %v3034 = vrot.slane %v3033, 4
  %v3035 = vadd.f32 %v3033, %v3034
  %v3036 = vrot.slane %v3035, 2
  %v3037 = vadd.f32 %v3035, %v3036
  %v3038 = vrot.slane %v3037, 1
  %v3039 = vadd.f32 %v3037, %v3038
  %v3040 = vsel %vm65, %v3029, 0.0
  %v3041 = vsel %vm65, %v3030, 0.0
  %v3042 = vadd.f32 %v3040, %v3041
  %v3043 = vrot.slane %v3042, 4
  %v3044 = vadd.f32 %v3042, %v3043
  %v3045 = vrot.slane %v3044, 2
  %v3046 = vadd.f32 %v3044, %v3045
  %v3047 = vrot.slane %v3046, 1
  %v3048 = vadd.f32 %v3046, %v3047
  %s3049 = scalar_lea.vmem %s1, 10
  %v3050 = vld [vmem:[%s3049] sm:$0x3]
  %v3053 = vsel %vm103, %v3048, %v3039
  %v3054 = vsel %vm65, %v3053, 0
  %3056 = vmatpush.msra.mxu0 0.0
  %3057 = vmatpush.msra.mxu0 0.0
  %3058 = vmatpush.msra.mxu0 0.0
  %3059 = vmatpush.msra.mxu0 0.0
  %3060 = vmatpush.msra.mxu0 0.0
  %3061 = vmatpush.msra.mxu0 0.0
  %3062 = vmatpush.msra.mxu0 0.0
  %3063 = vmatpush.msra.mxu0 0.0
  %3064 = vmatpush.msra.mxu0 0.0
  %3065 = vmatpush.msra.mxu0 0.0
  %3066 = vmatpush.msra.mxu0 0.0
  %3067 = vmatpush.msra.mxu0 0.0
  %3068 = vmatpush.msra.mxu0 %v255
  %3069 = vmatpush.msra.mxu0 %v251
  %3070 = vmatpush.msra.mxu0 %v247
  %3071 = vmatpush.msra.mxu0 %v243
  %3072 = vmatmul.f32.gmra.mxu0 %v3054
  %v3073 = vpop.f32.mrf.mxu0
  %v3074 = vadd.f32 0.0, %v3073
  %3075 = vdwg.mxu0
  %3076 = vmatpush.msra.mxu0 0.0
  %3077 = vmatpush.msra.mxu0 0.0
  %3078 = vmatpush.msra.mxu0 0.0
  %3079 = vmatpush.msra.mxu0 0.0
  %3080 = vmatpush.msra.mxu0 0.0
  %3081 = vmatpush.msra.mxu0 0.0
  %3082 = vmatpush.msra.mxu0 0.0
  %3083 = vmatpush.msra.mxu0 0.0
  %3084 = vmatpush.msra.mxu0 0.0
  %3085 = vmatpush.msra.mxu0 0.0
  %3086 = vmatpush.msra.mxu0 0.0
  %3087 = vmatpush.msra.mxu0 0.0
  %3088 = vmatpush.msra.mxu0 %v256
  %3089 = vmatpush.msra.mxu0 %v252
  %3090 = vmatpush.msra.mxu0 %v248
  %3091 = vmatpush.msra.mxu0 %v244
  %3092 = vmatmul.f32.gmra.mxu0 %v3054
  %v3093 = vpop.f32.mrf.mxu0
  %v3094 = vadd.f32 0.0, %v3093
  %3095 = vdwg.mxu0
  %3096 = vmatpush.msra.mxu0 0.0
  %3097 = vmatpush.msra.mxu0 0.0
  %3098 = vmatpush.msra.mxu0 0.0
  %3099 = vmatpush.msra.mxu0 0.0
  %3100 = vmatpush.msra.mxu0 0.0
  %3101 = vmatpush.msra.mxu0 0.0
  %3102 = vmatpush.msra.mxu0 0.0
  %3103 = vmatpush.msra.mxu0 0.0
  %3104 = vmatpush.msra.mxu0 0.0
  %3105 = vmatpush.msra.mxu0 0.0
  %3106 = vmatpush.msra.mxu0 0.0
  %3107 = vmatpush.msra.mxu0 0.0
  %3108 = vmatpush.msra.mxu0 %v257
  %3109 = vmatpush.msra.mxu0 %v253
  %3110 = vmatpush.msra.mxu0 %v249
  %3111 = vmatpush.msra.mxu0 %v245
  %3112 = vmatmul.f32.gmra.mxu0 %v3054
  %v3113 = vpop.f32.mrf.mxu0
  %v3114 = vadd.f32 0.0, %v3113
  %3115 = vdwg.mxu0
  %3116 = vmatpush.msra.mxu0 0.0
  %3117 = vmatpush.msra.mxu0 0.0
  %3118 = vmatpush.msra.mxu0 0.0
  %3119 = vmatpush.msra.mxu0 0.0
  %3120 = vmatpush.msra.mxu0 0.0
  %3121 = vmatpush.msra.mxu0 0.0
  %3122 = vmatpush.msra.mxu0 0.0
  %3123 = vmatpush.msra.mxu0 0.0
  %3124 = vmatpush.msra.mxu0 0.0
  %3125 = vmatpush.msra.mxu0 0.0
  %3126 = vmatpush.msra.mxu0 0.0
  %3127 = vmatpush.msra.mxu0 0.0
  %3128 = vmatpush.msra.mxu0 %v258
  %3129 = vmatpush.msra.mxu0 %v254
  %3130 = vmatpush.msra.mxu0 %v250
  %3131 = vmatpush.msra.mxu0 %v246
  %3132 = vmatmul.f32.gmra.mxu0 %v3054
  %v3133 = vpop.f32.mrf.mxu0
  %v3134 = vadd.f32 0.0, %v3133
  %3135 = vdwg.mxu0
  %v3137 = vsel %vm65, %v3050, 0
  %3139 = vmatpush.msra.mxu0 0.0
  %3140 = vmatpush.msra.mxu0 0.0
  %3141 = vmatpush.msra.mxu0 0.0
  %3142 = vmatpush.msra.mxu0 0.0
  %3143 = vmatpush.msra.mxu0 0.0
  %3144 = vmatpush.msra.mxu0 0.0
  %3145 = vmatpush.msra.mxu0 0.0
  %3146 = vmatpush.msra.mxu0 0.0
  %3147 = vmatpush.msra.mxu0 0.0
  %3148 = vmatpush.msra.mxu0 0.0
  %3149 = vmatpush.msra.mxu0 0.0
  %3150 = vmatpush.msra.mxu0 0.0
  %3151 = vmatpush.msra.mxu0 %v239
  %3152 = vmatpush.msra.mxu0 %v235
  %3153 = vmatpush.msra.mxu0 %v231
  %3154 = vmatpush.msra.mxu0 %v227
  %3155 = vmatmul.f32.gmra.mxu0 %v3137
  %v3156 = vpop.f32.mrf.mxu0
  %v3157 = vadd.f32 %v3074, %v3156
  %3158 = vdwg.mxu0
  %3159 = vmatpush.msra.mxu0 0.0
  %3160 = vmatpush.msra.mxu0 0.0
  %3161 = vmatpush.msra.mxu0 0.0
  %3162 = vmatpush.msra.mxu0 0.0
  %3163 = vmatpush.msra.mxu0 0.0
  %3164 = vmatpush.msra.mxu0 0.0
  %3165 = vmatpush.msra.mxu0 0.0
  %3166 = vmatpush.msra.mxu0 0.0
  %3167 = vmatpush.msra.mxu0 0.0
  %3168 = vmatpush.msra.mxu0 0.0
  %3169 = vmatpush.msra.mxu0 0.0
  %3170 = vmatpush.msra.mxu0 0.0
  %3171 = vmatpush.msra.mxu0 %v240
  %3172 = vmatpush.msra.mxu0 %v236
  %3173 = vmatpush.msra.mxu0 %v232
  %3174 = vmatpush.msra.mxu0 %v228
  %3175 = vmatmul.f32.gmra.mxu0 %v3137
  %v3176 = vpop.f32.mrf.mxu0
  %v3177 = vadd.f32 %v3094, %v3176
  %3178 = vdwg.mxu0
  %3179 = vmatpush.msra.mxu0 0.0
  %3180 = vmatpush.msra.mxu0 0.0
  %3181 = vmatpush.msra.mxu0 0.0
  %3182 = vmatpush.msra.mxu0 0.0
  %3183 = vmatpush.msra.mxu0 0.0
  %3184 = vmatpush.msra.mxu0 0.0
  %3185 = vmatpush.msra.mxu0 0.0
  %3186 = vmatpush.msra.mxu0 0.0
  %3187 = vmatpush.msra.mxu0 0.0
  %3188 = vmatpush.msra.mxu0 0.0
  %3189 = vmatpush.msra.mxu0 0.0
  %3190 = vmatpush.msra.mxu0 0.0
  %3191 = vmatpush.msra.mxu0 %v241
  %3192 = vmatpush.msra.mxu0 %v237
  %3193 = vmatpush.msra.mxu0 %v233
  %3194 = vmatpush.msra.mxu0 %v229
  %3195 = vmatmul.f32.gmra.mxu0 %v3137
  %v3196 = vpop.f32.mrf.mxu0
  %v3197 = vadd.f32 %v3114, %v3196
  %3198 = vdwg.mxu0
  %3199 = vmatpush.msra.mxu0 0.0
  %3200 = vmatpush.msra.mxu0 0.0
  %3201 = vmatpush.msra.mxu0 0.0
  %3202 = vmatpush.msra.mxu0 0.0
  %3203 = vmatpush.msra.mxu0 0.0
  %3204 = vmatpush.msra.mxu0 0.0
  %3205 = vmatpush.msra.mxu0 0.0
  %3206 = vmatpush.msra.mxu0 0.0
  %3207 = vmatpush.msra.mxu0 0.0
  %3208 = vmatpush.msra.mxu0 0.0
  %3209 = vmatpush.msra.mxu0 0.0
  %3210 = vmatpush.msra.mxu0 0.0
  %3211 = vmatpush.msra.mxu0 %v242
  %3212 = vmatpush.msra.mxu0 %v238
  %3213 = vmatpush.msra.mxu0 %v234
  %3214 = vmatpush.msra.mxu0 %v230
  %3215 = vmatmul.f32.gmra.mxu0 %v3137
  %v3216 = vpop.f32.mrf.mxu0
  %v3217 = vadd.f32 %v3134, %v3216
  %3218 = vdwg.mxu0
  %3219 = vmatpush.msra.mxu0 %v319
  %3220 = vmatpush.msra.mxu0 %v315
  %3221 = vmatpush.msra.mxu0 %v311
  %3222 = vmatpush.msra.mxu0 %v307
  %3223 = vmatpush.msra.mxu0 %v303
  %3224 = vmatpush.msra.mxu0 %v299
  %3225 = vmatpush.msra.mxu0 %v295
  %3226 = vmatpush.msra.mxu0 %v291
  %3227 = vmatpush.msra.mxu0 %v287
  %3228 = vmatpush.msra.mxu0 %v283
  %3229 = vmatpush.msra.mxu0 %v279
  %3230 = vmatpush.msra.mxu0 %v275
  %3231 = vmatpush.msra.mxu0 %v271
  %3232 = vmatpush.msra.mxu0 %v267
  %3233 = vmatpush.msra.mxu0 %v263
  %3234 = vmatpush.msra.mxu0 %v259
  %3235 = vmatmul.f32.gmra.mxu0 %v2865
  %v3236 = vpop.f32.mrf.mxu0
  %v3237 = vadd.f32 0.0, %v3236
  %3238 = vdwg.mxu0
  %3239 = vmatpush.msra.mxu0 %v320
  %3240 = vmatpush.msra.mxu0 %v316
  %3241 = vmatpush.msra.mxu0 %v312
  %3242 = vmatpush.msra.mxu0 %v308
  %3243 = vmatpush.msra.mxu0 %v304
  %3244 = vmatpush.msra.mxu0 %v300
  %3245 = vmatpush.msra.mxu0 %v296
  %3246 = vmatpush.msra.mxu0 %v292
  %3247 = vmatpush.msra.mxu0 %v288
  %3248 = vmatpush.msra.mxu0 %v284
  %3249 = vmatpush.msra.mxu0 %v280
  %3250 = vmatpush.msra.mxu0 %v276
  %3251 = vmatpush.msra.mxu0 %v272
  %3252 = vmatpush.msra.mxu0 %v268
  %3253 = vmatpush.msra.mxu0 %v264
  %3254 = vmatpush.msra.mxu0 %v260
  %3255 = vmatmul.f32.gmra.mxu0 %v2865
  %v3256 = vpop.f32.mrf.mxu0
  %v3257 = vadd.f32 0.0, %v3256
  %3258 = vdwg.mxu0
  %3259 = vmatpush.msra.mxu0 %v321
  %3260 = vmatpush.msra.mxu0 %v317
  %3261 = vmatpush.msra.mxu0 %v313
  %3262 = vmatpush.msra.mxu0 %v309
  %3263 = vmatpush.msra.mxu0 %v305
  %3264 = vmatpush.msra.mxu0 %v301
  %3265 = vmatpush.msra.mxu0 %v297
  %3266 = vmatpush.msra.mxu0 %v293
  %3267 = vmatpush.msra.mxu0 %v289
  %3268 = vmatpush.msra.mxu0 %v285
  %3269 = vmatpush.msra.mxu0 %v281
  %3270 = vmatpush.msra.mxu0 %v277
  %3271 = vmatpush.msra.mxu0 %v273
  %3272 = vmatpush.msra.mxu0 %v269
  %3273 = vmatpush.msra.mxu0 %v265
  %3274 = vmatpush.msra.mxu0 %v261
  %3275 = vmatmul.f32.gmra.mxu0 %v2865
  %v3276 = vpop.f32.mrf.mxu0
  %v3277 = vadd.f32 0.0, %v3276
  %3278 = vdwg.mxu0
  %3279 = vmatpush.msra.mxu0 %v322
  %3280 = vmatpush.msra.mxu0 %v318
  %3281 = vmatpush.msra.mxu0 %v314
  %3282 = vmatpush.msra.mxu0 %v310
  %3283 = vmatpush.msra.mxu0 %v306
  %3284 = vmatpush.msra.mxu0 %v302
  %3285 = vmatpush.msra.mxu0 %v298
  %3286 = vmatpush.msra.mxu0 %v294
  %3287 = vmatpush.msra.mxu0 %v290
  %3288 = vmatpush.msra.mxu0 %v286
  %3289 = vmatpush.msra.mxu0 %v282
  %3290 = vmatpush.msra.mxu0 %v278
  %3291 = vmatpush.msra.mxu0 %v274
  %3292 = vmatpush.msra.mxu0 %v270
  %3293 = vmatpush.msra.mxu0 %v266
  %3294 = vmatpush.msra.mxu0 %v262
  %3295 = vmatmul.f32.gmra.mxu0 %v2865
  %v3296 = vpop.f32.mrf.mxu0
  %v3297 = vadd.f32 0.0, %v3296
  %3298 = vdwg.mxu0
  %v3299 = vadd.f32 %v3157, %v3237
  %v3300 = vadd.f32 %v3177, %v3257
  %v3301 = vadd.f32 %v3197, %v3277
  %v3302 = vadd.f32 %v3217, %v3297
  %v3303 = vadd.f32 %v3299, %v773
  %v3304 = vadd.f32 %v3300, %v774
  %v3305 = vadd.f32 %v3301, %v775
  %v3306 = vadd.f32 %v3302, %v776
  %v3307 = vxor.u32 %v3303, 2147483648
  %v3308 = vmul.f32 %v3307, 1.442695
  %v3309 = vpow.pop %v3308
  %v3310 = vadd.f32 %v3309, 1.0
  %v3311 = vrcp.pop %v3310
  %v3312 = vmul.f32 %v3310, %v3311
  %v3313 = vsub.f32 1.0, %v3312
  %v3314 = vmul.f32 %v3311, %v3313
  %v3315 = vadd.f32 %v3311, %v3314
  %vm3316 = vweird.f32 %v3310
  %vm3317 = vweird.f32 %v3311
  %vm3318 = vmor %vm3316, %vm3317
  %v3319 = vsel %vm3318, %v3311, %v3315
  %v3320 = vand.u32 2147483647, %v3310
  %vm3321 = vcmp.eq.f32.partialorder %v3320, 8.507059e+37
  %v3322 = vand.u32 %v3310, 2147483648
  %v3323 = vor.u32 1.1754944e-38, %v3322
  %v3324 = vsel %vm3321, %v3323, %v3319
  %v3325 = vmul.f32 1.0, %v3324
  %v3326 = vxor.u32 %v3304, 2147483648
  %v3327 = vmul.f32 %v3326, 1.442695
  %v3328 = vpow.pop %v3327
  %v3329 = vadd.f32 %v3328, 1.0
  %v3330 = vrcp.pop %v3329
  %v3331 = vmul.f32 %v3329, %v3330
  %v3332 = vsub.f32 1.0, %v3331
  %v3333 = vmul.f32 %v3330, %v3332
  %v3334 = vadd.f32 %v3330, %v3333
  %vm3335 = vweird.f32 %v3329
  %vm3336 = vweird.f32 %v3330
  %vm3337 = vmor %vm3335, %vm3336
  %v3338 = vsel %vm3337, %v3330, %v3334
  %v3339 = vand.u32 2147483647, %v3329
  %vm3340 = vcmp.eq.f32.partialorder %v3339, 8.507059e+37
  %v3341 = vand.u32 %v3329, 2147483648
  %v3342 = vor.u32 1.1754944e-38, %v3341
  %v3343 = vsel %vm3340, %v3342, %v3338
  %v3344 = vmul.f32 1.0, %v3343
  %v3345 = vtanh.pop %v3305
  %v3346 = vxor.u32 %v3306, 2147483648
  %v3347 = vmul.f32 %v3346, 1.442695
  %v3348 = vpow.pop %v3347
  %v3349 = vadd.f32 %v3348, 1.0
  %v3350 = vrcp.pop %v3349
  %v3351 = vmul.f32 %v3349, %v3350
  %v3352 = vsub.f32 1.0, %v3351
  %v3353 = vmul.f32 %v3350, %v3352
  %v3354 = vadd.f32 %v3350, %v3353
  %vm3355 = vweird.f32 %v3349
  %vm3356 = vweird.f32 %v3350
  %vm3357 = vmor %vm3355, %vm3356
  %v3358 = vsel %vm3357, %v3350, %v3354
  %v3359 = vand.u32 2147483647, %v3349
  %vm3360 = vcmp.eq.f32.partialorder %v3359, 8.507059e+37
  %v3361 = vand.u32 %v3349, 2147483648
  %v3362 = vor.u32 1.1754944e-38, %v3361
  %v3363 = vsel %vm3360, %v3362, %v3358
  %v3364 = vmul.f32 1.0, %v3363
  %v3365 = vmul.f32 %v3344, %v2863
  %v3366 = vmul.f32 %v3325, %v3345
  %v3367 = vadd.f32 %v3365, %v3366
  %v3368 = vtanh.pop %v3367
  %v3369 = vmul.f32 %v3364, %v3368
  %3370 = vmatpush.msra.mxu0 %v339
  %3371 = vmatpush.msra.mxu0 %v338
  %3372 = vmatpush.msra.mxu0 %v337
  %3373 = vmatpush.msra.mxu0 %v336
  %3374 = vmatpush.msra.mxu0 %v335
  %3375 = vmatpush.msra.mxu0 %v334
  %3376 = vmatpush.msra.mxu0 %v333
  %3377 = vmatpush.msra.mxu0 %v332
  %3378 = vmatpush.msra.mxu0 %v331
  %3379 = vmatpush.msra.mxu0 %v330
  %3380 = vmatpush.msra.mxu0 %v329
  %3381 = vmatpush.msra.mxu0 %v328
  %3382 = vmatpush.msra.mxu0 %v327
  %3383 = vmatpush.msra.mxu0 %v326
  %3384 = vmatpush.msra.mxu0 %v325
  %3385 = vmatpush.msra.mxu0 %v324
  %3386 = vmatmul.f32.gmra.mxu0 %v3369
  %v3387 = vpop.f32.mrf.mxu0
  %v3388 = vadd.f32 %v849, %v3387
  %3389 = vdwg.mxu0
  %s3390 = scalar_lea.vmem %s18, 10
  %3391 = vst [vmem:[%s3390] sm:$0x3] %v3388
  %3392 = vmatpush.msra.mxu0 %v225
  %3393 = vmatpush.msra.mxu0 %v224
  %3394 = vmatpush.msra.mxu0 %v223
  %3395 = vmatpush.msra.mxu0 %v222
  %3396 = vmatpush.msra.mxu0 %v221
  %3397 = vmatpush.msra.mxu0 %v220
  %3398 = vmatpush.msra.mxu0 %v219
  %3399 = vmatpush.msra.mxu0 %v218
  %3400 = vmatpush.msra.mxu0 %v217
  %3401 = vmatpush.msra.mxu0 %v216
  %3402 = vmatpush.msra.mxu0 %v215
  %3403 = vmatpush.msra.mxu0 %v214
  %3404 = vmatpush.msra.mxu0 %v213
  %3405 = vmatpush.msra.mxu0 %v212
  %3406 = vmatpush.msra.mxu0 %v211
  %3407 = vmatpush.msra.mxu0 %v210
  %3408 = vmatmul.f32.gmra.mxu0 %v3369
  %v3409 = vpop.f32.mrf.mxu0
  %v3410 = vadd.f32 %v342, %v3409
  %3411 = vdwg.mxu0
  %v3413 = vrot.slane %v3410, 1
  %v3414 = vperm.slane %v3410, 0
  %v3415 = vperm.slane %v3413, 0
  %v3418 = vadd.f32 %v204, %v3414
  %v3419 = vadd.f32 %v205, %v3414
  %v3420 = vadd.f32 %v206, %v3415
  %v3421 = vadd.f32 %v207, %v3415
  %v3422 = vtanh.pop %v3418
  %v3423 = vtanh.pop %v3419
  %v3424 = vtanh.pop %v3420
  %v3425 = vtanh.pop %v3421
  %v3426 = vmul.f32 %v3422, %v379
  %v3427 = vmul.f32 %v3423, %v379
  %v3428 = vmul.f32 %v3424, %v379
  %v3429 = vmul.f32 %v3425, %v379
  %3430 = vadd.xlane.f32.xlu0 %v3426
  %v3431 = vpop.xlane.xlu0 %3430
  %3432 = vadd.xlane.f32.xlu0 %v3427
  %v3433 = vpop.xlane.xlu0 %3432
  %3434 = vadd.xlane.f32.xlu0 %v3428
  %v3435 = vpop.xlane.xlu0 %3434
  %3436 = vadd.xlane.f32.xlu0 %v3429
  %v3437 = vpop.xlane.xlu0 %3436
  %v3438 = vadd.f32 %v3431, %v397
  %v3439 = vadd.f32 %v3433, %v397
  %v3440 = vadd.f32 %v3435, %v397
  %v3441 = vadd.f32 %v3437, %v397
  %v3446 = vperm.slane %v3438, %v408
  %v3447 = vperm.slane %v3439, %v410
  %v3448 = vsel %vm412, %v3447, %v3446
  %v3449 = vperm.slane %v3440, %v408
  %v3450 = vperm.slane %v3441, %v410
  %v3451 = vsel %vm412, %v3450, %v3449
  %v3452 = vsel %vm103, %v3451, %v3448
  %v3454 = vsel %vm419, %v3452, -inf
  %3455 = vmax.xlane.f32.xlu0 %v3454
  %v3456 = vpop.xlane.xlu0 %3455
  %v3458 = vperm.slane %v3456, 0
  %v3459 = vperm.slane %v3456, 1
  %v3462 = vsub.f32 %v3438, %v3458
  %v3463 = vsub.f32 %v3439, %v3458
  %v3464 = vsub.f32 %v3440, %v3459
  %v3465 = vsub.f32 %v3441, %v3459
  %v3466 = vmul.f32 %v3462, 1.442695
  %v3467 = vpow.pop %v3466
  %v3468 = vmul.f32 %v3463, 1.442695
  %v3469 = vpow.pop %v3468
  %v3470 = vmul.f32 %v3464, 1.442695
  %v3471 = vpow.pop %v3470
  %v3472 = vmul.f32 %v3465, 1.442695
  %v3473 = vpow.pop %v3472
  %3478 = vset.pattern.permute.xlu0 0
  %3479 = vperm.xlu0 %3478, %v3467
  %v3480 = vpop.permute.xlu0 %3479
  %3481 = vset.pattern.permute.xlu0 0
  %3482 = vperm.xlu0 %3481, %v3469
  %v3483 = vpop.permute.xlu0 %3482
  %3484 = vset.pattern.permute.xlu0 0
  %3485 = vperm.xlu0 %3484, %v3471
  %v3486 = vpop.permute.xlu0 %3485
  %3487 = vset.pattern.permute.xlu0 0
  %3488 = vperm.xlu0 %3487, %v3473
  %v3489 = vpop.permute.xlu0 %3488
  %v3490 = vperm.slane %v3480, %v408
  %v3491 = vperm.slane %v3483, %v410
  %v3492 = vsel %vm412, %v3491, %v3490
  %v3493 = vperm.slane %v3486, %v408
  %v3494 = vperm.slane %v3489, %v410
  %v3495 = vsel %vm412, %v3494, %v3493
  %v3496 = vsel %vm103, %v3495, %v3492
  %v3498 = vsel %vm419, %v3496, 0.0
  %3499 = vadd.xlane.f32.xlu0 %v3498
  %v3500 = vpop.xlane.xlu0 %3499
  %v3501 = vrcp.pop %v3500
  %v3503 = vperm.slane %v3501, 0
  %v3504 = vperm.slane %v3501, 1
  %v3507 = vmul.f32 %v3467, %v3503
  %v3508 = vmul.f32 %v3469, %v3503
  %v3509 = vmul.f32 %v3471, %v3504
  %v3510 = vmul.f32 %v3473, %v3504
  %3512 = vset.pattern.permute.xlu0 0
  %3513 = vperm.xlu0 %3512, %v3507
  %v3514 = vpop.permute.xlu0 %3513
  %3517 = vset.pattern.permute.xlu0 0
  %3518 = vperm.xlu0 %3517, %v3508
  %v3519 = vpop.permute.xlu0 %3518
  %3522 = vset.pattern.permute.xlu0 0
  %3523 = vperm.xlu0 %3522, %v3509
  %v3524 = vpop.permute.xlu0 %3523
  %3527 = vset.pattern.permute.xlu0 0
  %3528 = vperm.xlu0 %3527, %v3510
  %v3529 = vpop.permute.xlu0 %3528
  %v3531 = vmul.f32 %v61, %v3514
  %v3532 = vmul.f32 %v62, %v3519
  %v3533 = vmul.f32 %v63, %v3524
  %v3534 = vmul.f32 %v64, %v3529
  %v3535 = vsel %vm65, %v3531, 0.0
  %v3536 = vsel %vm65, %v3532, 0.0
  %v3537 = vadd.f32 %v3535, %v3536
  %v3538 = vrot.slane %v3537, 4
  %v3539 = vadd.f32 %v3537, %v3538
  %v3540 = vrot.slane %v3539, 2
  %v3541 = vadd.f32 %v3539, %v3540
  %v3542 = vrot.slane %v3541, 1
  %v3543 = vadd.f32 %v3541, %v3542
  %v3544 = vsel %vm65, %v3533, 0.0
  %v3545 = vsel %vm65, %v3534, 0.0
  %v3546 = vadd.f32 %v3544, %v3545
  %v3547 = vrot.slane %v3546, 4
  %v3548 = vadd.f32 %v3546, %v3547
  %v3549 = vrot.slane %v3548, 2
  %v3550 = vadd.f32 %v3548, %v3549
  %v3551 = vrot.slane %v3550, 1
  %v3552 = vadd.f32 %v3550, %v3551
  %s3553 = scalar_lea.vmem %s1, 12
  %v3554 = vld [vmem:[%s3553] sm:$0x3]
  %v3557 = vsel %vm103, %v3552, %v3543
  %v3558 = vsel %vm65, %v3557, 0
  %3560 = vmatpush.msra.mxu0 0.0
  %3561 = vmatpush.msra.mxu0 0.0
  %3562 = vmatpush.msra.mxu0 0.0
  %3563 = vmatpush.msra.mxu0 0.0
  %3564 = vmatpush.msra.mxu0 0.0
  %3565 = vmatpush.msra.mxu0 0.0
  %3566 = vmatpush.msra.mxu0 0.0
  %3567 = vmatpush.msra.mxu0 0.0
  %3568 = vmatpush.msra.mxu0 0.0
  %3569 = vmatpush.msra.mxu0 0.0
  %3570 = vmatpush.msra.mxu0 0.0
  %3571 = vmatpush.msra.mxu0 0.0
  %3572 = vmatpush.msra.mxu0 %v255
  %3573 = vmatpush.msra.mxu0 %v251
  %3574 = vmatpush.msra.mxu0 %v247
  %3575 = vmatpush.msra.mxu0 %v243
  %3576 = vmatmul.f32.gmra.mxu0 %v3558
  %v3577 = vpop.f32.mrf.mxu0
  %v3578 = vadd.f32 0.0, %v3577
  %3579 = vdwg.mxu0
  %3580 = vmatpush.msra.mxu0 0.0
  %3581 = vmatpush.msra.mxu0 0.0
  %3582 = vmatpush.msra.mxu0 0.0
  %3583 = vmatpush.msra.mxu0 0.0
  %3584 = vmatpush.msra.mxu0 0.0
  %3585 = vmatpush.msra.mxu0 0.0
  %3586 = vmatpush.msra.mxu0 0.0
  %3587 = vmatpush.msra.mxu0 0.0
  %3588 = vmatpush.msra.mxu0 0.0
  %3589 = vmatpush.msra.mxu0 0.0
  %3590 = vmatpush.msra.mxu0 0.0
  %3591 = vmatpush.msra.mxu0 0.0
  %3592 = vmatpush.msra.mxu0 %v256
  %3593 = vmatpush.msra.mxu0 %v252
  %3594 = vmatpush.msra.mxu0 %v248
  %3595 = vmatpush.msra.mxu0 %v244
  %3596 = vmatmul.f32.gmra.mxu0 %v3558
  %v3597 = vpop.f32.mrf.mxu0
  %v3598 = vadd.f32 0.0, %v3597
  %3599 = vdwg.mxu0
  %3600 = vmatpush.msra.mxu0 0.0
  %3601 = vmatpush.msra.mxu0 0.0
  %3602 = vmatpush.msra.mxu0 0.0
  %3603 = vmatpush.msra.mxu0 0.0
  %3604 = vmatpush.msra.mxu0 0.0
  %3605 = vmatpush.msra.mxu0 0.0
  %3606 = vmatpush.msra.mxu0 0.0
  %3607 = vmatpush.msra.mxu0 0.0
  %3608 = vmatpush.msra.mxu0 0.0
  %3609 = vmatpush.msra.mxu0 0.0
  %3610 = vmatpush.msra.mxu0 0.0
  %3611 = vmatpush.msra.mxu0 0.0
  %3612 = vmatpush.msra.mxu0 %v257
  %3613 = vmatpush.msra.mxu0 %v253
  %3614 = vmatpush.msra.mxu0 %v249
  %3615 = vmatpush.msra.mxu0 %v245
  %3616 = vmatmul.f32.gmra.mxu0 %v3558
  %v3617 = vpop.f32.mrf.mxu0
  %v3618 = vadd.f32 0.0, %v3617
  %3619 = vdwg.mxu0
  %3620 = vmatpush.msra.mxu0 0.0
  %3621 = vmatpush.msra.mxu0 0.0
  %3622 = vmatpush.msra.mxu0 0.0
  %3623 = vmatpush.msra.mxu0 0.0
  %3624 = vmatpush.msra.mxu0 0.0
  %3625 = vmatpush.msra.mxu0 0.0
  %3626 = vmatpush.msra.mxu0 0.0
  %3627 = vmatpush.msra.mxu0 0.0
  %3628 = vmatpush.msra.mxu0 0.0
  %3629 = vmatpush.msra.mxu0 0.0
  %3630 = vmatpush.msra.mxu0 0.0
  %3631 = vmatpush.msra.mxu0 0.0
  %3632 = vmatpush.msra.mxu0 %v258
  %3633 = vmatpush.msra.mxu0 %v254
  %3634 = vmatpush.msra.mxu0 %v250
  %3635 = vmatpush.msra.mxu0 %v246
  %3636 = vmatmul.f32.gmra.mxu0 %v3558
  %v3637 = vpop.f32.mrf.mxu0
  %v3638 = vadd.f32 0.0, %v3637
  %3639 = vdwg.mxu0
  %v3641 = vsel %vm65, %v3554, 0
  %3643 = vmatpush.msra.mxu0 0.0
  %3644 = vmatpush.msra.mxu0 0.0
  %3645 = vmatpush.msra.mxu0 0.0
  %3646 = vmatpush.msra.mxu0 0.0
  %3647 = vmatpush.msra.mxu0 0.0
  %3648 = vmatpush.msra.mxu0 0.0
  %3649 = vmatpush.msra.mxu0 0.0
  %3650 = vmatpush.msra.mxu0 0.0
  %3651 = vmatpush.msra.mxu0 0.0
  %3652 = vmatpush.msra.mxu0 0.0
  %3653 = vmatpush.msra.mxu0 0.0
  %3654 = vmatpush.msra.mxu0 0.0
  %3655 = vmatpush.msra.mxu0 %v239
  %3656 = vmatpush.msra.mxu0 %v235
  %3657 = vmatpush.msra.mxu0 %v231
  %3658 = vmatpush.msra.mxu0 %v227
  %3659 = vmatmul.f32.gmra.mxu0 %v3641
  %v3660 = vpop.f32.mrf.mxu0
  %v3661 = vadd.f32 %v3578, %v3660
  %3662 = vdwg.mxu0
  %3663 = vmatpush.msra.mxu0 0.0
  %3664 = vmatpush.msra.mxu0 0.0
  %3665 = vmatpush.msra.mxu0 0.0
  %3666 = vmatpush.msra.mxu0 0.0
  %3667 = vmatpush.msra.mxu0 0.0
  %3668 = vmatpush.msra.mxu0 0.0
  %3669 = vmatpush.msra.mxu0 0.0
  %3670 = vmatpush.msra.mxu0 0.0
  %3671 = vmatpush.msra.mxu0 0.0
  %3672 = vmatpush.msra.mxu0 0.0
  %3673 = vmatpush.msra.mxu0 0.0
  %3674 = vmatpush.msra.mxu0 0.0
  %3675 = vmatpush.msra.mxu0 %v240
  %3676 = vmatpush.msra.mxu0 %v236
  %3677 = vmatpush.msra.mxu0 %v232
  %3678 = vmatpush.msra.mxu0 %v228
  %3679 = vmatmul.f32.gmra.mxu0 %v3641
  %v3680 = vpop.f32.mrf.mxu0
  %v3681 = vadd.f32 %v3598, %v3680
  %3682 = vdwg.mxu0
  %3683 = vmatpush.msra.mxu0 0.0
  %3684 = vmatpush.msra.mxu0 0.0
  %3685 = vmatpush.msra.mxu0 0.0
  %3686 = vmatpush.msra.mxu0 0.0
  %3687 = vmatpush.msra.mxu0 0.0
  %3688 = vmatpush.msra.mxu0 0.0
  %3689 = vmatpush.msra.mxu0 0.0
  %3690 = vmatpush.msra.mxu0 0.0
  %3691 = vmatpush.msra.mxu0 0.0
  %3692 = vmatpush.msra.mxu0 0.0
  %3693 = vmatpush.msra.mxu0 0.0
  %3694 = vmatpush.msra.mxu0 0.0
  %3695 = vmatpush.msra.mxu0 %v241
  %3696 = vmatpush.msra.mxu0 %v237
  %3697 = vmatpush.msra.mxu0 %v233
  %3698 = vmatpush.msra.mxu0 %v229
  %3699 = vmatmul.f32.gmra.mxu0 %v3641
  %v3700 = vpop.f32.mrf.mxu0
  %v3701 = vadd.f32 %v3618, %v3700
  %3702 = vdwg.mxu0
  %3703 = vmatpush.msra.mxu0 0.0
  %3704 = vmatpush.msra.mxu0 0.0
  %3705 = vmatpush.msra.mxu0 0.0
  %3706 = vmatpush.msra.mxu0 0.0
  %3707 = vmatpush.msra.mxu0 0.0
  %3708 = vmatpush.msra.mxu0 0.0
  %3709 = vmatpush.msra.mxu0 0.0
  %3710 = vmatpush.msra.mxu0 0.0
  %3711 = vmatpush.msra.mxu0 0.0
  %3712 = vmatpush.msra.mxu0 0.0
  %3713 = vmatpush.msra.mxu0 0.0
  %3714 = vmatpush.msra.mxu0 0.0
  %3715 = vmatpush.msra.mxu0 %v242
  %3716 = vmatpush.msra.mxu0 %v238
  %3717 = vmatpush.msra.mxu0 %v234
  %3718 = vmatpush.msra.mxu0 %v230
  %3719 = vmatmul.f32.gmra.mxu0 %v3641
  %v3720 = vpop.f32.mrf.mxu0
  %v3721 = vadd.f32 %v3638, %v3720
  %3722 = vdwg.mxu0
  %3723 = vmatpush.msra.mxu0 %v319
  %3724 = vmatpush.msra.mxu0 %v315
  %3725 = vmatpush.msra.mxu0 %v311
  %3726 = vmatpush.msra.mxu0 %v307
  %3727 = vmatpush.msra.mxu0 %v303
  %3728 = vmatpush.msra.mxu0 %v299
  %3729 = vmatpush.msra.mxu0 %v295
  %3730 = vmatpush.msra.mxu0 %v291
  %3731 = vmatpush.msra.mxu0 %v287
  %3732 = vmatpush.msra.mxu0 %v283
  %3733 = vmatpush.msra.mxu0 %v279
  %3734 = vmatpush.msra.mxu0 %v275
  %3735 = vmatpush.msra.mxu0 %v271
  %3736 = vmatpush.msra.mxu0 %v267
  %3737 = vmatpush.msra.mxu0 %v263
  %3738 = vmatpush.msra.mxu0 %v259
  %3739 = vmatmul.f32.gmra.mxu0 %v3369
  %v3740 = vpop.f32.mrf.mxu0
  %v3741 = vadd.f32 0.0, %v3740
  %3742 = vdwg.mxu0
  %3743 = vmatpush.msra.mxu0 %v320
  %3744 = vmatpush.msra.mxu0 %v316
  %3745 = vmatpush.msra.mxu0 %v312
  %3746 = vmatpush.msra.mxu0 %v308
  %3747 = vmatpush.msra.mxu0 %v304
  %3748 = vmatpush.msra.mxu0 %v300
  %3749 = vmatpush.msra.mxu0 %v296
  %3750 = vmatpush.msra.mxu0 %v292
  %3751 = vmatpush.msra.mxu0 %v288
  %3752 = vmatpush.msra.mxu0 %v284
  %3753 = vmatpush.msra.mxu0 %v280
  %3754 = vmatpush.msra.mxu0 %v276
  %3755 = vmatpush.msra.mxu0 %v272
  %3756 = vmatpush.msra.mxu0 %v268
  %3757 = vmatpush.msra.mxu0 %v264
  %3758 = vmatpush.msra.mxu0 %v260
  %3759 = vmatmul.f32.gmra.mxu0 %v3369
  %v3760 = vpop.f32.mrf.mxu0
  %v3761 = vadd.f32 0.0, %v3760
  %3762 = vdwg.mxu0
  %3763 = vmatpush.msra.mxu0 %v321
  %3764 = vmatpush.msra.mxu0 %v317
  %3765 = vmatpush.msra.mxu0 %v313
  %3766 = vmatpush.msra.mxu0 %v309
  %3767 = vmatpush.msra.mxu0 %v305
  %3768 = vmatpush.msra.mxu0 %v301
  %3769 = vmatpush.msra.mxu0 %v297
  %3770 = vmatpush.msra.mxu0 %v293
  %3771 = vmatpush.msra.mxu0 %v289
  %3772 = vmatpush.msra.mxu0 %v285
  %3773 = vmatpush.msra.mxu0 %v281
  %3774 = vmatpush.msra.mxu0 %v277
  %3775 = vmatpush.msra.mxu0 %v273
  %3776 = vmatpush.msra.mxu0 %v269
  %3777 = vmatpush.msra.mxu0 %v265
  %3778 = vmatpush.msra.mxu0 %v261
  %3779 = vmatmul.f32.gmra.mxu0 %v3369
  %v3780 = vpop.f32.mrf.mxu0
  %v3781 = vadd.f32 0.0, %v3780
  %3782 = vdwg.mxu0
  %3783 = vmatpush.msra.mxu0 %v322
  %3784 = vmatpush.msra.mxu0 %v318
  %3785 = vmatpush.msra.mxu0 %v314
  %3786 = vmatpush.msra.mxu0 %v310
  %3787 = vmatpush.msra.mxu0 %v306
  %3788 = vmatpush.msra.mxu0 %v302
  %3789 = vmatpush.msra.mxu0 %v298
  %3790 = vmatpush.msra.mxu0 %v294
  %3791 = vmatpush.msra.mxu0 %v290
  %3792 = vmatpush.msra.mxu0 %v286
  %3793 = vmatpush.msra.mxu0 %v282
  %3794 = vmatpush.msra.mxu0 %v278
  %3795 = vmatpush.msra.mxu0 %v274
  %3796 = vmatpush.msra.mxu0 %v270
  %3797 = vmatpush.msra.mxu0 %v266
  %3798 = vmatpush.msra.mxu0 %v262
  %3799 = vmatmul.f32.gmra.mxu0 %v3369
  %v3800 = vpop.f32.mrf.mxu0
  %v3801 = vadd.f32 0.0, %v3800
  %3802 = vdwg.mxu0
  %v3803 = vadd.f32 %v3661, %v3741
  %v3804 = vadd.f32 %v3681, %v3761
  %v3805 = vadd.f32 %v3701, %v3781
  %v3806 = vadd.f32 %v3721, %v3801
  %v3807 = vadd.f32 %v3803, %v773
  %v3808 = vadd.f32 %v3804, %v774
  %v3809 = vadd.f32 %v3805, %v775
  %v3810 = vadd.f32 %v3806, %v776
  %v3811 = vxor.u32 %v3807, 2147483648
  %v3812 = vmul.f32 %v3811, 1.442695
  %v3813 = vpow.pop %v3812
  %v3814 = vadd.f32 %v3813, 1.0
  %v3815 = vrcp.pop %v3814
  %v3816 = vmul.f32 %v3814, %v3815
  %v3817 = vsub.f32 1.0, %v3816
  %v3818 = vmul.f32 %v3815, %v3817
  %v3819 = vadd.f32 %v3815, %v3818
  %vm3820 = vweird.f32 %v3814
  %vm3821 = vweird.f32 %v3815
  %vm3822 = vmor %vm3820, %vm3821
  %v3823 = vsel %vm3822, %v3815, %v3819
  %v3824 = vand.u32 2147483647, %v3814
  %vm3825 = vcmp.eq.f32.partialorder %v3824, 8.507059e+37
  %v3826 = vand.u32 %v3814, 2147483648
  %v3827 = vor.u32 1.1754944e-38, %v3826
  %v3828 = vsel %vm3825, %v3827, %v3823
  %v3829 = vmul.f32 1.0, %v3828
  %v3830 = vxor.u32 %v3808, 2147483648
  %v3831 = vmul.f32 %v3830, 1.442695
  %v3832 = vpow.pop %v3831
  %v3833 = vadd.f32 %v3832, 1.0
  %v3834 = vrcp.pop %v3833
  %v3835 = vmul.f32 %v3833, %v3834
  %v3836 = vsub.f32 1.0, %v3835
  %v3837 = vmul.f32 %v3834, %v3836
  %v3838 = vadd.f32 %v3834, %v3837
  %vm3839 = vweird.f32 %v3833
  %vm3840 = vweird.f32 %v3834
  %vm3841 = vmor %vm3839, %vm3840
  %v3842 = vsel %vm3841, %v3834, %v3838
  %v3843 = vand.u32 2147483647, %v3833
  %vm3844 = vcmp.eq.f32.partialorder %v3843, 8.507059e+37
  %v3845 = vand.u32 %v3833, 2147483648
  %v3846 = vor.u32 1.1754944e-38, %v3845
  %v3847 = vsel %vm3844, %v3846, %v3842
  %v3848 = vmul.f32 1.0, %v3847
  %v3849 = vtanh.pop %v3809
  %v3850 = vxor.u32 %v3810, 2147483648
  %v3851 = vmul.f32 %v3850, 1.442695
  %v3852 = vpow.pop %v3851
  %v3853 = vadd.f32 %v3852, 1.0
  %v3854 = vrcp.pop %v3853
  %v3855 = vmul.f32 %v3853, %v3854
  %v3856 = vsub.f32 1.0, %v3855
  %v3857 = vmul.f32 %v3854, %v3856
  %v3858 = vadd.f32 %v3854, %v3857
  %vm3859 = vweird.f32 %v3853
  %vm3860 = vweird.f32 %v3854
  %vm3861 = vmor %vm3859, %vm3860
  %v3862 = vsel %vm3861, %v3854, %v3858
  %v3863 = vand.u32 2147483647, %v3853
  %vm3864 = vcmp.eq.f32.partialorder %v3863, 8.507059e+37
  %v3865 = vand.u32 %v3853, 2147483648
  %v3866 = vor.u32 1.1754944e-38, %v3865
  %v3867 = vsel %vm3864, %v3866, %v3862
  %v3868 = vmul.f32 1.0, %v3867
  %v3869 = vmul.f32 %v3848, %v3367
  %v3870 = vmul.f32 %v3829, %v3849
  %v3871 = vadd.f32 %v3869, %v3870
  %v3872 = vtanh.pop %v3871
  %v3873 = vmul.f32 %v3868, %v3872
  %3874 = vmatpush.msra.mxu0 %v339
  %3875 = vmatpush.msra.mxu0 %v338
  %3876 = vmatpush.msra.mxu0 %v337
  %3877 = vmatpush.msra.mxu0 %v336
  %3878 = vmatpush.msra.mxu0 %v335
  %3879 = vmatpush.msra.mxu0 %v334
  %3880 = vmatpush.msra.mxu0 %v333
  %3881 = vmatpush.msra.mxu0 %v332
  %3882 = vmatpush.msra.mxu0 %v331
  %3883 = vmatpush.msra.mxu0 %v330
  %3884 = vmatpush.msra.mxu0 %v329
  %3885 = vmatpush.msra.mxu0 %v328
  %3886 = vmatpush.msra.mxu0 %v327
  %3887 = vmatpush.msra.mxu0 %v326
  %3888 = vmatpush.msra.mxu0 %v325
  %3889 = vmatpush.msra.mxu0 %v324
  %3890 = vmatmul.f32.gmra.mxu0 %v3873
  %v3891 = vpop.f32.mrf.mxu0
  %v3892 = vadd.f32 %v849, %v3891
  %3893 = vdwg.mxu0
  %s3894 = scalar_lea.vmem %s18, 12
  %3895 = vst [vmem:[%s3894] sm:$0x3] %v3892
  // Predicated region
  $region74: #{decoder_rnn_forward.1} parent=0 // pred_check
    _
  $region75: #{decoder_rnn_forward.1} parent=0 // pred_check_branch
    %3897 = sbr.rel (0) target = $region77
  $region76: #{decoder_rnn_forward.1} parent=0 // pred_region
    _
  $region77: #{decoder_rnn_forward.1} parent=0 // pred_fallthru
    _
  // Predicated region
  $region78: #{decoder_rnn_forward.1} parent=0 // pred_check
    _
  $region79: #{decoder_rnn_forward.1} parent=0 // pred_check_branch
    %3899 = sbr.rel (0) target = $region81
  $region80: #{decoder_rnn_forward.1} parent=0 // pred_region
    _
  $region81: #{decoder_rnn_forward.1} parent=0 // pred_fallthru
    _

</llo_original>
